<compile_context>
chip_gen: v6e
topology: v6e:2x2x1
jax: 0.10.0
libtpu: 0.0.40
codegen_flags: <defaults>
</compile_context>

<pallas_src>
import jax
import jax.numpy as jnp
from jax import lax
from jax.experimental import pallas as pl
from jax.experimental.pallas import tpu as pltpu


LANE = 128            # lane width   -> last-dim padding multiple
SUBLANE = 8           # sublane width-> batch padding multiple
MAX_BATCH_TILE = 128  # rows per batch tile (128 on v5e; 128-256 on v6e/v7x)
VMEM_LIMIT = 64 * 1024 * 1024  # explicit scoped-VMEM limit (defaults are 16/32 MiB)


def _round_up(n, m):
    return ((n + m - 1) // m) * m


def _pad2d(a, rows, cols):
    return jnp.pad(a, ((0, rows - a.shape[0]), (0, cols - a.shape[1])))


# --------------------------- fused RNN-stack kernel ---------------------------

def _make_rnn_stack_kernel(num_layers, proj_chunk_rows=512, rec_unroll=8):
    """Kernel over one batch tile: all RNN layers; inter-layer acts stay in VMEM."""
    L = num_layers

    def kernel(x_ref, h0_ref, *rest):
        # rest = wih_0..wih_{L-1}, whh_0.., b_0.., out_ref, hT_ref, xb_scratch
        wih_refs = rest[0:L]
        whh_refs = rest[L:2 * L]
        b_refs = rest[2 * L:3 * L]
        out_ref = rest[3 * L]          # (T, Bt, Hp) f32: current layer's hidden seq
        hT_ref = rest[3 * L + 1]       # (L, Bt, Hp) f32: final hidden per layer
        xb_ref = rest[3 * L + 2]       # (T, Bt, Hp) f32 scratch: hoisted input proj

        T, Bt, _ = x_ref.shape
        Hp = out_ref.shape[-1]
        # Time steps per projection chunk (~proj_chunk_rows MXU rows per dot) to
        # bound live MXU results / vreg pressure when Bt and T are large.
        ct = max(1, proj_chunk_rows // Bt)

        for l in range(L):
            src = x_ref if l == 0 else out_ref
            d_in = src.shape[-1]
            w_in = wih_refs[l][...]                 # (d_in, Hp) bf16
            b = b_refs[l][...]                      # (1, Hp)   f32

            # (1) Input projection hoisted out of the recurrence, chunked over time:
            #     (ct*Bt, d_in) @ (d_in, Hp) bf16 MXU matmuls + combined bias in f32.
            #     Layers l>0 read the previous layer's output straight from VMEM.
            for t0 in range(0, T, ct):
                c = min(ct, T - t0)
                xin = src[pl.ds(t0, c)]             # (c, Bt, d_in)
                xin2 = xin.reshape(c * Bt, d_in)
                if xin2.dtype != jnp.bfloat16:
                    xin2 = xin2.astype(jnp.bfloat16)
                xb = jnp.dot(xin2, w_in, preferred_element_type=jnp.float32) + b
                xb_ref[pl.ds(t0, c)] = xb.reshape(c, Bt, Hp)

            # (2) Serial recurrence: per step a (Bt,Hp)@(Hp,Hp) bf16 matmul + f32 tanh.
            #     W_hh is loaded once (loop-invariant); modest unroll keeps the
            #     matmul/tanh/store interleave without blowing up program size.
            whh = whh_refs[l][...]                  # (Hp, Hp) bf16
            # TODO(synk): on v7x pin W_hh weight-stationary via matmul_push_rhs/
            # matmul_acc_lhs/matmul_pop; jnp.dot kept for v5e/v6e/v7x portability.

            def step(t, h_prev, _whh=whh):
                h_new = jnp.tanh(
                    xb_ref[t]
                    + jnp.dot(h_prev.astype(jnp.bfloat16), _whh,
                              preferred_element_type=jnp.float32))
                out_ref[t] = h_new
                return h_new

            h_last = lax.fori_loop(0, T, step, h0_ref[l],
                                   unroll=min(rec_unroll, T))
            hT_ref[l] = h_last

    return kernel


def rnn_stack(x_tbd, h0, layers, *, batch_tile):
    """Run the padded RNN stack.  x_tbd: (T, Bp, Dp) bf16, h0: (L, Bp, Hp) f32."""
    T, Bp, Dp = x_tbd.shape
    L, _, Hp = h0.shape
    Bt = batch_tile
    assert Bp % Bt == 0

    wih = [lp["w_ih_t"] for lp in layers]
    whh = [lp["w_hh_t"] for lp in layers]
    bias = [lp["b"] for lp in layers]

    def build(single_buffer_weights):
        def wspec(shape):
            idx = lambda b, _n=len(shape): (0,) * _n
            if single_buffer_weights:
                # Loop-invariant across the batch grid -> no need for 2 buffers.
                return pl.BlockSpec(shape, idx, pipeline_mode=pl.Buffered(1))
            return pl.BlockSpec(shape, idx)

        in_specs = (
            [pl.BlockSpec((T, Bt, Dp), lambda b: (0, b, 0)),
             pl.BlockSpec((L, Bt, Hp), lambda b: (0, b, 0))]
            + [wspec(w.shape) for w in wih]
            + [wspec(w.shape) for w in whh]
            + [wspec(bb.shape) for bb in bias]
        )
        out_specs = (
            pl.BlockSpec((T, Bt, Hp), lambda b: (0, b, 0)),
            pl.BlockSpec((L, Bt, Hp), lambda b: (0, b, 0)),
        )
        return pl.pallas_call(
            _make_rnn_stack_kernel(L),
            out_shape=(jax.ShapeDtypeStruct((T, Bp, Hp), jnp.float32),
                       jax.ShapeDtypeStruct((L, Bp, Hp), jnp.float32)),
            grid_spec=pltpu.PrefetchScalarGridSpec(
                num_scalar_prefetch=0,
                grid=(Bp // Bt,),
                in_specs=in_specs,
                out_specs=out_specs,
                scratch_shapes=[pltpu.VMEM((T, Bt, Hp), jnp.float32)]),
            compiler_params=pltpu.CompilerParams(
                dimension_semantics=("parallel",),
                vmem_limit_bytes=VMEM_LIMIT))

    try:
        return build(True)(x_tbd, h0, *wih, *whh, *bias)
    except Exception:
        # Fallback if pipeline_mode=pl.Buffered(1) is rejected by this jax/libtpu.
        return build(False)(x_tbd, h0, *wih, *whh, *bias)


# -------------------------------- fc head kernel -------------------------------

def fc_apply(x_seq, w_t, bias, *, batch_tile, tn=512):
    """x_seq: (T, Bp, Hp) f32 time-major hidden sequence.
    Returns logits in batch-major (Bp, T, Vp) layout (no post-kernel transpose)."""
    T, Bp, Hp = x_seq.shape
    Vp = w_t.shape[1]
    Bt = batch_tile
    tn = min(tn, Vp)

    def kernel(x_ref, w_ref, b_ref, o_ref):
        w = w_ref[...]                 # (Hp, tn) bf16 — loaded once per grid step
        b = b_ref[...]                 # (1, tn)  f32
        for t in range(T):
            y = jnp.dot(x_ref[t].astype(jnp.bfloat16), w,
                        preferred_element_type=jnp.float32) + b
            o_ref[:, t, :] = y         # write batch-major; block stays in VMEM

    return pl.pallas_call(
        kernel,
        out_shape=jax.ShapeDtypeStruct((Bp, T, Vp), jnp.float32),
        grid_spec=pltpu.PrefetchScalarGridSpec(
            num_scalar_prefetch=0,
            # Vocab tiles OUTERMOST: the (Hp, tn) weight tile's block index is
            # constant across the inner batch-tile axis, so each weight tile is
            # streamed from HBM exactly once (fc is HBM-bound for large vocabs).
            grid=(pl.cdiv(Vp, tn), Bp // Bt),
            in_specs=[pl.BlockSpec((T, Bt, Hp), lambda v, b: (0, b, 0)),
                      pl.BlockSpec((Hp, tn), lambda v, b: (0, v)),
                      pl.BlockSpec((1, tn), lambda v, b: (0, v))],
            out_specs=pl.BlockSpec((Bt, T, tn), lambda v, b: (b, 0, v))),
        compiler_params=pltpu.CompilerParams(
            dimension_semantics=("parallel", "parallel"),
            vmem_limit_bytes=VMEM_LIMIT),
    )(x_seq, w_t, bias)


# ------------------------------ params & forward -------------------------------

def init_params(key, vocab_size, embedding_dim, hidden_dim, num_layers):
    """Raw (PyTorch-layout) f32 parameters; used by the pure-JAX reference."""
    keys = jax.random.split(key, 3 + 4 * num_layers)
    k = iter(keys)
    scale = 1.0 / jnp.sqrt(hidden_dim)
    params = {
        "embedding": jax.random.normal(next(k), (vocab_size, embedding_dim),
                                       jnp.float32) * 0.1,
        "layers": [],
        "fc_w": jax.random.uniform(next(k), (vocab_size, hidden_dim), jnp.float32,
                                   -scale, scale),
        "fc_b": jax.random.uniform(next(k), (vocab_size,), jnp.float32, -scale, scale),
    }
    for l in range(num_layers):
        d_in = embedding_dim if l == 0 else hidden_dim
        params["layers"].append({
            "w_ih": jax.random.uniform(next(k), (hidden_dim, d_in), jnp.float32,
                                       -scale, scale),
            "w_hh": jax.random.uniform(next(k), (hidden_dim, hidden_dim), jnp.float32,
                                       -scale, scale),
            "b_ih": jax.random.uniform(next(k), (hidden_dim,), jnp.float32, -scale, scale),
            "b_hh": jax.random.uniform(next(k), (hidden_dim,), jnp.float32, -scale, scale),
        })
    return params


def prepare_params(raw):
    """One-time prep: pre-transpose weights, combine biases, zero-pad to lane tiles,
    and cast all matmul operands to bf16 (MXU-native on v6e/v7x, half the VMEM/HBM
    traffic).  Padding stays numerically exact: padded rows/cols are zero (exactly
    representable in bf16) and tanh(0)=0 keeps padded hidden lanes at zero."""
    E = raw["embedding"].shape[1]
    H = raw["layers"][0]["w_hh"].shape[0]
    V = raw["fc_w"].shape[0]
    Dp, Hp, Vp = _round_up(E, LANE), _round_up(H, LANE), _round_up(V, LANE)
    prep = {
        "embedding": jnp.pad(raw["embedding"],
                             ((0, 0), (0, Dp - E))).astype(jnp.bfloat16),   # (V, Dp)
        "layers": [],
        "fc_w_t": _pad2d(raw["fc_w"].T, Hp, Vp).astype(jnp.bfloat16),       # (Hp, Vp)
        "fc_b": jnp.pad(raw["fc_b"], (0, Vp - V)).reshape(1, Vp),           # f32
        "dims": (E, H, V, Dp, Hp, Vp),
    }
    for l, lp in enumerate(raw["layers"]):
        d_in_p = Dp if l == 0 else Hp
        prep["layers"].append({
            "w_ih_t": _pad2d(lp["w_ih"].T, d_in_p, Hp).astype(jnp.bfloat16),  # (Din_p, Hp)
            "w_hh_t": _pad2d(lp["w_hh"].T, Hp, Hp).astype(jnp.bfloat16),      # (Hp, Hp)
            "b": jnp.pad(lp["b_ih"] + lp["b_hh"], (0, Hp - H)).reshape(1, Hp),  # f32
        })
    return prep


def rnn_forward(prep, x, hidden):
    """Mirrors RNN.forward(x, hidden): x (B,T) int32, hidden (L,B,H) f32.
    Returns (logits (B,T,V), hidden_out (L,B,H))."""
    E, H, V, Dp, Hp, Vp = prep["dims"]
    B, T = x.shape
    # One batch tile of up to MAX_BATCH_TILE rows (no 8-row grid slices).
    Bt = min(_round_up(max(B, SUBLANE), SUBLANE), MAX_BATCH_TILE)
    Bp = _round_up(max(B, SUBLANE), Bt)

    # Embedding gather directly in time-major (T, B, Dp) bf16 order; pad batch.
    emb = prep["embedding"][x.T]
    emb = jnp.pad(emb, ((0, 0), (0, Bp - B), (0, 0)))
    h0 = jnp.pad(hidden, ((0, 0), (0, Bp - B), (0, Hp - H)))

    # TODO(synk): nn.RNN inter-layer dropout is training-only; inference omits it.
    out_seq, h_T = rnn_stack(emb, h0, prep["layers"], batch_tile=Bt)

    # fc head writes batch-major logits directly: (Bp, T, Vp) — no transpose pass.
    logits = fc_apply(out_seq, prep["fc_w_t"], prep["fc_b"], batch_tile=Bt)
    output = logits[:B, :, :V]                       # strip pad (B, T, V)
    hidden_out = h_T[:, :B, :H]
    return output, hidden_out


def rnn_forward_ref(raw, x, hidden):
    """Pure-JAX f32 reference for correctness checking."""
    layer_in = raw["embedding"][x]                    # (B, T, E)
    new_hidden = []
    for l, lp in enumerate(raw["layers"]):
        h = hidden[l]
        outs = []
        for t in range(layer_in.shape[1]):
            h = jnp.tanh(layer_in[:, t, :] @ lp["w_ih"].T + lp["b_ih"]
                         + h @ lp["w_hh"].T + lp["b_hh"])
            outs.append(h)
        layer_in = jnp.stack(outs, axis=1)
        new_hidden.append(h)
    logits = layer_in @ raw["fc_w"].T + raw["fc_b"]
    return logits, jnp.stack(new_hidden, axis=0)


if __name__ == "__main__":
    vocab_size = 64
    embedding_dim = 32
    hidden_dim = 32
    num_layers = 2
    batch = 2
    seq = 8

    key = jax.random.PRNGKey(0)
    k_params, k_x, k_h = jax.random.split(key, 3)
    raw = init_params(k_params, vocab_size, embedding_dim, hidden_dim, num_layers)
    prep = prepare_params(raw)

    x = jax.random.randint(k_x, (batch, seq), 0, vocab_size, dtype=jnp.int32)
    hidden = 0.1 * jax.random.normal(k_h, (num_layers, batch, hidden_dim), jnp.float32)

    out, hidden_out = rnn_forward(prep, x, hidden)
    out, hidden_out = jax.block_until_ready((out, hidden_out))

    ref_out, ref_hidden = rnn_forward_ref(raw, x, hidden)
    assert out.shape == (batch, seq, vocab_size)
    assert hidden_out.shape == (num_layers, batch, hidden_dim)
    # bf16 matmul operands (f32 accumulation / element-wise) -> bf16-level tolerance.
    assert jnp.allclose(out, ref_out, rtol=2e-2, atol=2e-2)
    assert jnp.allclose(hidden_out, ref_hidden, rtol=2e-2, atol=2e-2)

    print("KERNEL_OK")
</pallas_src>

<mosaic_0001>
module attributes {stable_mosaic.version = 11 : i64} {
  func.func @kernel(%arg0: i32, %arg1: memref<8x8x128xbf16, #tpu.memory_space<vmem>>, %arg2: memref<2x8x128xf32, #tpu.memory_space<vmem>>, %arg3: memref<128x128xbf16, #tpu.memory_space<vmem>>, %arg4: memref<128x128xbf16, #tpu.memory_space<vmem>>, %arg5: memref<128x128xbf16, #tpu.memory_space<vmem>>, %arg6: memref<128x128xbf16, #tpu.memory_space<vmem>>, %arg7: memref<1x128xf32, #tpu.memory_space<vmem>>, %arg8: memref<1x128xf32, #tpu.memory_space<vmem>>, %arg9: memref<8x8x128xf32, #tpu.memory_space<vmem>>, %arg10: memref<2x8x128xf32, #tpu.memory_space<vmem>>, %arg11: memref<8x8x128xf32, #tpu.memory_space<vmem>>) attributes {dimension_semantics = [#tpu.dimension_semantics<parallel>], iteration_bounds = array<i64: 1>, scalar_prefetch = 0 : i64, scratch_operands = 1 : i64, tpu.core_type = #tpu.core_type<tc>, window_params = [{transform_indices = @transform_0, window_bounds = array<i64: 8, 8, 128>}, {transform_indices = @transform_1, window_bounds = array<i64: 2, 8, 128>}, {pipeline_mode = #tpu.pipeline_mode<synchronous>, transform_indices = @transform_2, window_bounds = array<i64: 128, 128>}, {pipeline_mode = #tpu.pipeline_mode<synchronous>, transform_indices = @transform_3, window_bounds = array<i64: 128, 128>}, {pipeline_mode = #tpu.pipeline_mode<synchronous>, transform_indices = @transform_4, window_bounds = array<i64: 128, 128>}, {pipeline_mode = #tpu.pipeline_mode<synchronous>, transform_indices = @transform_5, window_bounds = array<i64: 128, 128>}, {pipeline_mode = #tpu.pipeline_mode<synchronous>, transform_indices = @transform_6, window_bounds = array<i64: 1, 128>}, {pipeline_mode = #tpu.pipeline_mode<synchronous>, transform_indices = @transform_7, window_bounds = array<i64: 1, 128>}, {transform_indices = @transform_8, window_bounds = array<i64: 8, 8, 128>}, {transform_indices = @transform_9, window_bounds = array<i64: 2, 8, 128>}]} {
    %c0 = arith.constant 0 : index
    %c0_0 = arith.constant 0 : index
    %0 = vector.load %arg3[%c0, %c0_0] : memref<128x128xbf16, #tpu.memory_space<vmem>>, vector<128x128xbf16>
    %c0_1 = arith.constant 0 : index
    %c0_2 = arith.constant 0 : index
    %1 = vector.load %arg7[%c0_1, %c0_2] : memref<1x128xf32, #tpu.memory_space<vmem>>, vector<1x128xf32>
    %c0_3 = arith.constant 0 : index
    %c0_4 = arith.constant 0 : index
    %c0_5 = arith.constant 0 : index
    %2 = vector.load %arg1[%c0_3, %c0_4, %c0_5] : memref<8x8x128xbf16, #tpu.memory_space<vmem>>, vector<8x8x128xbf16>
    %3 = vector.shape_cast %2 : vector<8x8x128xbf16> to vector<64x128xbf16>
    %cst = arith.constant dense<0.000000e+00> : vector<64x128xf32>
    %4 = tpu.matmul %3, %0, %cst {dimension_numbers = #tpu.dot_dimension_numbers<[1], [0], [0], [1], [0, 0, 1, 1], [], []>} : vector<64x128xbf16>, vector<128x128xbf16>, vector<64x128xf32> -> vector<64x128xf32>
    %5 = vector.broadcast %1 : vector<1x128xf32> to vector<64x128xf32>
    %6 = arith.addf %4, %5 : vector<64x128xf32>
    %7 = vector.shape_cast %6 : vector<64x128xf32> to vector<8x8x128xf32>
    %c0_6 = arith.constant 0 : index
    %c0_7 = arith.constant 0 : index
    %c0_8 = arith.constant 0 : index
    %8 = vector.load %arg11[%c0_6, %c0_7, %c0_8] : memref<8x8x128xf32, #tpu.memory_space<vmem>>, vector<8x8x128xf32>
    tpu.vector_store %arg11[%c0_6, %c0_7, %c0_8], %7 {strides = array<i32>} : memref<8x8x128xf32, #tpu.memory_space<vmem>>, vector<8x8x128xf32>,
    %c0_9 = arith.constant 0 : index
    %c0_10 = arith.constant 0 : index
    %9 = vector.load %arg5[%c0_9, %c0_10] : memref<128x128xbf16, #tpu.memory_space<vmem>>, vector<128x128xbf16>
    %c0_11 = arith.constant 0 : index
    %c0_12 = arith.constant 0 : index
    %c0_13 = arith.constant 0 : index
    %10 = vector.load %arg2[%c0_11, %c0_12, %c0_13] : memref<2x8x128xf32, #tpu.memory_space<vmem>>, vector<1x8x128xf32>
    %11 = vector.shape_cast %10 : vector<1x8x128xf32> to vector<8x128xf32>
    %c0_i32 = arith.constant 0 : i32
    %12 = arith.index_cast %c0_i32 : i32 to index
    %c0_14 = arith.constant 0 : index
    %c0_15 = arith.constant 0 : index
    %13 = vector.load %arg11[%12, %c0_14, %c0_15] : memref<8x8x128xf32, #tpu.memory_space<vmem>>, vector<1x8x128xf32>
    %14 = vector.shape_cast %13 : vector<1x8x128xf32> to vector<8x128xf32>
    %15 = arith.truncf %11 : vector<8x128xf32> to vector<8x128xbf16>
    %cst_16 = arith.constant dense<0.000000e+00> : vector<8x128xf32>
    %16 = tpu.matmul %15, %9, %cst_16 {dimension_numbers = #tpu.dot_dimension_numbers<[1], [0], [0], [1], [0, 0, 1, 1], [], []>} : vector<8x128xbf16>, vector<128x128xbf16>, vector<8x128xf32> -> vector<8x128xf32>
    %17 = arith.addf %14, %16 : vector<8x128xf32>
    %18 = math.tanh %17 : vector<8x128xf32>
    %19 = arith.index_cast %c0_i32 : i32 to index
    %c0_17 = arith.constant 0 : index
    %c0_18 = arith.constant 0 : index
    %20 = vector.load %arg9[%19, %c0_17, %c0_18] : memref<8x8x128xf32, #tpu.memory_space<vmem>>, vector<1x8x128xf32>
    %21 = vector.shape_cast %20 : vector<1x8x128xf32> to vector<8x128xf32>
    %22 = vector.shape_cast %18 : vector<8x128xf32> to vector<1x8x128xf32>
    tpu.vector_store %arg9[%19, %c0_17, %c0_18], %22 {strides = array<i32>} : memref<8x8x128xf32, #tpu.memory_space<vmem>>, vector<1x8x128xf32>,
    %c1_i32 = arith.constant 1 : i32
    %23 = arith.index_cast %c1_i32 : i32 to index
    %c0_19 = arith.constant 0 : index
    %c0_20 = arith.constant 0 : index
    %24 = vector.load %arg11[%23, %c0_19, %c0_20] : memref<8x8x128xf32, #tpu.memory_space<vmem>>, vector<1x8x128xf32>
    %25 = vector.shape_cast %24 : vector<1x8x128xf32> to vector<8x128xf32>
    %26 = arith.truncf %18 : vector<8x128xf32> to vector<8x128xbf16>
    %cst_21 = arith.constant dense<0.000000e+00> : vector<8x128xf32>
    %27 = tpu.matmul %26, %9, %cst_21 {dimension_numbers = #tpu.dot_dimension_numbers<[1], [0], [0], [1], [0, 0, 1, 1], [], []>} : vector<8x128xbf16>, vector<128x128xbf16>, vector<8x128xf32> -> vector<8x128xf32>
    %28 = arith.addf %25, %27 : vector<8x128xf32>
    %29 = math.tanh %28 : vector<8x128xf32>
    %30 = arith.index_cast %c1_i32 : i32 to index
    %c0_22 = arith.constant 0 : index
    %c0_23 = arith.constant 0 : index
    %31 = vector.load %arg9[%30, %c0_22, %c0_23] : memref<8x8x128xf32, #tpu.memory_space<vmem>>, vector<1x8x128xf32>
    %32 = vector.shape_cast %31 : vector<1x8x128xf32> to vector<8x128xf32>
    %33 = vector.shape_cast %29 : vector<8x128xf32> to vector<1x8x128xf32>
    tpu.vector_store %arg9[%30, %c0_22, %c0_23], %33 {strides = array<i32>} : memref<8x8x128xf32, #tpu.memory_space<vmem>>, vector<1x8x128xf32>,
    %c2_i32 = arith.constant 2 : i32
    %34 = arith.index_cast %c2_i32 : i32 to index
    %c0_24 = arith.constant 0 : index
    %c0_25 = arith.constant 0 : index
    %35 = vector.load %arg11[%34, %c0_24, %c0_25] : memref<8x8x128xf32, #tpu.memory_space<vmem>>, vector<1x8x128xf32>
    %36 = vector.shape_cast %35 : vector<1x8x128xf32> to vector<8x128xf32>
    %37 = arith.truncf %29 : vector<8x128xf32> to vector<8x128xbf16>
    %cst_26 = arith.constant dense<0.000000e+00> : vector<8x128xf32>
    %38 = tpu.matmul %37, %9, %cst_26 {dimension_numbers = #tpu.dot_dimension_numbers<[1], [0], [0], [1], [0, 0, 1, 1], [], []>} : vector<8x128xbf16>, vector<128x128xbf16>, vector<8x128xf32> -> vector<8x128xf32>
    %39 = arith.addf %36, %38 : vector<8x128xf32>
    %40 = math.tanh %39 : vector<8x128xf32>
    %41 = arith.index_cast %c2_i32 : i32 to index
    %c0_27 = arith.constant 0 : index
    %c0_28 = arith.constant 0 : index
    %42 = vector.load %arg9[%41, %c0_27, %c0_28] : memref<8x8x128xf32, #tpu.memory_space<vmem>>, vector<1x8x128xf32>
    %43 = vector.shape_cast %42 : vector<1x8x128xf32> to vector<8x128xf32>
    %44 = vector.shape_cast %40 : vector<8x128xf32> to vector<1x8x128xf32>
    tpu.vector_store %arg9[%41, %c0_27, %c0_28], %44 {strides = array<i32>} : memref<8x8x128xf32, #tpu.memory_space<vmem>>, vector<1x8x128xf32>,
    %c3_i32 = arith.constant 3 : i32
    %45 = arith.index_cast %c3_i32 : i32 to index
    %c0_29 = arith.constant 0 : index
    %c0_30 = arith.constant 0 : index
    %46 = vector.load %arg11[%45, %c0_29, %c0_30] : memref<8x8x128xf32, #tpu.memory_space<vmem>>, vector<1x8x128xf32>
    %47 = vector.shape_cast %46 : vector<1x8x128xf32> to vector<8x128xf32>
    %48 = arith.truncf %40 : vector<8x128xf32> to vector<8x128xbf16>
    %cst_31 = arith.constant dense<0.000000e+00> : vector<8x128xf32>
    %49 = tpu.matmul %48, %9, %cst_31 {dimension_numbers = #tpu.dot_dimension_numbers<[1], [0], [0], [1], [0, 0, 1, 1], [], []>} : vector<8x128xbf16>, vector<128x128xbf16>, vector<8x128xf32> -> vector<8x128xf32>
    %50 = arith.addf %47, %49 : vector<8x128xf32>
    %51 = math.tanh %50 : vector<8x128xf32>
    %52 = arith.index_cast %c3_i32 : i32 to index
    %c0_32 = arith.constant 0 : index
    %c0_33 = arith.constant 0 : index
    %53 = vector.load %arg9[%52, %c0_32, %c0_33] : memref<8x8x128xf32, #tpu.memory_space<vmem>>, vector<1x8x128xf32>
    %54 = vector.shape_cast %53 : vector<1x8x128xf32> to vector<8x128xf32>
    %55 = vector.shape_cast %51 : vector<8x128xf32> to vector<1x8x128xf32>
    tpu.vector_store %arg9[%52, %c0_32, %c0_33], %55 {strides = array<i32>} : memref<8x8x128xf32, #tpu.memory_space<vmem>>, vector<1x8x128xf32>,
    %c4_i32 = arith.constant 4 : i32
    %56 = arith.index_cast %c4_i32 : i32 to index
    %c0_34 = arith.constant 0 : index
    %c0_35 = arith.constant 0 : index
    %57 = vector.load %arg11[%56, %c0_34, %c0_35] : memref<8x8x128xf32, #tpu.memory_space<vmem>>, vector<1x8x128xf32>
    %58 = vector.shape_cast %57 : vector<1x8x128xf32> to vector<8x128xf32>
    %59 = arith.truncf %51 : vector<8x128xf32> to vector<8x128xbf16>
    %cst_36 = arith.constant dense<0.000000e+00> : vector<8x128xf32>
    %60 = tpu.matmul %59, %9, %cst_36 {dimension_numbers = #tpu.dot_dimension_numbers<[1], [0], [0], [1], [0, 0, 1, 1], [], []>} : vector<8x128xbf16>, vector<128x128xbf16>, vector<8x128xf32> -> vector<8x128xf32>
    %61 = arith.addf %58, %60 : vector<8x128xf32>
    %62 = math.tanh %61 : vector<8x128xf32>
    %63 = arith.index_cast %c4_i32 : i32 to index
    %c0_37 = arith.constant 0 : index
    %c0_38 = arith.constant 0 : index
    %64 = vector.load %arg9[%63, %c0_37, %c0_38] : memref<8x8x128xf32, #tpu.memory_space<vmem>>, vector<1x8x128xf32>
    %65 = vector.shape_cast %64 : vector<1x8x128xf32> to vector<8x128xf32>
    %66 = vector.shape_cast %62 : vector<8x128xf32> to vector<1x8x128xf32>
    tpu.vector_store %arg9[%63, %c0_37, %c0_38], %66 {strides = array<i32>} : memref<8x8x128xf32, #tpu.memory_space<vmem>>, vector<1x8x128xf32>,
    %c5_i32 = arith.constant 5 : i32
    %67 = arith.index_cast %c5_i32 : i32 to index
    %c0_39 = arith.constant 0 : index
    %c0_40 = arith.constant 0 : index
    %68 = vector.load %arg11[%67, %c0_39, %c0_40] : memref<8x8x128xf32, #tpu.memory_space<vmem>>, vector<1x8x128xf32>
    %69 = vector.shape_cast %68 : vector<1x8x128xf32> to vector<8x128xf32>
    %70 = arith.truncf %62 : vector<8x128xf32> to vector<8x128xbf16>
    %cst_41 = arith.constant dense<0.000000e+00> : vector<8x128xf32>
    %71 = tpu.matmul %70, %9, %cst_41 {dimension_numbers = #tpu.dot_dimension_numbers<[1], [0], [0], [1], [0, 0, 1, 1], [], []>} : vector<8x128xbf16>, vector<128x128xbf16>, vector<8x128xf32> -> vector<8x128xf32>
    %72 = arith.addf %69, %71 : vector<8x128xf32>
    %73 = math.tanh %72 : vector<8x128xf32>
    %74 = arith.index_cast %c5_i32 : i32 to index
    %c0_42 = arith.constant 0 : index
    %c0_43 = arith.constant 0 : index
    %75 = vector.load %arg9[%74, %c0_42, %c0_43] : memref<8x8x128xf32, #tpu.memory_space<vmem>>, vector<1x8x128xf32>
    %76 = vector.shape_cast %75 : vector<1x8x128xf32> to vector<8x128xf32>
    %77 = vector.shape_cast %73 : vector<8x128xf32> to vector<1x8x128xf32>
    tpu.vector_store %arg9[%74, %c0_42, %c0_43], %77 {strides = array<i32>} : memref<8x8x128xf32, #tpu.memory_space<vmem>>, vector<1x8x128xf32>,
    %c6_i32 = arith.constant 6 : i32
    %78 = arith.index_cast %c6_i32 : i32 to index
    %c0_44 = arith.constant 0 : index
    %c0_45 = arith.constant 0 : index
    %79 = vector.load %arg11[%78, %c0_44, %c0_45] : memref<8x8x128xf32, #tpu.memory_space<vmem>>, vector<1x8x128xf32>
    %80 = vector.shape_cast %79 : vector<1x8x128xf32> to vector<8x128xf32>
    %81 = arith.truncf %73 : vector<8x128xf32> to vector<8x128xbf16>
    %cst_46 = arith.constant dense<0.000000e+00> : vector<8x128xf32>
    %82 = tpu.matmul %81, %9, %cst_46 {dimension_numbers = #tpu.dot_dimension_numbers<[1], [0], [0], [1], [0, 0, 1, 1], [], []>} : vector<8x128xbf16>, vector<128x128xbf16>, vector<8x128xf32> -> vector<8x128xf32>
    %83 = arith.addf %80, %82 : vector<8x128xf32>
    %84 = math.tanh %83 : vector<8x128xf32>
    %85 = arith.index_cast %c6_i32 : i32 to index
    %c0_47 = arith.constant 0 : index
    %c0_48 = arith.constant 0 : index
    %86 = vector.load %arg9[%85, %c0_47, %c0_48] : memref<8x8x128xf32, #tpu.memory_space<vmem>>, vector<1x8x128xf32>
    %87 = vector.shape_cast %86 : vector<1x8x128xf32> to vector<8x128xf32>
    %88 = vector.shape_cast %84 : vector<8x128xf32> to vector<1x8x128xf32>
    tpu.vector_store %arg9[%85, %c0_47, %c0_48], %88 {strides = array<i32>} : memref<8x8x128xf32, #tpu.memory_space<vmem>>, vector<1x8x128xf32>,
    %c7_i32 = arith.constant 7 : i32
    %89 = arith.index_cast %c7_i32 : i32 to index
    %c0_49 = arith.constant 0 : index
    %c0_50 = arith.constant 0 : index
    %90 = vector.load %arg11[%89, %c0_49, %c0_50] : memref<8x8x128xf32, #tpu.memory_space<vmem>>, vector<1x8x128xf32>
    %91 = vector.shape_cast %90 : vector<1x8x128xf32> to vector<8x128xf32>
    %92 = arith.truncf %84 : vector<8x128xf32> to vector<8x128xbf16>
    %cst_51 = arith.constant dense<0.000000e+00> : vector<8x128xf32>
    %93 = tpu.matmul %92, %9, %cst_51 {dimension_numbers = #tpu.dot_dimension_numbers<[1], [0], [0], [1], [0, 0, 1, 1], [], []>} : vector<8x128xbf16>, vector<128x128xbf16>, vector<8x128xf32> -> vector<8x128xf32>
    %94 = arith.addf %91, %93 : vector<8x128xf32>
    %95 = math.tanh %94 : vector<8x128xf32>
    %96 = arith.index_cast %c7_i32 : i32 to index
    %c0_52 = arith.constant 0 : index
    %c0_53 = arith.constant 0 : index
    %97 = vector.load %arg9[%96, %c0_52, %c0_53] : memref<8x8x128xf32, #tpu.memory_space<vmem>>, vector<1x8x128xf32>
    %98 = vector.shape_cast %97 : vector<1x8x128xf32> to vector<8x128xf32>
    %99 = vector.shape_cast %95 : vector<8x128xf32> to vector<1x8x128xf32>
    tpu.vector_store %arg9[%96, %c0_52, %c0_53], %99 {strides = array<i32>} : memref<8x8x128xf32, #tpu.memory_space<vmem>>, vector<1x8x128xf32>,
    %c8_i32 = arith.constant 8 : i32
    %c0_54 = arith.constant 0 : index
    %c0_55 = arith.constant 0 : index
    %c0_56 = arith.constant 0 : index
    %100 = vector.load %arg10[%c0_54, %c0_55, %c0_56] : memref<2x8x128xf32, #tpu.memory_space<vmem>>, vector<1x8x128xf32>
    %101 = vector.shape_cast %100 : vector<1x8x128xf32> to vector<8x128xf32>
    %102 = vector.shape_cast %95 : vector<8x128xf32> to vector<1x8x128xf32>
    tpu.vector_store %arg10[%c0_54, %c0_55, %c0_56], %102 {strides = array<i32>} : memref<2x8x128xf32, #tpu.memory_space<vmem>>, vector<1x8x128xf32>,
    %c0_57 = arith.constant 0 : index
    %c0_58 = arith.constant 0 : index
    %103 = vector.load %arg4[%c0_57, %c0_58] : memref<128x128xbf16, #tpu.memory_space<vmem>>, vector<128x128xbf16>
    %c0_59 = arith.constant 0 : index
    %c0_60 = arith.constant 0 : index
    %104 = vector.load %arg8[%c0_59, %c0_60] : memref<1x128xf32, #tpu.memory_space<vmem>>, vector<1x128xf32>
    %c0_61 = arith.constant 0 : index
    %c0_62 = arith.constant 0 : index
    %c0_63 = arith.constant 0 : index
    %105 = vector.load %arg9[%c0_61, %c0_62, %c0_63] : memref<8x8x128xf32, #tpu.memory_space<vmem>>, vector<8x8x128xf32>
    %106 = vector.shape_cast %105 : vector<8x8x128xf32> to vector<64x128xf32>
    %107 = arith.truncf %106 : vector<64x128xf32> to vector<64x128xbf16>
    %cst_64 = arith.constant dense<0.000000e+00> : vector<64x128xf32>
    %108 = tpu.matmul %107, %103, %cst_64 {dimension_numbers = #tpu.dot_dimension_numbers<[1], [0], [0], [1], [0, 0, 1, 1], [], []>} : vector<64x128xbf16>, vector<128x128xbf16>, vector<64x128xf32> -> vector<64x128xf32>
    %109 = vector.broadcast %104 : vector<1x128xf32> to vector<64x128xf32>
    %110 = arith.addf %108, %109 : vector<64x128xf32>
    %111 = vector.shape_cast %110 : vector<64x128xf32> to vector<8x8x128xf32>
    %c0_65 = arith.constant 0 : index
    %c0_66 = arith.constant 0 : index
    %c0_67 = arith.constant 0 : index
    %112 = vector.load %arg11[%c0_65, %c0_66, %c0_67] : memref<8x8x128xf32, #tpu.memory_space<vmem>>, vector<8x8x128xf32>
    tpu.vector_store %arg11[%c0_65, %c0_66, %c0_67], %111 {strides = array<i32>} : memref<8x8x128xf32, #tpu.memory_space<vmem>>, vector<8x8x128xf32>,
    %c0_68 = arith.constant 0 : index
    %c0_69 = arith.constant 0 : index
    %113 = vector.load %arg6[%c0_68, %c0_69] : memref<128x128xbf16, #tpu.memory_space<vmem>>, vector<128x128xbf16>
    %c1 = arith.constant 1 : index
    %c0_70 = arith.constant 0 : index
    %c0_71 = arith.constant 0 : index
    %114 = vector.load %arg2[%c1, %c0_70, %c0_71] : memref<2x8x128xf32, #tpu.memory_space<vmem>>, vector<1x8x128xf32>
    %115 = vector.shape_cast %114 : vector<1x8x128xf32> to vector<8x128xf32>
    %c0_i32_72 = arith.constant 0 : i32
    %116 = arith.index_cast %c0_i32_72 : i32 to index
    %c0_73 = arith.constant 0 : index
    %c0_74 = arith.constant 0 : index
    %117 = vector.load %arg11[%116, %c0_73, %c0_74] : memref<8x8x128xf32, #tpu.memory_space<vmem>>, vector<1x8x128xf32>
    %118 = vector.shape_cast %117 : vector<1x8x128xf32> to vector<8x128xf32>
    %119 = arith.truncf %115 : vector<8x128xf32> to vector<8x128xbf16>
    %cst_75 = arith.constant dense<0.000000e+00> : vector<8x128xf32>
    %120 = tpu.matmul %119, %113, %cst_75 {dimension_numbers = #tpu.dot_dimension_numbers<[1], [0], [0], [1], [0, 0, 1, 1], [], []>} : vector<8x128xbf16>, vector<128x128xbf16>, vector<8x128xf32> -> vector<8x128xf32>
    %121 = arith.addf %118, %120 : vector<8x128xf32>
    %122 = math.tanh %121 : vector<8x128xf32>
    %123 = arith.index_cast %c0_i32_72 : i32 to index
    %c0_76 = arith.constant 0 : index
    %c0_77 = arith.constant 0 : index
    %124 = vector.load %arg9[%123, %c0_76, %c0_77] : memref<8x8x128xf32, #tpu.memory_space<vmem>>, vector<1x8x128xf32>
    %125 = vector.shape_cast %124 : vector<1x8x128xf32> to vector<8x128xf32>
    %126 = vector.shape_cast %122 : vector<8x128xf32> to vector<1x8x128xf32>
    tpu.vector_store %arg9[%123, %c0_76, %c0_77], %126 {strides = array<i32>} : memref<8x8x128xf32, #tpu.memory_space<vmem>>, vector<1x8x128xf32>,
    %c1_i32_78 = arith.constant 1 : i32
    %127 = arith.index_cast %c1_i32_78 : i32 to index
    %c0_79 = arith.constant 0 : index
    %c0_80 = arith.constant 0 : index
    %128 = vector.load %arg11[%127, %c0_79, %c0_80] : memref<8x8x128xf32, #tpu.memory_space<vmem>>, vector<1x8x128xf32>
    %129 = vector.shape_cast %128 : vector<1x8x128xf32> to vector<8x128xf32>
    %130 = arith.truncf %122 : vector<8x128xf32> to vector<8x128xbf16>
    %cst_81 = arith.constant dense<0.000000e+00> : vector<8x128xf32>
    %131 = tpu.matmul %130, %113, %cst_81 {dimension_numbers = #tpu.dot_dimension_numbers<[1], [0], [0], [1], [0, 0, 1, 1], [], []>} : vector<8x128xbf16>, vector<128x128xbf16>, vector<8x128xf32> -> vector<8x128xf32>
    %132 = arith.addf %129, %131 : vector<8x128xf32>
    %133 = math.tanh %132 : vector<8x128xf32>
    %134 = arith.index_cast %c1_i32_78 : i32 to index
    %c0_82 = arith.constant 0 : index
    %c0_83 = arith.constant 0 : index
    %135 = vector.load %arg9[%134, %c0_82, %c0_83] : memref<8x8x128xf32, #tpu.memory_space<vmem>>, vector<1x8x128xf32>
    %136 = vector.shape_cast %135 : vector<1x8x128xf32> to vector<8x128xf32>
    %137 = vector.shape_cast %133 : vector<8x128xf32> to vector<1x8x128xf32>
    tpu.vector_store %arg9[%134, %c0_82, %c0_83], %137 {strides = array<i32>} : memref<8x8x128xf32, #tpu.memory_space<vmem>>, vector<1x8x128xf32>,
    %c2_i32_84 = arith.constant 2 : i32
    %138 = arith.index_cast %c2_i32_84 : i32 to index
    %c0_85 = arith.constant 0 : index
    %c0_86 = arith.constant 0 : index
    %139 = vector.load %arg11[%138, %c0_85, %c0_86] : memref<8x8x128xf32, #tpu.memory_space<vmem>>, vector<1x8x128xf32>
    %140 = vector.shape_cast %139 : vector<1x8x128xf32> to vector<8x128xf32>
    %141 = arith.truncf %133 : vector<8x128xf32> to vector<8x128xbf16>
    %cst_87 = arith.constant dense<0.000000e+00> : vector<8x128xf32>
    %142 = tpu.matmul %141, %113, %cst_87 {dimension_numbers = #tpu.dot_dimension_numbers<[1], [0], [0], [1], [0, 0, 1, 1], [], []>} : vector<8x128xbf16>, vector<128x128xbf16>, vector<8x128xf32> -> vector<8x128xf32>
    %143 = arith.addf %140, %142 : vector<8x128xf32>
    %144 = math.tanh %143 : vector<8x128xf32>
    %145 = arith.index_cast %c2_i32_84 : i32 to index
    %c0_88 = arith.constant 0 : index
    %c0_89 = arith.constant 0 : index
    %146 = vector.load %arg9[%145, %c0_88, %c0_89] : memref<8x8x128xf32, #tpu.memory_space<vmem>>, vector<1x8x128xf32>
    %147 = vector.shape_cast %146 : vector<1x8x128xf32> to vector<8x128xf32>
    %148 = vector.shape_cast %144 : vector<8x128xf32> to vector<1x8x128xf32>
    tpu.vector_store %arg9[%145, %c0_88, %c0_89], %148 {strides = array<i32>} : memref<8x8x128xf32, #tpu.memory_space<vmem>>, vector<1x8x128xf32>,
    %c3_i32_90 = arith.constant 3 : i32
    %149 = arith.index_cast %c3_i32_90 : i32 to index
    %c0_91 = arith.constant 0 : index
    %c0_92 = arith.constant 0 : index
    %150 = vector.load %arg11[%149, %c0_91, %c0_92] : memref<8x8x128xf32, #tpu.memory_space<vmem>>, vector<1x8x128xf32>
    %151 = vector.shape_cast %150 : vector<1x8x128xf32> to vector<8x128xf32>
    %152 = arith.truncf %144 : vector<8x128xf32> to vector<8x128xbf16>
    %cst_93 = arith.constant dense<0.000000e+00> : vector<8x128xf32>
    %153 = tpu.matmul %152, %113, %cst_93 {dimension_numbers = #tpu.dot_dimension_numbers<[1], [0], [0], [1], [0, 0, 1, 1], [], []>} : vector<8x128xbf16>, vector<128x128xbf16>, vector<8x128xf32> -> vector<8x128xf32>
    %154 = arith.addf %151, %153 : vector<8x128xf32>
    %155 = math.tanh %154 : vector<8x128xf32>
    %156 = arith.index_cast %c3_i32_90 : i32 to index
    %c0_94 = arith.constant 0 : index
    %c0_95 = arith.constant 0 : index
    %157 = vector.load %arg9[%156, %c0_94, %c0_95] : memref<8x8x128xf32, #tpu.memory_space<vmem>>, vector<1x8x128xf32>
    %158 = vector.shape_cast %157 : vector<1x8x128xf32> to vector<8x128xf32>
    %159 = vector.shape_cast %155 : vector<8x128xf32> to vector<1x8x128xf32>
    tpu.vector_store %arg9[%156, %c0_94, %c0_95], %159 {strides = array<i32>} : memref<8x8x128xf32, #tpu.memory_space<vmem>>, vector<1x8x128xf32>,
    %c4_i32_96 = arith.constant 4 : i32
    %160 = arith.index_cast %c4_i32_96 : i32 to index
    %c0_97 = arith.constant 0 : index
    %c0_98 = arith.constant 0 : index
    %161 = vector.load %arg11[%160, %c0_97, %c0_98] : memref<8x8x128xf32, #tpu.memory_space<vmem>>, vector<1x8x128xf32>
    %162 = vector.shape_cast %161 : vector<1x8x128xf32> to vector<8x128xf32>
    %163 = arith.truncf %155 : vector<8x128xf32> to vector<8x128xbf16>
    %cst_99 = arith.constant dense<0.000000e+00> : vector<8x128xf32>
    %164 = tpu.matmul %163, %113, %cst_99 {dimension_numbers = #tpu.dot_dimension_numbers<[1], [0], [0], [1], [0, 0, 1, 1], [], []>} : vector<8x128xbf16>, vector<128x128xbf16>, vector<8x128xf32> -> vector<8x128xf32>
    %165 = arith.addf %162, %164 : vector<8x128xf32>
    %166 = math.tanh %165 : vector<8x128xf32>
    %167 = arith.index_cast %c4_i32_96 : i32 to index
    %c0_100 = arith.constant 0 : index
    %c0_101 = arith.constant 0 : index
    %168 = vector.load %arg9[%167, %c0_100, %c0_101] : memref<8x8x128xf32, #tpu.memory_space<vmem>>, vector<1x8x128xf32>
    %169 = vector.shape_cast %168 : vector<1x8x128xf32> to vector<8x128xf32>
    %170 = vector.shape_cast %166 : vector<8x128xf32> to vector<1x8x128xf32>
    tpu.vector_store %arg9[%167, %c0_100, %c0_101], %170 {strides = array<i32>} : memref<8x8x128xf32, #tpu.memory_space<vmem>>, vector<1x8x128xf32>,
    %c5_i32_102 = arith.constant 5 : i32
    %171 = arith.index_cast %c5_i32_102 : i32 to index
    %c0_103 = arith.constant 0 : index
    %c0_104 = arith.constant 0 : index
    %172 = vector.load %arg11[%171, %c0_103, %c0_104] : memref<8x8x128xf32, #tpu.memory_space<vmem>>, vector<1x8x128xf32>
    %173 = vector.shape_cast %172 : vector<1x8x128xf32> to vector<8x128xf32>
    %174 = arith.truncf %166 : vector<8x128xf32> to vector<8x128xbf16>
    %cst_105 = arith.constant dense<0.000000e+00> : vector<8x128xf32>
    %175 = tpu.matmul %174, %113, %cst_105 {dimension_numbers = #tpu.dot_dimension_numbers<[1], [0], [0], [1], [0, 0, 1, 1], [], []>} : vector<8x128xbf16>, vector<128x128xbf16>, vector<8x128xf32> -> vector<8x128xf32>
    %176 = arith.addf %173, %175 : vector<8x128xf32>
    %177 = math.tanh %176 : vector<8x128xf32>
    %178 = arith.index_cast %c5_i32_102 : i32 to index
    %c0_106 = arith.constant 0 : index
    %c0_107 = arith.constant 0 : index
    %179 = vector.load %arg9[%178, %c0_106, %c0_107] : memref<8x8x128xf32, #tpu.memory_space<vmem>>, vector<1x8x128xf32>
    %180 = vector.shape_cast %179 : vector<1x8x128xf32> to vector<8x128xf32>
    %181 = vector.shape_cast %177 : vector<8x128xf32> to vector<1x8x128xf32>
    tpu.vector_store %arg9[%178, %c0_106, %c0_107], %181 {strides = array<i32>} : memref<8x8x128xf32, #tpu.memory_space<vmem>>, vector<1x8x128xf32>,
    %c6_i32_108 = arith.constant 6 : i32
    %182 = arith.index_cast %c6_i32_108 : i32 to index
    %c0_109 = arith.constant 0 : index
    %c0_110 = arith.constant 0 : index
    %183 = vector.load %arg11[%182, %c0_109, %c0_110] : memref<8x8x128xf32, #tpu.memory_space<vmem>>, vector<1x8x128xf32>
    %184 = vector.shape_cast %183 : vector<1x8x128xf32> to vector<8x128xf32>
    %185 = arith.truncf %177 : vector<8x128xf32> to vector<8x128xbf16>
    %cst_111 = arith.constant dense<0.000000e+00> : vector<8x128xf32>
    %186 = tpu.matmul %185, %113, %cst_111 {dimension_numbers = #tpu.dot_dimension_numbers<[1], [0], [0], [1], [0, 0, 1, 1], [], []>} : vector<8x128xbf16>, vector<128x128xbf16>, vector<8x128xf32> -> vector<8x128xf32>
    %187 = arith.addf %184, %186 : vector<8x128xf32>
    %188 = math.tanh %187 : vector<8x128xf32>
    %189 = arith.index_cast %c6_i32_108 : i32 to index
    %c0_112 = arith.constant 0 : index
    %c0_113 = arith.constant 0 : index
    %190 = vector.load %arg9[%189, %c0_112, %c0_113] : memref<8x8x128xf32, #tpu.memory_space<vmem>>, vector<1x8x128xf32>
    %191 = vector.shape_cast %190 : vector<1x8x128xf32> to vector<8x128xf32>
    %192 = vector.shape_cast %188 : vector<8x128xf32> to vector<1x8x128xf32>
    tpu.vector_store %arg9[%189, %c0_112, %c0_113], %192 {strides = array<i32>} : memref<8x8x128xf32, #tpu.memory_space<vmem>>, vector<1x8x128xf32>,
    %c7_i32_114 = arith.constant 7 : i32
    %193 = arith.index_cast %c7_i32_114 : i32 to index
    %c0_115 = arith.constant 0 : index
    %c0_116 = arith.constant 0 : index
    %194 = vector.load %arg11[%193, %c0_115, %c0_116] : memref<8x8x128xf32, #tpu.memory_space<vmem>>, vector<1x8x128xf32>
    %195 = vector.shape_cast %194 : vector<1x8x128xf32> to vector<8x128xf32>
    %196 = arith.truncf %188 : vector<8x128xf32> to vector<8x128xbf16>
    %cst_117 = arith.constant dense<0.000000e+00> : vector<8x128xf32>
    %197 = tpu.matmul %196, %113, %cst_117 {dimension_numbers = #tpu.dot_dimension_numbers<[1], [0], [0], [1], [0, 0, 1, 1], [], []>} : vector<8x128xbf16>, vector<128x128xbf16>, vector<8x128xf32> -> vector<8x128xf32>
    %198 = arith.addf %195, %197 : vector<8x128xf32>
    %199 = math.tanh %198 : vector<8x128xf32>
    %200 = arith.index_cast %c7_i32_114 : i32 to index
    %c0_118 = arith.constant 0 : index
    %c0_119 = arith.constant 0 : index
    %201 = vector.load %arg9[%200, %c0_118, %c0_119] : memref<8x8x128xf32, #tpu.memory_space<vmem>>, vector<1x8x128xf32>
    %202 = vector.shape_cast %201 : vector<1x8x128xf32> to vector<8x128xf32>
    %203 = vector.shape_cast %199 : vector<8x128xf32> to vector<1x8x128xf32>
    tpu.vector_store %arg9[%200, %c0_118, %c0_119], %203 {strides = array<i32>} : memref<8x8x128xf32, #tpu.memory_space<vmem>>, vector<1x8x128xf32>,
    %c8_i32_120 = arith.constant 8 : i32
    %c1_121 = arith.constant 1 : index
    %c0_122 = arith.constant 0 : index
    %c0_123 = arith.constant 0 : index
    %204 = vector.load %arg10[%c1_121, %c0_122, %c0_123] : memref<2x8x128xf32, #tpu.memory_space<vmem>>, vector<1x8x128xf32>
    %205 = vector.shape_cast %204 : vector<1x8x128xf32> to vector<8x128xf32>
    %206 = vector.shape_cast %199 : vector<8x128xf32> to vector<1x8x128xf32>
    tpu.vector_store %arg10[%c1_121, %c0_122, %c0_123], %206 {strides = array<i32>} : memref<2x8x128xf32, #tpu.memory_space<vmem>>, vector<1x8x128xf32>,
    return
  }
  func.func @transform_0(%arg0: i32) -> (i32, i32, i32) {
    %c0_i32 = arith.constant 0 : i32
    %c0_i32_0 = arith.constant 0 : i32
    %c0_i32_1 = arith.constant 0 : i32
    return %c0_i32, %arg0, %c0_i32_0 : i32, i32, i32
  }
  func.func @transform_1(%arg0: i32) -> (i32, i32, i32) {
    %c0_i32 = arith.constant 0 : i32
    %c0_i32_0 = arith.constant 0 : i32
    %c0_i32_1 = arith.constant 0 : i32
    return %c0_i32, %arg0, %c0_i32_0 : i32, i32, i32
  }
  func.func @transform_2(%arg0: i32) -> (i32, i32) {
    %c0_i32 = arith.constant 0 : i32
    %c0_i32_0 = arith.constant 0 : i32
    %c0_i32_1 = arith.constant 0 : i32
    return %c0_i32, %c0_i32_0 : i32, i32
  }
  func.func @transform_3(%arg0: i32) -> (i32, i32) {
    %c0_i32 = arith.constant 0 : i32
    %c0_i32_0 = arith.constant 0 : i32
    %c0_i32_1 = arith.constant 0 : i32
    return %c0_i32, %c0_i32_0 : i32, i32
  }
  func.func @transform_4(%arg0: i32) -> (i32, i32) {
    %c0_i32 = arith.constant 0 : i32
    %c0_i32_0 = arith.constant 0 : i32
    %c0_i32_1 = arith.constant 0 : i32
    return %c0_i32, %c0_i32_0 : i32, i32
  }
  func.func @transform_5(%arg0: i32) -> (i32, i32) {
    %c0_i32 = arith.constant 0 : i32
    %c0_i32_0 = arith.constant 0 : i32
    %c0_i32_1 = arith.constant 0 : i32
    return %c0_i32, %c0_i32_0 : i32, i32
  }
  func.func @transform_6(%arg0: i32) -> (i32, i32) {
    %c0_i32 = arith.constant 0 : i32
    %c0_i32_0 = arith.constant 0 : i32
    %c0_i32_1 = arith.constant 0 : i32
    return %c0_i32, %c0_i32_0 : i32, i32
  }
  func.func @transform_7(%arg0: i32) -> (i32, i32) {
    %c0_i32 = arith.constant 0 : i32
    %c0_i32_0 = arith.constant 0 : i32
    %c0_i32_1 = arith.constant 0 : i32
    return %c0_i32, %c0_i32_0 : i32, i32
  }
  func.func @transform_8(%arg0: i32) -> (i32, i32, i32) {
    %c0_i32 = arith.constant 0 : i32
    %c0_i32_0 = arith.constant 0 : i32
    %c0_i32_1 = arith.constant 0 : i32
    return %c0_i32, %arg0, %c0_i32_0 : i32, i32, i32
  }
  func.func @transform_9(%arg0: i32) -> (i32, i32, i32) {
    %c0_i32 = arith.constant 0 : i32
    %c0_i32_0 = arith.constant 0 : i32
    %c0_i32_1 = arith.constant 0 : i32
    return %c0_i32, %arg0, %c0_i32_0 : i32, i32, i32
  }
}

module attributes {stable_mosaic.version = 11 : i64} {
  func.func @kernel(%arg0: i32, %arg1: memref<8x8x128xbf16, #tpu.memory_space<vmem>>, %arg2: memref<2x8x128xf32, #tpu.memory_space<vmem>>, %arg3: memref<128x128xbf16, #tpu.memory_space<vmem>>, %arg4: memref<128x128xbf16, #tpu.memory_space<vmem>>, %arg5: memref<128x128xbf16, #tpu.memory_space<vmem>>, %arg6: memref<128x128xbf16, #tpu.memory_space<vmem>>, %arg7: memref<1x128xf32, #tpu.memory_space<vmem>>, %arg8: memref<1x128xf32, #tpu.memory_space<vmem>>, %arg9: memref<8x8x128xf32, #tpu.memory_space<vmem>>, %arg10: memref<2x8x128xf32, #tpu.memory_space<vmem>>, %arg11: memref<8x8x128xf32, #tpu.memory_space<vmem>>) attributes {dimension_semantics = [#tpu.dimension_semantics<parallel>], iteration_bounds = array<i64: 1>, scalar_prefetch = 0 : i64, scratch_operands = 1 : i64, tpu.core_type = #tpu.core_type<tc>, window_params = [{transform_indices = @transform_0, window_bounds = array<i64: 8, 8, 128>}, {transform_indices = @transform_1, window_bounds = array<i64: 2, 8, 128>}, {pipeline_mode = #tpu.pipeline_mode<synchronous>, transform_indices = @transform_2, window_bounds = array<i64: 128, 128>}, {pipeline_mode = #tpu.pipeline_mode<synchronous>, transform_indices = @transform_3, window_bounds = array<i64: 128, 128>}, {pipeline_mode = #tpu.pipeline_mode<synchronous>, transform_indices = @transform_4, window_bounds = array<i64: 128, 128>}, {pipeline_mode = #tpu.pipeline_mode<synchronous>, transform_indices = @transform_5, window_bounds = array<i64: 128, 128>}, {pipeline_mode = #tpu.pipeline_mode<synchronous>, transform_indices = @transform_6, window_bounds = array<i64: 1, 128>}, {pipeline_mode = #tpu.pipeline_mode<synchronous>, transform_indices = @transform_7, window_bounds = array<i64: 1, 128>}, {transform_indices = @transform_8, window_bounds = array<i64: 8, 8, 128>}, {transform_indices = @transform_9, window_bounds = array<i64: 2, 8, 128>}]} {
    %c0 = arith.constant 0 : index
    %c0_0 = arith.constant 0 : index
    %0 = vector.load %arg3[%c0, %c0_0] : memref<128x128xbf16, #tpu.memory_space<vmem>>, vector<128x128xbf16>
    %c0_1 = arith.constant 0 : index
    %c0_2 = arith.constant 0 : index
    %1 = vector.load %arg7[%c0_1, %c0_2] : memref<1x128xf32, #tpu.memory_space<vmem>>, vector<1x128xf32>
    %c0_3 = arith.constant 0 : index
    %c0_4 = arith.constant 0 : index
    %c0_5 = arith.constant 0 : index
    %2 = vector.load %arg1[%c0_3, %c0_4, %c0_5] : memref<8x8x128xbf16, #tpu.memory_space<vmem>>, vector<8x8x128xbf16>
    %3 = vector.shape_cast %2 : vector<8x8x128xbf16> to vector<64x128xbf16>
    %cst = arith.constant dense<0.000000e+00> : vector<64x128xf32>
    %4 = tpu.matmul %3, %0, %cst {dimension_numbers = #tpu.dot_dimension_numbers<[1], [0], [0], [1], [0, 0, 1, 1], [], []>} : vector<64x128xbf16>, vector<128x128xbf16>, vector<64x128xf32> -> vector<64x128xf32>
    %5 = vector.broadcast %1 : vector<1x128xf32> to vector<64x128xf32>
    %6 = arith.addf %4, %5 : vector<64x128xf32>
    %7 = vector.shape_cast %6 : vector<64x128xf32> to vector<8x8x128xf32>
    %c0_6 = arith.constant 0 : index
    %c0_7 = arith.constant 0 : index
    %c0_8 = arith.constant 0 : index
    %8 = vector.load %arg11[%c0_6, %c0_7, %c0_8] : memref<8x8x128xf32, #tpu.memory_space<vmem>>, vector<8x8x128xf32>
    tpu.vector_store %arg11[%c0_6, %c0_7, %c0_8], %7 {strides = array<i32>} : memref<8x8x128xf32, #tpu.memory_space<vmem>>, vector<8x8x128xf32>,
    %c0_9 = arith.constant 0 : index
    %c0_10 = arith.constant 0 : index
    %9 = vector.load %arg5[%c0_9, %c0_10] : memref<128x128xbf16, #tpu.memory_space<vmem>>, vector<128x128xbf16>
    %c0_11 = arith.constant 0 : index
    %c0_12 = arith.constant 0 : index
    %c0_13 = arith.constant 0 : index
    %10 = vector.load %arg2[%c0_11, %c0_12, %c0_13] : memref<2x8x128xf32, #tpu.memory_space<vmem>>, vector<1x8x128xf32>
    %11 = vector.shape_cast %10 : vector<1x8x128xf32> to vector<8x128xf32>
    %c0_i32 = arith.constant 0 : i32
    %12 = arith.index_cast %c0_i32 : i32 to index
    %c0_14 = arith.constant 0 : index
    %c0_15 = arith.constant 0 : index
    %13 = vector.load %arg11[%12, %c0_14, %c0_15] : memref<8x8x128xf32, #tpu.memory_space<vmem>>, vector<1x8x128xf32>
    %14 = vector.shape_cast %13 : vector<1x8x128xf32> to vector<8x128xf32>
    %15 = arith.truncf %11 : vector<8x128xf32> to vector<8x128xbf16>
    %cst_16 = arith.constant dense<0.000000e+00> : vector<8x128xf32>
    %16 = tpu.matmul %15, %9, %cst_16 {dimension_numbers = #tpu.dot_dimension_numbers<[1], [0], [0], [1], [0, 0, 1, 1], [], []>} : vector<8x128xbf16>, vector<128x128xbf16>, vector<8x128xf32> -> vector<8x128xf32>
    %17 = arith.addf %14, %16 : vector<8x128xf32>
    %18 = math.tanh %17 : vector<8x128xf32>
    %19 = arith.index_cast %c0_i32 : i32 to index
    %c0_17 = arith.constant 0 : index
    %c0_18 = arith.constant 0 : index
    %20 = vector.load %arg9[%19, %c0_17, %c0_18] : memref<8x8x128xf32, #tpu.memory_space<vmem>>, vector<1x8x128xf32>
    %21 = vector.shape_cast %20 : vector<1x8x128xf32> to vector<8x128xf32>
    %22 = vector.shape_cast %18 : vector<8x128xf32> to vector<1x8x128xf32>
    tpu.vector_store %arg9[%19, %c0_17, %c0_18], %22 {strides = array<i32>} : memref<8x8x128xf32, #tpu.memory_space<vmem>>, vector<1x8x128xf32>,
    %c1_i32 = arith.constant 1 : i32
    %23 = arith.index_cast %c1_i32 : i32 to index
    %c0_19 = arith.constant 0 : index
    %c0_20 = arith.constant 0 : index
    %24 = vector.load %arg11[%23, %c0_19, %c0_20] : memref<8x8x128xf32, #tpu.memory_space<vmem>>, vector<1x8x128xf32>
    %25 = vector.shape_cast %24 : vector<1x8x128xf32> to vector<8x128xf32>
    %26 = arith.truncf %18 : vector<8x128xf32> to vector<8x128xbf16>
    %cst_21 = arith.constant dense<0.000000e+00> : vector<8x128xf32>
    %27 = tpu.matmul %26, %9, %cst_21 {dimension_numbers = #tpu.dot_dimension_numbers<[1], [0], [0], [1], [0, 0, 1, 1], [], []>} : vector<8x128xbf16>, vector<128x128xbf16>, vector<8x128xf32> -> vector<8x128xf32>
    %28 = arith.addf %25, %27 : vector<8x128xf32>
    %29 = math.tanh %28 : vector<8x128xf32>
    %30 = arith.index_cast %c1_i32 : i32 to index
    %c0_22 = arith.constant 0 : index
    %c0_23 = arith.constant 0 : index
    %31 = vector.load %arg9[%30, %c0_22, %c0_23] : memref<8x8x128xf32, #tpu.memory_space<vmem>>, vector<1x8x128xf32>
    %32 = vector.shape_cast %31 : vector<1x8x128xf32> to vector<8x128xf32>
    %33 = vector.shape_cast %29 : vector<8x128xf32> to vector<1x8x128xf32>
    tpu.vector_store %arg9[%30, %c0_22, %c0_23], %33 {strides = array<i32>} : memref<8x8x128xf32, #tpu.memory_space<vmem>>, vector<1x8x128xf32>,
    %c2_i32 = arith.constant 2 : i32
    %34 = arith.index_cast %c2_i32 : i32 to index
    %c0_24 = arith.constant 0 : index
    %c0_25 = arith.constant 0 : index
    %35 = vector.load %arg11[%34, %c0_24, %c0_25] : memref<8x8x128xf32, #tpu.memory_space<vmem>>, vector<1x8x128xf32>
    %36 = vector.shape_cast %35 : vector<1x8x128xf32> to vector<8x128xf32>
    %37 = arith.truncf %29 : vector<8x128xf32> to vector<8x128xbf16>
    %cst_26 = arith.constant dense<0.000000e+00> : vector<8x128xf32>
    %38 = tpu.matmul %37, %9, %cst_26 {dimension_numbers = #tpu.dot_dimension_numbers<[1], [0], [0], [1], [0, 0, 1, 1], [], []>} : vector<8x128xbf16>, vector<128x128xbf16>, vector<8x128xf32> -> vector<8x128xf32>
    %39 = arith.addf %36, %38 : vector<8x128xf32>
    %40 = math.tanh %39 : vector<8x128xf32>
    %41 = arith.index_cast %c2_i32 : i32 to index
    %c0_27 = arith.constant 0 : index
    %c0_28 = arith.constant 0 : index
    %42 = vector.load %arg9[%41, %c0_27, %c0_28] : memref<8x8x128xf32, #tpu.memory_space<vmem>>, vector<1x8x128xf32>
    %43 = vector.shape_cast %42 : vector<1x8x128xf32> to vector<8x128xf32>
    %44 = vector.shape_cast %40 : vector<8x128xf32> to vector<1x8x128xf32>
    tpu.vector_store %arg9[%41, %c0_27, %c0_28], %44 {strides = array<i32>} : memref<8x8x128xf32, #tpu.memory_space<vmem>>, vector<1x8x128xf32>,
    %c3_i32 = arith.constant 3 : i32
    %45 = arith.index_cast %c3_i32 : i32 to index
    %c0_29 = arith.constant 0 : index
    %c0_30 = arith.constant 0 : index
    %46 = vector.load %arg11[%45, %c0_29, %c0_30] : memref<8x8x128xf32, #tpu.memory_space<vmem>>, vector<1x8x128xf32>
    %47 = vector.shape_cast %46 : vector<1x8x128xf32> to vector<8x128xf32>
    %48 = arith.truncf %40 : vector<8x128xf32> to vector<8x128xbf16>
    %cst_31 = arith.constant dense<0.000000e+00> : vector<8x128xf32>
    %49 = tpu.matmul %48, %9, %cst_31 {dimension_numbers = #tpu.dot_dimension_numbers<[1], [0], [0], [1], [0, 0, 1, 1], [], []>} : vector<8x128xbf16>, vector<128x128xbf16>, vector<8x128xf32> -> vector<8x128xf32>
    %50 = arith.addf %47, %49 : vector<8x128xf32>
    %51 = math.tanh %50 : vector<8x128xf32>
    %52 = arith.index_cast %c3_i32 : i32 to index
    %c0_32 = arith.constant 0 : index
    %c0_33 = arith.constant 0 : index
    %53 = vector.load %arg9[%52, %c0_32, %c0_33] : memref<8x8x128xf32, #tpu.memory_space<vmem>>, vector<1x8x128xf32>
    %54 = vector.shape_cast %53 : vector<1x8x128xf32> to vector<8x128xf32>
    %55 = vector.shape_cast %51 : vector<8x128xf32> to vector<1x8x128xf32>
    tpu.vector_store %arg9[%52, %c0_32, %c0_33], %55 {strides = array<i32>} : memref<8x8x128xf32, #tpu.memory_space<vmem>>, vector<1x8x128xf32>,
    %c4_i32 = arith.constant 4 : i32
    %56 = arith.index_cast %c4_i32 : i32 to index
    %c0_34 = arith.constant 0 : index
    %c0_35 = arith.constant 0 : index
    %57 = vector.load %arg11[%56, %c0_34, %c0_35] : memref<8x8x128xf32, #tpu.memory_space<vmem>>, vector<1x8x128xf32>
    %58 = vector.shape_cast %57 : vector<1x8x128xf32> to vector<8x128xf32>
    %59 = arith.truncf %51 : vector<8x128xf32> to vector<8x128xbf16>
    %cst_36 = arith.constant dense<0.000000e+00> : vector<8x128xf32>
    %60 = tpu.matmul %59, %9, %cst_36 {dimension_numbers = #tpu.dot_dimension_numbers<[1], [0], [0], [1], [0, 0, 1, 1], [], []>} : vector<8x128xbf16>, vector<128x128xbf16>, vector<8x128xf32> -> vector<8x128xf32>
    %61 = arith.addf %58, %60 : vector<8x128xf32>
    %62 = math.tanh %61 : vector<8x128xf32>
    %63 = arith.index_cast %c4_i32 : i32 to index
    %c0_37 = arith.constant 0 : index
    %c0_38 = arith.constant 0 : index
    %64 = vector.load %arg9[%63, %c0_37, %c0_38] : memref<8x8x128xf32, #tpu.memory_space<vmem>>, vector<1x8x128xf32>
    %65 = vector.shape_cast %64 : vector<1x8x128xf32> to vector<8x128xf32>
    %66 = vector.shape_cast %62 : vector<8x128xf32> to vector<1x8x128xf32>
    tpu.vector_store %arg9[%63, %c0_37, %c0_38], %66 {strides = array<i32>} : memref<8x8x128xf32, #tpu.memory_space<vmem>>, vector<1x8x128xf32>,
    %c5_i32 = arith.constant 5 : i32
    %67 = arith.index_cast %c5_i32 : i32 to index
    %c0_39 = arith.constant 0 : index
    %c0_40 = arith.constant 0 : index
    %68 = vector.load %arg11[%67, %c0_39, %c0_40] : memref<8x8x128xf32, #tpu.memory_space<vmem>>, vector<1x8x128xf32>
    %69 = vector.shape_cast %68 : vector<1x8x128xf32> to vector<8x128xf32>
    %70 = arith.truncf %62 : vector<8x128xf32> to vector<8x128xbf16>
    %cst_41 = arith.constant dense<0.000000e+00> : vector<8x128xf32>
    %71 = tpu.matmul %70, %9, %cst_41 {dimension_numbers = #tpu.dot_dimension_numbers<[1], [0], [0], [1], [0, 0, 1, 1], [], []>} : vector<8x128xbf16>, vector<128x128xbf16>, vector<8x128xf32> -> vector<8x128xf32>
    %72 = arith.addf %69, %71 : vector<8x128xf32>
    %73 = math.tanh %72 : vector<8x128xf32>
    %74 = arith.index_cast %c5_i32 : i32 to index
    %c0_42 = arith.constant 0 : index
    %c0_43 = arith.constant 0 : index
    %75 = vector.load %arg9[%74, %c0_42, %c0_43] : memref<8x8x128xf32, #tpu.memory_space<vmem>>, vector<1x8x128xf32>
    %76 = vector.shape_cast %75 : vector<1x8x128xf32> to vector<8x128xf32>
    %77 = vector.shape_cast %73 : vector<8x128xf32> to vector<1x8x128xf32>
    tpu.vector_store %arg9[%74, %c0_42, %c0_43], %77 {strides = array<i32>} : memref<8x8x128xf32, #tpu.memory_space<vmem>>, vector<1x8x128xf32>,
    %c6_i32 = arith.constant 6 : i32
    %78 = arith.index_cast %c6_i32 : i32 to index
    %c0_44 = arith.constant 0 : index
    %c0_45 = arith.constant 0 : index
    %79 = vector.load %arg11[%78, %c0_44, %c0_45] : memref<8x8x128xf32, #tpu.memory_space<vmem>>, vector<1x8x128xf32>
    %80 = vector.shape_cast %79 : vector<1x8x128xf32> to vector<8x128xf32>
    %81 = arith.truncf %73 : vector<8x128xf32> to vector<8x128xbf16>
    %cst_46 = arith.constant dense<0.000000e+00> : vector<8x128xf32>
    %82 = tpu.matmul %81, %9, %cst_46 {dimension_numbers = #tpu.dot_dimension_numbers<[1], [0], [0], [1], [0, 0, 1, 1], [], []>} : vector<8x128xbf16>, vector<128x128xbf16>, vector<8x128xf32> -> vector<8x128xf32>
    %83 = arith.addf %80, %82 : vector<8x128xf32>
    %84 = math.tanh %83 : vector<8x128xf32>
    %85 = arith.index_cast %c6_i32 : i32 to index
    %c0_47 = arith.constant 0 : index
    %c0_48 = arith.constant 0 : index
    %86 = vector.load %arg9[%85, %c0_47, %c0_48] : memref<8x8x128xf32, #tpu.memory_space<vmem>>, vector<1x8x128xf32>
    %87 = vector.shape_cast %86 : vector<1x8x128xf32> to vector<8x128xf32>
    %88 = vector.shape_cast %84 : vector<8x128xf32> to vector<1x8x128xf32>
    tpu.vector_store %arg9[%85, %c0_47, %c0_48], %88 {strides = array<i32>} : memref<8x8x128xf32, #tpu.memory_space<vmem>>, vector<1x8x128xf32>,
    %c7_i32 = arith.constant 7 : i32
    %89 = arith.index_cast %c7_i32 : i32 to index
    %c0_49 = arith.constant 0 : index
    %c0_50 = arith.constant 0 : index
    %90 = vector.load %arg11[%89, %c0_49, %c0_50] : memref<8x8x128xf32, #tpu.memory_space<vmem>>, vector<1x8x128xf32>
    %91 = vector.shape_cast %90 : vector<1x8x128xf32> to vector<8x128xf32>
    %92 = arith.truncf %84 : vector<8x128xf32> to vector<8x128xbf16>
    %cst_51 = arith.constant dense<0.000000e+00> : vector<8x128xf32>
    %93 = tpu.matmul %92, %9, %cst_51 {dimension_numbers = #tpu.dot_dimension_numbers<[1], [0], [0], [1], [0, 0, 1, 1], [], []>} : vector<8x128xbf16>, vector<128x128xbf16>, vector<8x128xf32> -> vector<8x128xf32>
    %94 = arith.addf %91, %93 : vector<8x128xf32>
    %95 = math.tanh %94 : vector<8x128xf32>
    %96 = arith.index_cast %c7_i32 : i32 to index
    %c0_52 = arith.constant 0 : index
    %c0_53 = arith.constant 0 : index
    %97 = vector.load %arg9[%96, %c0_52, %c0_53] : memref<8x8x128xf32, #tpu.memory_space<vmem>>, vector<1x8x128xf32>
    %98 = vector.shape_cast %97 : vector<1x8x128xf32> to vector<8x128xf32>
    %99 = vector.shape_cast %95 : vector<8x128xf32> to vector<1x8x128xf32>
    tpu.vector_store %arg9[%96, %c0_52, %c0_53], %99 {strides = array<i32>} : memref<8x8x128xf32, #tpu.memory_space<vmem>>, vector<1x8x128xf32>,
    %c8_i32 = arith.constant 8 : i32
    %c0_54 = arith.constant 0 : index
    %c0_55 = arith.constant 0 : index
    %c0_56 = arith.constant 0 : index
    %100 = vector.load %arg10[%c0_54, %c0_55, %c0_56] : memref<2x8x128xf32, #tpu.memory_space<vmem>>, vector<1x8x128xf32>
    %101 = vector.shape_cast %100 : vector<1x8x128xf32> to vector<8x128xf32>
    %102 = vector.shape_cast %95 : vector<8x128xf32> to vector<1x8x128xf32>
    tpu.vector_store %arg10[%c0_54, %c0_55, %c0_56], %102 {strides = array<i32>} : memref<2x8x128xf32, #tpu.memory_space<vmem>>, vector<1x8x128xf32>,
    %c0_57 = arith.constant 0 : index
    %c0_58 = arith.constant 0 : index
    %103 = vector.load %arg4[%c0_57, %c0_58] : memref<128x128xbf16, #tpu.memory_space<vmem>>, vector<128x128xbf16>
    %c0_59 = arith.constant 0 : index
    %c0_60 = arith.constant 0 : index
    %104 = vector.load %arg8[%c0_59, %c0_60] : memref<1x128xf32, #tpu.memory_space<vmem>>, vector<1x128xf32>
    %c0_61 = arith.constant 0 : index
    %c0_62 = arith.constant 0 : index
    %c0_63 = arith.constant 0 : index
    %105 = vector.load %arg9[%c0_61, %c0_62, %c0_63] : memref<8x8x128xf32, #tpu.memory_space<vmem>>, vector<8x8x128xf32>
    %106 = vector.shape_cast %105 : vector<8x8x128xf32> to vector<64x128xf32>
    %107 = arith.truncf %106 : vector<64x128xf32> to vector<64x128xbf16>
    %cst_64 = arith.constant dense<0.000000e+00> : vector<64x128xf32>
    %108 = tpu.matmul %107, %103, %cst_64 {dimension_numbers = #tpu.dot_dimension_numbers<[1], [0], [0], [1], [0, 0, 1, 1], [], []>} : vector<64x128xbf16>, vector<128x128xbf16>, vector<64x128xf32> -> vector<64x128xf32>
    %109 = vector.broadcast %104 : vector<1x128xf32> to vector<64x128xf32>
    %110 = arith.addf %108, %109 : vector<64x128xf32>
    %111 = vector.shape_cast %110 : vector<64x128xf32> to vector<8x8x128xf32>
    %c0_65 = arith.constant 0 : index
    %c0_66 = arith.constant 0 : index
    %c0_67 = arith.constant 0 : index
    %112 = vector.load %arg11[%c0_65, %c0_66, %c0_67] : memref<8x8x128xf32, #tpu.memory_space<vmem>>, vector<8x8x128xf32>
    tpu.vector_store %arg11[%c0_65, %c0_66, %c0_67], %111 {strides = array<i32>} : memref<8x8x128xf32, #tpu.memory_space<vmem>>, vector<8x8x128xf32>,
    %c0_68 = arith.constant 0 : index
    %c0_69 = arith.constant 0 : index
    %113 = vector.load %arg6[%c0_68, %c0_69] : memref<128x128xbf16, #tpu.memory_space<vmem>>, vector<128x128xbf16>
    %c1 = arith.constant 1 : index
    %c0_70 = arith.constant 0 : index
    %c0_71 = arith.constant 0 : index
    %114 = vector.load %arg2[%c1, %c0_70, %c0_71] : memref<2x8x128xf32, #tpu.memory_space<vmem>>, vector<1x8x128xf32>
    %115 = vector.shape_cast %114 : vector<1x8x128xf32> to vector<8x128xf32>
    %c0_i32_72 = arith.constant 0 : i32
    %116 = arith.index_cast %c0_i32_72 : i32 to index
    %c0_73 = arith.constant 0 : index
    %c0_74 = arith.constant 0 : index
    %117 = vector.load %arg11[%116, %c0_73, %c0_74] : memref<8x8x128xf32, #tpu.memory_space<vmem>>, vector<1x8x128xf32>
    %118 = vector.shape_cast %117 : vector<1x8x128xf32> to vector<8x128xf32>
    %119 = arith.truncf %115 : vector<8x128xf32> to vector<8x128xbf16>
    %cst_75 = arith.constant dense<0.000000e+00> : vector<8x128xf32>
    %120 = tpu.matmul %119, %113, %cst_75 {dimension_numbers = #tpu.dot_dimension_numbers<[1], [0], [0], [1], [0, 0, 1, 1], [], []>} : vector<8x128xbf16>, vector<128x128xbf16>, vector<8x128xf32> -> vector<8x128xf32>
    %121 = arith.addf %118, %120 : vector<8x128xf32>
    %122 = math.tanh %121 : vector<8x128xf32>
    %123 = arith.index_cast %c0_i32_72 : i32 to index
    %c0_76 = arith.constant 0 : index
    %c0_77 = arith.constant 0 : index
    %124 = vector.load %arg9[%123, %c0_76, %c0_77] : memref<8x8x128xf32, #tpu.memory_space<vmem>>, vector<1x8x128xf32>
    %125 = vector.shape_cast %124 : vector<1x8x128xf32> to vector<8x128xf32>
    %126 = vector.shape_cast %122 : vector<8x128xf32> to vector<1x8x128xf32>
    tpu.vector_store %arg9[%123, %c0_76, %c0_77], %126 {strides = array<i32>} : memref<8x8x128xf32, #tpu.memory_space<vmem>>, vector<1x8x128xf32>,
    %c1_i32_78 = arith.constant 1 : i32
    %127 = arith.index_cast %c1_i32_78 : i32 to index
    %c0_79 = arith.constant 0 : index
    %c0_80 = arith.constant 0 : index
    %128 = vector.load %arg11[%127, %c0_79, %c0_80] : memref<8x8x128xf32, #tpu.memory_space<vmem>>, vector<1x8x128xf32>
    %129 = vector.shape_cast %128 : vector<1x8x128xf32> to vector<8x128xf32>
    %130 = arith.truncf %122 : vector<8x128xf32> to vector<8x128xbf16>
    %cst_81 = arith.constant dense<0.000000e+00> : vector<8x128xf32>
    %131 = tpu.matmul %130, %113, %cst_81 {dimension_numbers = #tpu.dot_dimension_numbers<[1], [0], [0], [1], [0, 0, 1, 1], [], []>} : vector<8x128xbf16>, vector<128x128xbf16>, vector<8x128xf32> -> vector<8x128xf32>
    %132 = arith.addf %129, %131 : vector<8x128xf32>
    %133 = math.tanh %132 : vector<8x128xf32>
    %134 = arith.index_cast %c1_i32_78 : i32 to index
    %c0_82 = arith.constant 0 : index
    %c0_83 = arith.constant 0 : index
    %135 = vector.load %arg9[%134, %c0_82, %c0_83] : memref<8x8x128xf32, #tpu.memory_space<vmem>>, vector<1x8x128xf32>
    %136 = vector.shape_cast %135 : vector<1x8x128xf32> to vector<8x128xf32>
    %137 = vector.shape_cast %133 : vector<8x128xf32> to vector<1x8x128xf32>
    tpu.vector_store %arg9[%134, %c0_82, %c0_83], %137 {strides = array<i32>} : memref<8x8x128xf32, #tpu.memory_space<vmem>>, vector<1x8x128xf32>,
    %c2_i32_84 = arith.constant 2 : i32
    %138 = arith.index_cast %c2_i32_84 : i32 to index
    %c0_85 = arith.constant 0 : index
    %c0_86 = arith.constant 0 : index
    %139 = vector.load %arg11[%138, %c0_85, %c0_86] : memref<8x8x128xf32, #tpu.memory_space<vmem>>, vector<1x8x128xf32>
    %140 = vector.shape_cast %139 : vector<1x8x128xf32> to vector<8x128xf32>
    %141 = arith.truncf %133 : vector<8x128xf32> to vector<8x128xbf16>
    %cst_87 = arith.constant dense<0.000000e+00> : vector<8x128xf32>
    %142 = tpu.matmul %141, %113, %cst_87 {dimension_numbers = #tpu.dot_dimension_numbers<[1], [0], [0], [1], [0, 0, 1, 1], [], []>} : vector<8x128xbf16>, vector<128x128xbf16>, vector<8x128xf32> -> vector<8x128xf32>
    %143 = arith.addf %140, %142 : vector<8x128xf32>
    %144 = math.tanh %143 : vector<8x128xf32>
    %145 = arith.index_cast %c2_i32_84 : i32 to index
    %c0_88 = arith.constant 0 : index
    %c0_89 = arith.constant 0 : index
    %146 = vector.load %arg9[%145, %c0_88, %c0_89] : memref<8x8x128xf32, #tpu.memory_space<vmem>>, vector<1x8x128xf32>
    %147 = vector.shape_cast %146 : vector<1x8x128xf32> to vector<8x128xf32>
    %148 = vector.shape_cast %144 : vector<8x128xf32> to vector<1x8x128xf32>
    tpu.vector_store %arg9[%145, %c0_88, %c0_89], %148 {strides = array<i32>} : memref<8x8x128xf32, #tpu.memory_space<vmem>>, vector<1x8x128xf32>,
    %c3_i32_90 = arith.constant 3 : i32
    %149 = arith.index_cast %c3_i32_90 : i32 to index
    %c0_91 = arith.constant 0 : index
    %c0_92 = arith.constant 0 : index
    %150 = vector.load %arg11[%149, %c0_91, %c0_92] : memref<8x8x128xf32, #tpu.memory_space<vmem>>, vector<1x8x128xf32>
    %151 = vector.shape_cast %150 : vector<1x8x128xf32> to vector<8x128xf32>
    %152 = arith.truncf %144 : vector<8x128xf32> to vector<8x128xbf16>
    %cst_93 = arith.constant dense<0.000000e+00> : vector<8x128xf32>
    %153 = tpu.matmul %152, %113, %cst_93 {dimension_numbers = #tpu.dot_dimension_numbers<[1], [0], [0], [1], [0, 0, 1, 1], [], []>} : vector<8x128xbf16>, vector<128x128xbf16>, vector<8x128xf32> -> vector<8x128xf32>
    %154 = arith.addf %151, %153 : vector<8x128xf32>
    %155 = math.tanh %154 : vector<8x128xf32>
    %156 = arith.index_cast %c3_i32_90 : i32 to index
    %c0_94 = arith.constant 0 : index
    %c0_95 = arith.constant 0 : index
    %157 = vector.load %arg9[%156, %c0_94, %c0_95] : memref<8x8x128xf32, #tpu.memory_space<vmem>>, vector<1x8x128xf32>
    %158 = vector.shape_cast %157 : vector<1x8x128xf32> to vector<8x128xf32>
    %159 = vector.shape_cast %155 : vector<8x128xf32> to vector<1x8x128xf32>
    tpu.vector_store %arg9[%156, %c0_94, %c0_95], %159 {strides = array<i32>} : memref<8x8x128xf32, #tpu.memory_space<vmem>>, vector<1x8x128xf32>,
    %c4_i32_96 = arith.constant 4 : i32
    %160 = arith.index_cast %c4_i32_96 : i32 to index
    %c0_97 = arith.constant 0 : index
    %c0_98 = arith.constant 0 : index
    %161 = vector.load %arg11[%160, %c0_97, %c0_98] : memref<8x8x128xf32, #tpu.memory_space<vmem>>, vector<1x8x128xf32>
    %162 = vector.shape_cast %161 : vector<1x8x128xf32> to vector<8x128xf32>
    %163 = arith.truncf %155 : vector<8x128xf32> to vector<8x128xbf16>
    %cst_99 = arith.constant dense<0.000000e+00> : vector<8x128xf32>
    %164 = tpu.matmul %163, %113, %cst_99 {dimension_numbers = #tpu.dot_dimension_numbers<[1], [0], [0], [1], [0, 0, 1, 1], [], []>} : vector<8x128xbf16>, vector<128x128xbf16>, vector<8x128xf32> -> vector<8x128xf32>
    %165 = arith.addf %162, %164 : vector<8x128xf32>
    %166 = math.tanh %165 : vector<8x128xf32>
    %167 = arith.index_cast %c4_i32_96 : i32 to index
    %c0_100 = arith.constant 0 : index
    %c0_101 = arith.constant 0 : index
    %168 = vector.load %arg9[%167, %c0_100, %c0_101] : memref<8x8x128xf32, #tpu.memory_space<vmem>>, vector<1x8x128xf32>
    %169 = vector.shape_cast %168 : vector<1x8x128xf32> to vector<8x128xf32>
    %170 = vector.shape_cast %166 : vector<8x128xf32> to vector<1x8x128xf32>
    tpu.vector_store %arg9[%167, %c0_100, %c0_101], %170 {strides = array<i32>} : memref<8x8x128xf32, #tpu.memory_space<vmem>>, vector<1x8x128xf32>,
    %c5_i32_102 = arith.constant 5 : i32
    %171 = arith.index_cast %c5_i32_102 : i32 to index
    %c0_103 = arith.constant 0 : index
    %c0_104 = arith.constant 0 : index
    %172 = vector.load %arg11[%171, %c0_103, %c0_104] : memref<8x8x128xf32, #tpu.memory_space<vmem>>, vector<1x8x128xf32>
    %173 = vector.shape_cast %172 : vector<1x8x128xf32> to vector<8x128xf32>
    %174 = arith.truncf %166 : vector<8x128xf32> to vector<8x128xbf16>
    %cst_105 = arith.constant dense<0.000000e+00> : vector<8x128xf32>
    %175 = tpu.matmul %174, %113, %cst_105 {dimension_numbers = #tpu.dot_dimension_numbers<[1], [0], [0], [1], [0, 0, 1, 1], [], []>} : vector<8x128xbf16>, vector<128x128xbf16>, vector<8x128xf32> -> vector<8x128xf32>
    %176 = arith.addf %173, %175 : vector<8x128xf32>
    %177 = math.tanh %176 : vector<8x128xf32>
    %178 = arith.index_cast %c5_i32_102 : i32 to index
    %c0_106 = arith.constant 0 : index
    %c0_107 = arith.constant 0 : index
    %179 = vector.load %arg9[%178, %c0_106, %c0_107] : memref<8x8x128xf32, #tpu.memory_space<vmem>>, vector<1x8x128xf32>
    %180 = vector.shape_cast %179 : vector<1x8x128xf32> to vector<8x128xf32>
    %181 = vector.shape_cast %177 : vector<8x128xf32> to vector<1x8x128xf32>
    tpu.vector_store %arg9[%178, %c0_106, %c0_107], %181 {strides = array<i32>} : memref<8x8x128xf32, #tpu.memory_space<vmem>>, vector<1x8x128xf32>,
    %c6_i32_108 = arith.constant 6 : i32
    %182 = arith.index_cast %c6_i32_108 : i32 to index
    %c0_109 = arith.constant 0 : index
    %c0_110 = arith.constant 0 : index
    %183 = vector.load %arg11[%182, %c0_109, %c0_110] : memref<8x8x128xf32, #tpu.memory_space<vmem>>, vector<1x8x128xf32>
    %184 = vector.shape_cast %183 : vector<1x8x128xf32> to vector<8x128xf32>
    %185 = arith.truncf %177 : vector<8x128xf32> to vector<8x128xbf16>
    %cst_111 = arith.constant dense<0.000000e+00> : vector<8x128xf32>
    %186 = tpu.matmul %185, %113, %cst_111 {dimension_numbers = #tpu.dot_dimension_numbers<[1], [0], [0], [1], [0, 0, 1, 1], [], []>} : vector<8x128xbf16>, vector<128x128xbf16>, vector<8x128xf32> -> vector<8x128xf32>
    %187 = arith.addf %184, %186 : vector<8x128xf32>
    %188 = math.tanh %187 : vector<8x128xf32>
    %189 = arith.index_cast %c6_i32_108 : i32 to index
    %c0_112 = arith.constant 0 : index
    %c0_113 = arith.constant 0 : index
    %190 = vector.load %arg9[%189, %c0_112, %c0_113] : memref<8x8x128xf32, #tpu.memory_space<vmem>>, vector<1x8x128xf32>
    %191 = vector.shape_cast %190 : vector<1x8x128xf32> to vector<8x128xf32>
    %192 = vector.shape_cast %188 : vector<8x128xf32> to vector<1x8x128xf32>
    tpu.vector_store %arg9[%189, %c0_112, %c0_113], %192 {strides = array<i32>} : memref<8x8x128xf32, #tpu.memory_space<vmem>>, vector<1x8x128xf32>,
    %c7_i32_114 = arith.constant 7 : i32
    %193 = arith.index_cast %c7_i32_114 : i32 to index
    %c0_115 = arith.constant 0 : index
    %c0_116 = arith.constant 0 : index
    %194 = vector.load %arg11[%193, %c0_115, %c0_116] : memref<8x8x128xf32, #tpu.memory_space<vmem>>, vector<1x8x128xf32>
    %195 = vector.shape_cast %194 : vector<1x8x128xf32> to vector<8x128xf32>
    %196 = arith.truncf %188 : vector<8x128xf32> to vector<8x128xbf16>
    %cst_117 = arith.constant dense<0.000000e+00> : vector<8x128xf32>
    %197 = tpu.matmul %196, %113, %cst_117 {dimension_numbers = #tpu.dot_dimension_numbers<[1], [0], [0], [1], [0, 0, 1, 1], [], []>} : vector<8x128xbf16>, vector<128x128xbf16>, vector<8x128xf32> -> vector<8x128xf32>
    %198 = arith.addf %195, %197 : vector<8x128xf32>
    %199 = math.tanh %198 : vector<8x128xf32>
    %200 = arith.index_cast %c7_i32_114 : i32 to index
    %c0_118 = arith.constant 0 : index
    %c0_119 = arith.constant 0 : index
    %201 = vector.load %arg9[%200, %c0_118, %c0_119] : memref<8x8x128xf32, #tpu.memory_space<vmem>>, vector<1x8x128xf32>
    %202 = vector.shape_cast %201 : vector<1x8x128xf32> to vector<8x128xf32>
    %203 = vector.shape_cast %199 : vector<8x128xf32> to vector<1x8x128xf32>
    tpu.vector_store %arg9[%200, %c0_118, %c0_119], %203 {strides = array<i32>} : memref<8x8x128xf32, #tpu.memory_space<vmem>>, vector<1x8x128xf32>,
    %c8_i32_120 = arith.constant 8 : i32
    %c1_121 = arith.constant 1 : index
    %c0_122 = arith.constant 0 : index
    %c0_123 = arith.constant 0 : index
    %204 = vector.load %arg10[%c1_121, %c0_122, %c0_123] : memref<2x8x128xf32, #tpu.memory_space<vmem>>, vector<1x8x128xf32>
    %205 = vector.shape_cast %204 : vector<1x8x128xf32> to vector<8x128xf32>
    %206 = vector.shape_cast %199 : vector<8x128xf32> to vector<1x8x128xf32>
    tpu.vector_store %arg10[%c1_121, %c0_122, %c0_123], %206 {strides = array<i32>} : memref<2x8x128xf32, #tpu.memory_space<vmem>>, vector<1x8x128xf32>,
    return
  }
  func.func @transform_0(%arg0: i32) -> (i32, i32, i32) {
    %c0_i32 = arith.constant 0 : i32
    %c0_i32_0 = arith.constant 0 : i32
    %c0_i32_1 = arith.constant 0 : i32
    return %c0_i32, %arg0, %c0_i32_0 : i32, i32, i32
  }
  func.func @transform_1(%arg0: i32) -> (i32, i32, i32) {
    %c0_i32 = arith.constant 0 : i32
    %c0_i32_0 = arith.constant 0 : i32
    %c0_i32_1 = arith.constant 0 : i32
    return %c0_i32, %arg0, %c0_i32_0 : i32, i32, i32
  }
  func.func @transform_2(%arg0: i32) -> (i32, i32) {
    %c0_i32 = arith.constant 0 : i32
    %c0_i32_0 = arith.constant 0 : i32
    %c0_i32_1 = arith.constant 0 : i32
    return %c0_i32, %c0_i32_0 : i32, i32
  }
  func.func @transform_3(%arg0: i32) -> (i32, i32) {
    %c0_i32 = arith.constant 0 : i32
    %c0_i32_0 = arith.constant 0 : i32
    %c0_i32_1 = arith.constant 0 : i32
    return %c0_i32, %c0_i32_0 : i32, i32
  }
  func.func @transform_4(%arg0: i32) -> (i32, i32) {
    %c0_i32 = arith.constant 0 : i32
    %c0_i32_0 = arith.constant 0 : i32
    %c0_i32_1 = arith.constant 0 : i32
    return %c0_i32, %c0_i32_0 : i32, i32
  }
  func.func @transform_5(%arg0: i32) -> (i32, i32) {
    %c0_i32 = arith.constant 0 : i32
    %c0_i32_0 = arith.constant 0 : i32
    %c0_i32_1 = arith.constant 0 : i32
    return %c0_i32, %c0_i32_0 : i32, i32
  }
  func.func @transform_6(%arg0: i32) -> (i32, i32) {
    %c0_i32 = arith.constant 0 : i32
    %c0_i32_0 = arith.constant 0 : i32
    %c0_i32_1 = arith.constant 0 : i32
    return %c0_i32, %c0_i32_0 : i32, i32
  }
  func.func @transform_7(%arg0: i32) -> (i32, i32) {
    %c0_i32 = arith.constant 0 : i32
    %c0_i32_0 = arith.constant 0 : i32
    %c0_i32_1 = arith.constant 0 : i32
    return %c0_i32, %c0_i32_0 : i32, i32
  }
  func.func @transform_8(%arg0: i32) -> (i32, i32, i32) {
    %c0_i32 = arith.constant 0 : i32
    %c0_i32_0 = arith.constant 0 : i32
    %c0_i32_1 = arith.constant 0 : i32
    return %c0_i32, %arg0, %c0_i32_0 : i32, i32, i32
  }
  func.func @transform_9(%arg0: i32) -> (i32, i32, i32) {
    %c0_i32 = arith.constant 0 : i32
    %c0_i32_0 = arith.constant 0 : i32
    %c0_i32_1 = arith.constant 0 : i32
    return %c0_i32, %arg0, %c0_i32_0 : i32, i32, i32
  }
}

</mosaic_0001>

<llo_original>
// kernel: tpu_custom_call.1
$region0: #{tpu_custom_call.1}
  #allocation0 [shape = 'u32[]', space=smem, size = 0x4, offset = 0x4, fixed_abs, tag = 'smem constant byte address 0x4 - core index']
  #allocation1 [shape = 'u32[144,128]{1,0:T(1,128)}', space=vmem, size = 0x12000, scoped, tag = 'internal scratch']
  #allocation2 [shape = 'f32[8,8,128]{2,1,0:T(8,128)}', space=vmem, size = 0x8000, scoped, tag = 'scratch operand']
  %s0 = inlined_call_operand.hbm [shape: bf16[8,8,128], index: 0, kind: input, shape index: {}]
  %s1 = inlined_call_operand.hbm [shape: f32[2,8,128], index: 1, kind: input, shape index: {}]
  %s2 = inlined_call_operand.hbm [shape: bf16[128,128], index: 2, kind: input, shape index: {}]
  %s3 = inlined_call_operand.hbm [shape: bf16[128,128], index: 3, kind: input, shape index: {}]
  %s4 = inlined_call_operand.hbm [shape: bf16[128,128], index: 4, kind: input, shape index: {}]
  %s5 = inlined_call_operand.hbm [shape: bf16[128,128], index: 5, kind: input, shape index: {}]
  %s6 = inlined_call_operand.vmem [shape: f32[1,128], index: 6, kind: input, shape index: {}]
  %s7 = inlined_call_operand.vmem [shape: f32[1,128], index: 7, kind: input, shape index: {}]
  %s8 = inlined_call_operand.hbm [shape: f32[8,8,128], index: 8, kind: output, shape index: {0}]
  %s9 = inlined_call_operand.hbm [shape: f32[2,8,128], index: 9, kind: output, shape index: {1}]
  %10 = xla_tuple %s8, %s9
  %s11 = sld [smem:[#allocation0]]
  $region74: #{tpu_custom_call.1} parent=0
    _
  %s13 = ssub.s32 1, %s11
  %s14 = scalar_select 0, %s13, %s11
  $region1: #{tpu_custom_call.1} parent=0
    #allocation3 [shape = 'u8[16384]{0}', space=vmem, size = 0x4000, scoped, tag = 'input window, operand 0, single buffered']
    #allocation4 [shape = 's32[1]{0}', space=sflag, size = 0x4, scoped, tag = 'scoped memory for tpu_custom_call.1']
    #allocation5 [shape = 's32[1]{0}', space=sflag, size = 0x4, scoped, tag = 'scoped memory for tpu_custom_call.1']
    #allocation6 [shape = 'u8[8192]{0}', space=vmem, size = 0x2000, scoped, tag = 'input window, operand 1, single buffered']
    #allocation7 [shape = 's32[1]{0}', space=sflag, size = 0x4, scoped, tag = 'scoped memory for tpu_custom_call.1']
    #allocation8 [shape = 'u8[32768]{0}', space=vmem, size = 0x8000, scoped, tag = 'input window, operand 2, single buffered']
    #allocation9 [shape = 'u8[32768]{0}', space=vmem, size = 0x8000, scoped, tag = 'input window, operand 3, single buffered']
    #allocation10 [shape = 's32[1]{0}', space=sflag, size = 0x4, scoped, tag = 'scoped memory for tpu_custom_call.1']
    #allocation11 [shape = 'u8[32768]{0}', space=vmem, size = 0x8000, scoped, tag = 'input window, operand 4, single buffered']
    #allocation12 [shape = 'u8[32768]{0}', space=vmem, size = 0x8000, scoped, tag = 'input window, operand 5, single buffered']
    #allocation13 [shape = 's32[1]{0}', space=sflag, size = 0x4, scoped, tag = 'scoped memory for tpu_custom_call.1']
    #allocation14 [shape = 'u8[32768]{0}', space=vmem, size = 0x8000, scoped, tag = 'output window, operand 0, single buffered']
    #allocation15 [shape = 'u8[8192]{0}', space=vmem, size = 0x2000, scoped, tag = 'output window, operand 1, single buffered']
    #allocation16 [shape = 's32[1]{0}', space=sflag, size = 0x4, scoped, tag = 'scoped memory for tpu_custom_call.1']
    %15 = vsyncpa [#allocation4], 0
    %16 = vsyncpa [#allocation7], 0
    %17 = vsyncpa [#allocation10], 0
    %18 = vsyncpa [#allocation13], 0
    %19 = vsyncpa [#allocation5], 0
    %20 = vsyncpa [#allocation16], 0
    // Predicated region
    $region2: #{tpu_custom_call.1} parent=1 // pred_check
      _
    $region3: #{tpu_custom_call.1} parent=1 // pred_check_branch
      %22 = sbr.rel (0) target = $region5
    $region4: #{tpu_custom_call.1} parent=1 // pred_region
      %s24 = ssub.s32 512, 512
      %25 = vsyncadd [#allocation4], %s24
      %s26 = sshll.u32 [#allocation3], 4
      %s27 = int_to_ptr.vmem [resolvable:$true] %s26
      %32 = dma.hbm_to_vmem [thread:$0]  %s0, 512, %s27, [#allocation4], 64, 64, 4
    $region5: #{tpu_custom_call.1} parent=1 // pred_fallthru
      _
    // Predicated region
    $region6: #{tpu_custom_call.1} parent=1 // pred_check
      _
    $region7: #{tpu_custom_call.1} parent=1 // pred_check_branch
      %34 = sbr.rel (0) target = $region9
    $region8: #{tpu_custom_call.1} parent=1 // pred_region
      %s36 = ssub.s32 256, 256
      %37 = vsyncadd [#allocation7], %s36
      %s38 = sshll.u32 [#allocation6], 4
      %s39 = int_to_ptr.vmem [resolvable:$true] %s38
      %44 = dma.hbm_to_vmem [thread:$0]  %s1, 256, %s39, [#allocation7], 128, 128, 8
    $region9: #{tpu_custom_call.1} parent=1 // pred_fallthru
      _
    // Predicated region
    $region10: #{tpu_custom_call.1} parent=1 // pred_check
      _
    $region11: #{tpu_custom_call.1} parent=1 // pred_check_branch
      %46 = sbr.rel (0) target = $region13
    $region12: #{tpu_custom_call.1} parent=1 // pred_region
      %s48 = ssub.s32 1024, 1024
      %49 = vsyncadd [#allocation7], %s48
      %s50 = sshll.u32 [#allocation8], 4
      %s51 = int_to_ptr.vmem [resolvable:$true] %s50
      %56 = dma.hbm_to_vmem [thread:$0]  %s2, 1024, %s51, [#allocation7], 64, 64, 4
    $region13: #{tpu_custom_call.1} parent=1 // pred_fallthru
      _
    // Predicated region
    $region14: #{tpu_custom_call.1} parent=1 // pred_check
      _
    $region15: #{tpu_custom_call.1} parent=1 // pred_check_branch
      %58 = sbr.rel (0) target = $region17
    $region16: #{tpu_custom_call.1} parent=1 // pred_region
      %s60 = ssub.s32 1024, 1024
      %61 = vsyncadd [#allocation10], %s60
      %s62 = sshll.u32 [#allocation9], 4
      %s63 = int_to_ptr.vmem [resolvable:$true] %s62
      %68 = dma.hbm_to_vmem [thread:$0]  %s3, 1024, %s63, [#allocation10], 64, 64, 4
    $region17: #{tpu_custom_call.1} parent=1 // pred_fallthru
      _
    // Predicated region
    $region18: #{tpu_custom_call.1} parent=1 // pred_check
      _
    $region19: #{tpu_custom_call.1} parent=1 // pred_check_branch
      %70 = sbr.rel (0) target = $region21
    $region20: #{tpu_custom_call.1} parent=1 // pred_region
      %s72 = ssub.s32 1024, 1024
      %73 = vsyncadd [#allocation10], %s72
      %s74 = sshll.u32 [#allocation11], 4
      %s75 = int_to_ptr.vmem [resolvable:$true] %s74
      %80 = dma.hbm_to_vmem [thread:$0]  %s4, 1024, %s75, [#allocation10], 64, 64, 4
    $region21: #{tpu_custom_call.1} parent=1 // pred_fallthru
      _
    // Predicated region
    $region22: #{tpu_custom_call.1} parent=1 // pred_check
      _
    $region23: #{tpu_custom_call.1} parent=1 // pred_check_branch
      %82 = sbr.rel (0) target = $region25
    $region24: #{tpu_custom_call.1} parent=1 // pred_region
      %s84 = ssub.s32 1024, 1024
      %85 = vsyncadd [#allocation13], %s84
      %s86 = sshll.u32 [#allocation12], 4
      %s87 = int_to_ptr.vmem [resolvable:$true] %s86
      %92 = dma.hbm_to_vmem [thread:$0]  %s5, 1024, %s87, [#allocation13], 64, 64, 4
    $region25: #{tpu_custom_call.1} parent=1 // pred_fallthru
      _
    // Predicated region
    $region26: #{tpu_custom_call.1} parent=1 // pred_check
      _
    $region27: #{tpu_custom_call.1} parent=1 // pred_check_branch
      %94 = sbr.rel (0) target = $region29
    $region28: #{tpu_custom_call.1} parent=1 // pred_region
      _
    $region29: #{tpu_custom_call.1} parent=1 // pred_fallthru
      _
    // Predicated region
    $region30: #{tpu_custom_call.1} parent=1 // pred_check
      _
    $region31: #{tpu_custom_call.1} parent=1 // pred_check_branch
      %96 = sbr.rel (0) target = $region33
    $region32: #{tpu_custom_call.1} parent=1 // pred_region
      _
    $region33: #{tpu_custom_call.1} parent=1 // pred_fallthru
      _
    // Predicated region
    $region34: #{tpu_custom_call.1} parent=1 // pred_check
      _
    $region35: #{tpu_custom_call.1} parent=1 // pred_check_branch
      %98 = sbr.rel (0) target = $region37
    $region36: #{tpu_custom_call.1} parent=1 // pred_region
      %99 = dma.done [#allocation4], 512
    $region37: #{tpu_custom_call.1} parent=1 // pred_fallthru
      _
    // Predicated region
    $region38: #{tpu_custom_call.1} parent=1 // pred_check
      _
    $region39: #{tpu_custom_call.1} parent=1 // pred_check_branch
      %101 = sbr.rel (0) target = $region41
    $region40: #{tpu_custom_call.1} parent=1 // pred_region
      %102 = dma.done [#allocation7], 256
    $region41: #{tpu_custom_call.1} parent=1 // pred_fallthru
      _
    // Predicated region
    $region42: #{tpu_custom_call.1} parent=1 // pred_check
      _
    $region43: #{tpu_custom_call.1} parent=1 // pred_check_branch
      %104 = sbr.rel (0) target = $region45
    $region44: #{tpu_custom_call.1} parent=1 // pred_region
      %105 = dma.done [#allocation7], 1024
    $region45: #{tpu_custom_call.1} parent=1 // pred_fallthru
      _
    // Predicated region
    $region46: #{tpu_custom_call.1} parent=1 // pred_check
      _
    $region47: #{tpu_custom_call.1} parent=1 // pred_check_branch
      %107 = sbr.rel (0) target = $region49
    $region48: #{tpu_custom_call.1} parent=1 // pred_region
      %108 = dma.done [#allocation10], 1024
    $region49: #{tpu_custom_call.1} parent=1 // pred_fallthru
      _
    // Predicated region
    $region50: #{tpu_custom_call.1} parent=1 // pred_check
      _
    $region51: #{tpu_custom_call.1} parent=1 // pred_check_branch
      %110 = sbr.rel (0) target = $region53
    $region52: #{tpu_custom_call.1} parent=1 // pred_region
      %111 = dma.done [#allocation10], 1024
    $region53: #{tpu_custom_call.1} parent=1 // pred_fallthru
      _
    // Predicated region
    $region54: #{tpu_custom_call.1} parent=1 // pred_check
      _
    $region55: #{tpu_custom_call.1} parent=1 // pred_check_branch
      %113 = sbr.rel (0) target = $region57
    $region56: #{tpu_custom_call.1} parent=1 // pred_region
      %114 = dma.done [#allocation13], 1024
    $region57: #{tpu_custom_call.1} parent=1 // pred_fallthru
      _
    %v116 = vld [vmem:[#allocation8] sm:$0xf]
    %v117 = vld [vmem:[#allocation8 + $0x4] sm:$0xf]
    %v118 = vld [vmem:[#allocation8 + $0x8] sm:$0xf]
    %v119 = vld [vmem:[#allocation8 + $0xc] sm:$0xf]
    %v120 = vld [vmem:[#allocation8 + $0x10] sm:$0xf]
    %v121 = vld [vmem:[#allocation8 + $0x14] sm:$0xf]
    %v122 = vld [vmem:[#allocation8 + $0x18] sm:$0xf]
    %v123 = vld [vmem:[#allocation8 + $0x1c] sm:$0xf]
    %v124 = vld [vmem:[#allocation8 + $0x20] sm:$0xf]
    %v125 = vld [vmem:[#allocation8 + $0x24] sm:$0xf]
    %v126 = vld [vmem:[#allocation8 + $0x28] sm:$0xf]
    %v127 = vld [vmem:[#allocation8 + $0x2c] sm:$0xf]
    %v128 = vld [vmem:[#allocation8 + $0x30] sm:$0xf]
    %v129 = vld [vmem:[#allocation8 + $0x34] sm:$0xf]
    %v130 = vld [vmem:[#allocation8 + $0x38] sm:$0xf]
    %v131 = vld [vmem:[#allocation8 + $0x3c] sm:$0xf]
    %v132 = vld [vmem:[%s6] sm:$0x1]
    %v133 = vld [vmem:[#allocation3] sm:$0xf]
    %v134 = vld [vmem:[#allocation3 + $0x4] sm:$0xf]
    %v135 = vld [vmem:[#allocation3 + $0x8] sm:$0xf]
    %v136 = vld [vmem:[#allocation3 + $0xc] sm:$0xf]
    %v137 = vld [vmem:[#allocation3 + $0x10] sm:$0xf]
    %v138 = vld [vmem:[#allocation3 + $0x14] sm:$0xf]
    %v139 = vld [vmem:[#allocation3 + $0x18] sm:$0xf]
    %v140 = vld [vmem:[#allocation3 + $0x1c] sm:$0xf]
    %v142 = vlaneseq
    %v143 = vshrl.u32 %v142, 7
    %v144 = vsub.s32 0, %v143
    %v145 = vrot.slane %v132, %v144
    %v155 = vunpack.c.l.b16 %v133
    %v156 = vunpack.c.l.b16 %v134
    %v157 = vunpack.c.l.b16 %v135
    %v158 = vunpack.c.l.b16 %v136
    %v159 = vunpack.c.l.b16 %v137
    %v160 = vunpack.c.l.b16 %v138
    %v161 = vunpack.c.l.b16 %v139
    %v162 = vunpack.c.l.b16 %v140
    %v163 = vpack.c.b16 %v156, %v155
    %v164 = vpack.c.b16 %v158, %v157
    %v165 = vpack.c.b16 %v160, %v159
    %v166 = vpack.c.b16 %v162, %v161
    %v187 = vunpack.c.l.b16 %v116
    %v188 = vunpack.c.l.b16 %v117
    %v189 = vunpack.c.l.b16 %v118
    %v190 = vunpack.c.l.b16 %v119
    %v191 = vunpack.c.l.b16 %v120
    %v192 = vunpack.c.l.b16 %v121
    %v193 = vunpack.c.l.b16 %v122
    %v194 = vunpack.c.l.b16 %v123
    %v195 = vunpack.c.l.b16 %v124
    %v196 = vunpack.c.l.b16 %v125
    %v197 = vunpack.c.l.b16 %v126
    %v198 = vunpack.c.l.b16 %v127
    %v199 = vunpack.c.l.b16 %v128
    %v200 = vunpack.c.l.b16 %v129
    %v201 = vunpack.c.l.b16 %v130
    %v202 = vunpack.c.l.b16 %v131
    %v203 = vpack.c.b16 %v188, %v187
    %v204 = vpack.c.b16 %v190, %v189
    %v205 = vpack.c.b16 %v192, %v191
    %v206 = vpack.c.b16 %v194, %v193
    %v207 = vpack.c.b16 %v196, %v195
    %v208 = vpack.c.b16 %v198, %v197
    %v209 = vpack.c.b16 %v200, %v199
    %v210 = vpack.c.b16 %v202, %v201
    %219 = vmatprep.subr.bf16.mxu0 0
    %220 = vmatpush1.bf16.msra.mxu0 %v210
    %221 = vmatprep.subr.bf16.mxu0 0
    %222 = vmatpush1.bf16.msra.mxu0 %v209
    %223 = vmatprep.subr.bf16.mxu0 0
    %224 = vmatpush1.bf16.msra.mxu0 %v208
    %225 = vmatprep.subr.bf16.mxu0 0
    %226 = vmatpush1.bf16.msra.mxu0 %v207
    %227 = vmatprep.subr.bf16.mxu0 0
    %228 = vmatpush1.bf16.msra.mxu0 %v206
    %229 = vmatprep.subr.bf16.mxu0 0
    %230 = vmatpush1.bf16.msra.mxu0 %v205
    %231 = vmatprep.subr.bf16.mxu0 0
    %232 = vmatpush1.bf16.msra.mxu0 %v204
    %233 = vmatprep.subr.bf16.mxu0 0
    %234 = vmatpush1.bf16.msra.mxu0 %v203
    %235 = vmatprep.subr.bf16.mxu0 0
    %236 = vmatpush2.bf16.msra.mxu0 0
    %237 = vmatprep.subr.bf16.mxu0 0
    %238 = vmatpush2.bf16.msra.mxu0 0
    %239 = vmatprep.subr.bf16.mxu0 0
    %240 = vmatpush2.bf16.msra.mxu0 0
    %241 = vmatprep.subr.bf16.mxu0 0
    %242 = vmatpush2.bf16.msra.mxu0 0
    %243 = vmatprep.subr.bf16.mxu0 0
    %244 = vmatpush2.bf16.msra.mxu0 0
    %245 = vmatprep.subr.bf16.mxu0 0
    %246 = vmatpush2.bf16.msra.mxu0 0
    %247 = vmatprep.subr.bf16.mxu0 0
    %248 = vmatpush2.bf16.msra.mxu0 0
    %249 = vmatprep.subr.bf16.mxu0 0
    %250 = vmatpush2.bf16.msra.mxu0 0
    %251 = vmatprep.mubr.bf16.mxu0 0
    %252 = vmatmul.mubr.bf16.gmra.mxu0 %v163
    %v253 = vpop.f32.mrf.mxu0
    %v254 = vadd.f32 %v145, %v253
    %v255 = vpop.f32.mrf.mxu0
    %v256 = vpop.f32.mrf.mxu0
    %v257 = vadd.f32 %v145, %v256
    %v258 = vpop.f32.mrf.mxu0
    %259 = vmatprep.mubr.bf16.mxu0 0
    %260 = vmatmul.mubr.bf16.gmra.mxu0 %v164
    %v261 = vpop.f32.mrf.mxu0
    %v262 = vadd.f32 %v145, %v261
    %v263 = vpop.f32.mrf.mxu0
    %v264 = vpop.f32.mrf.mxu0
    %v265 = vadd.f32 %v145, %v264
    %v266 = vpop.f32.mrf.mxu0
    %267 = vmatprep.mubr.bf16.mxu0 0
    %268 = vmatmul.mubr.bf16.gmra.mxu0 %v165
    %v269 = vpop.f32.mrf.mxu0
    %v270 = vadd.f32 %v145, %v269
    %v271 = vpop.f32.mrf.mxu0
    %v272 = vpop.f32.mrf.mxu0
    %v273 = vadd.f32 %v145, %v272
    %v274 = vpop.f32.mrf.mxu0
    %275 = vmatprep.mubr.bf16.mxu0 0
    %276 = vmatmul.mubr.bf16.gmra.mxu0 %v166
    %v277 = vpop.f32.mrf.mxu0
    %v278 = vadd.f32 %v145, %v277
    %v279 = vpop.f32.mrf.mxu0
    %v280 = vpop.f32.mrf.mxu0
    %v281 = vadd.f32 %v145, %v280
    %v282 = vpop.f32.mrf.mxu0
    %283 = vdwg.mxu0
    %284 = vst [vmem:[#allocation2] sm:$0xff] %v254
    %285 = vst [vmem:[#allocation2 + $0x8] sm:$0xff] %v257
    %286 = vst [vmem:[#allocation2 + $0x10] sm:$0xff] %v262
    %287 = vst [vmem:[#allocation2 + $0x18] sm:$0xff] %v265
    %288 = vst [vmem:[#allocation2 + $0x20] sm:$0xff] %v270
    %289 = vst [vmem:[#allocation2 + $0x28] sm:$0xff] %v273
    %290 = vst [vmem:[#allocation2 + $0x30] sm:$0xff] %v278
    %291 = vst [vmem:[#allocation2 + $0x38] sm:$0xff] %v281
    %v292 = vld [vmem:[#allocation11] sm:$0xf]
    %v293 = vld [vmem:[#allocation11 + $0x4] sm:$0xf]
    %v294 = vld [vmem:[#allocation11 + $0x8] sm:$0xf]
    %v295 = vld [vmem:[#allocation11 + $0xc] sm:$0xf]
    %v296 = vld [vmem:[#allocation11 + $0x10] sm:$0xf]
    %v297 = vld [vmem:[#allocation11 + $0x14] sm:$0xf]
    %v298 = vld [vmem:[#allocation11 + $0x18] sm:$0xf]
    %v299 = vld [vmem:[#allocation11 + $0x1c] sm:$0xf]
    %v300 = vld [vmem:[#allocation11 + $0x20] sm:$0xf]
    %v301 = vld [vmem:[#allocation11 + $0x24] sm:$0xf]
    %v302 = vld [vmem:[#allocation11 + $0x28] sm:$0xf]
    %v303 = vld [vmem:[#allocation11 + $0x2c] sm:$0xf]
    %v304 = vld [vmem:[#allocation11 + $0x30] sm:$0xf]
    %v305 = vld [vmem:[#allocation11 + $0x34] sm:$0xf]
    %v306 = vld [vmem:[#allocation11 + $0x38] sm:$0xf]
    %v307 = vld [vmem:[#allocation11 + $0x3c] sm:$0xf]
    %v308 = vld [vmem:[#allocation6] sm:$0xff]
    %v309 = vld [vmem:[#allocation2] sm:$0xff]
    %v310 = vpack.c.bf16 %v308, %v308
    %v327 = vunpack.c.l.b16 %v292
    %v328 = vunpack.c.l.b16 %v293
    %v329 = vunpack.c.l.b16 %v294
    %v330 = vunpack.c.l.b16 %v295
    %v331 = vunpack.c.l.b16 %v296
    %v332 = vunpack.c.l.b16 %v297
    %v333 = vunpack.c.l.b16 %v298
    %v334 = vunpack.c.l.b16 %v299
    %v335 = vunpack.c.l.b16 %v300
    %v336 = vunpack.c.l.b16 %v301
    %v337 = vunpack.c.l.b16 %v302
    %v338 = vunpack.c.l.b16 %v303
    %v339 = vunpack.c.l.b16 %v304
    %v340 = vunpack.c.l.b16 %v305
    %v341 = vunpack.c.l.b16 %v306
    %v342 = vunpack.c.l.b16 %v307
    %v343 = vpack.c.b16 %v328, %v327
    %v344 = vpack.c.b16 %v330, %v329
    %v345 = vpack.c.b16 %v332, %v331
    %v346 = vpack.c.b16 %v334, %v333
    %v347 = vpack.c.b16 %v336, %v335
    %v348 = vpack.c.b16 %v338, %v337
    %v349 = vpack.c.b16 %v340, %v339
    %v350 = vpack.c.b16 %v342, %v341
    %359 = vmatprep.subr.bf16.mxu0 0
    %360 = vmatpush1.bf16.msra.mxu0 %v350
    %361 = vmatprep.subr.bf16.mxu0 0
    %362 = vmatpush1.bf16.msra.mxu0 %v349
    %363 = vmatprep.subr.bf16.mxu0 0
    %364 = vmatpush1.bf16.msra.mxu0 %v348
    %365 = vmatprep.subr.bf16.mxu0 0
    %366 = vmatpush1.bf16.msra.mxu0 %v347
    %367 = vmatprep.subr.bf16.mxu0 0
    %368 = vmatpush1.bf16.msra.mxu0 %v346
    %369 = vmatprep.subr.bf16.mxu0 0
    %370 = vmatpush1.bf16.msra.mxu0 %v345
    %371 = vmatprep.subr.bf16.mxu0 0
    %372 = vmatpush1.bf16.msra.mxu0 %v344
    %373 = vmatprep.subr.bf16.mxu0 0
    %374 = vmatpush1.bf16.msra.mxu0 %v343
    %375 = vmatprep.subr.bf16.mxu0 0
    %376 = vmatpush2.bf16.msra.mxu0 0
    %377 = vmatprep.subr.bf16.mxu0 0
    %378 = vmatpush2.bf16.msra.mxu0 0
    %379 = vmatprep.subr.bf16.mxu0 0
    %380 = vmatpush2.bf16.msra.mxu0 0
    %381 = vmatprep.subr.bf16.mxu0 0
    %382 = vmatpush2.bf16.msra.mxu0 0
    %383 = vmatprep.subr.bf16.mxu0 0
    %384 = vmatpush2.bf16.msra.mxu0 0
    %385 = vmatprep.subr.bf16.mxu0 0
    %386 = vmatpush2.bf16.msra.mxu0 0
    %387 = vmatprep.subr.bf16.mxu0 0
    %388 = vmatpush2.bf16.msra.mxu0 0
    %389 = vmatprep.subr.bf16.mxu0 0
    %390 = vmatpush2.bf16.msra.mxu0 0
    %391 = vmatprep.mubr.bf16.mxu0 0
    %392 = vmatmul.mubr.bf16.gmra.mxu0 %v310
    %v393 = vpop.f32.mrf.mxu0
    %v394 = vadd.f32 0.0, %v393
    %v395 = vpop.f32.mrf.mxu0
    %v396 = vpop.f32.mrf.mxu0
    %v397 = vpop.f32.mrf.mxu0
    %398 = vdwg.mxu0
    %v399 = vadd.f32 %v309, %v394
    %v400 = vtanh.pop %v399
    %401 = vst [vmem:[#allocation14] sm:$0xff] %v400
    %s402 = scalar_lea.vmem [#allocation2], 8
    %v403 = vld [vmem:[%s402] sm:$0xff]
    %v404 = vpack.c.bf16 %v400, %v400
    %405 = vmatprep.subr.bf16.mxu0 0
    %406 = vmatpush1.bf16.msra.mxu0 %v350
    %407 = vmatprep.subr.bf16.mxu0 0
    %408 = vmatpush1.bf16.msra.mxu0 %v349
    %409 = vmatprep.subr.bf16.mxu0 0
    %410 = vmatpush1.bf16.msra.mxu0 %v348
    %411 = vmatprep.subr.bf16.mxu0 0
    %412 = vmatpush1.bf16.msra.mxu0 %v347
    %413 = vmatprep.subr.bf16.mxu0 0
    %414 = vmatpush1.bf16.msra.mxu0 %v346
    %415 = vmatprep.subr.bf16.mxu0 0
    %416 = vmatpush1.bf16.msra.mxu0 %v345
    %417 = vmatprep.subr.bf16.mxu0 0
    %418 = vmatpush1.bf16.msra.mxu0 %v344
    %419 = vmatprep.subr.bf16.mxu0 0
    %420 = vmatpush1.bf16.msra.mxu0 %v343
    %421 = vmatprep.subr.bf16.mxu0 0
    %422 = vmatpush2.bf16.msra.mxu0 0
    %423 = vmatprep.subr.bf16.mxu0 0
    %424 = vmatpush2.bf16.msra.mxu0 0
    %425 = vmatprep.subr.bf16.mxu0 0
    %426 = vmatpush2.bf16.msra.mxu0 0
    %427 = vmatprep.subr.bf16.mxu0 0
    %428 = vmatpush2.bf16.msra.mxu0 0
    %429 = vmatprep.subr.bf16.mxu0 0
    %430 = vmatpush2.bf16.msra.mxu0 0
    %431 = vmatprep.subr.bf16.mxu0 0
    %432 = vmatpush2.bf16.msra.mxu0 0
    %433 = vmatprep.subr.bf16.mxu0 0
    %434 = vmatpush2.bf16.msra.mxu0 0
    %435 = vmatprep.subr.bf16.mxu0 0
    %436 = vmatpush2.bf16.msra.mxu0 0
    %437 = vmatprep.mubr.bf16.mxu0 0
    %438 = vmatmul.mubr.bf16.gmra.mxu0 %v404
    %v439 = vpop.f32.mrf.mxu0
    %v440 = vadd.f32 0.0, %v439
    %v441 = vpop.f32.mrf.mxu0
    %v442 = vpop.f32.mrf.mxu0
    %v443 = vpop.f32.mrf.mxu0
    %444 = vdwg.mxu0
    %v445 = vadd.f32 %v403, %v440
    %v446 = vtanh.pop %v445
    %s447 = scalar_lea.vmem [#allocation14], 8
    %448 = vst [vmem:[%s447] sm:$0xff] %v446
    %s449 = scalar_lea.vmem [#allocation2], 16
    %v450 = vld [vmem:[%s449] sm:$0xff]
    %v451 = vpack.c.bf16 %v446, %v446
    %452 = vmatprep.subr.bf16.mxu0 0
    %453 = vmatpush1.bf16.msra.mxu0 %v350
    %454 = vmatprep.subr.bf16.mxu0 0
    %455 = vmatpush1.bf16.msra.mxu0 %v349
    %456 = vmatprep.subr.bf16.mxu0 0
    %457 = vmatpush1.bf16.msra.mxu0 %v348
    %458 = vmatprep.subr.bf16.mxu0 0
    %459 = vmatpush1.bf16.msra.mxu0 %v347
    %460 = vmatprep.subr.bf16.mxu0 0
    %461 = vmatpush1.bf16.msra.mxu0 %v346
    %462 = vmatprep.subr.bf16.mxu0 0
    %463 = vmatpush1.bf16.msra.mxu0 %v345
    %464 = vmatprep.subr.bf16.mxu0 0
    %465 = vmatpush1.bf16.msra.mxu0 %v344
    %466 = vmatprep.subr.bf16.mxu0 0
    %467 = vmatpush1.bf16.msra.mxu0 %v343
    %468 = vmatprep.subr.bf16.mxu0 0
    %469 = vmatpush2.bf16.msra.mxu0 0
    %470 = vmatprep.subr.bf16.mxu0 0
    %471 = vmatpush2.bf16.msra.mxu0 0
    %472 = vmatprep.subr.bf16.mxu0 0
    %473 = vmatpush2.bf16.msra.mxu0 0
    %474 = vmatprep.subr.bf16.mxu0 0
    %475 = vmatpush2.bf16.msra.mxu0 0
    %476 = vmatprep.subr.bf16.mxu0 0
    %477 = vmatpush2.bf16.msra.mxu0 0
    %478 = vmatprep.subr.bf16.mxu0 0
    %479 = vmatpush2.bf16.msra.mxu0 0
    %480 = vmatprep.subr.bf16.mxu0 0
    %481 = vmatpush2.bf16.msra.mxu0 0
    %482 = vmatprep.subr.bf16.mxu0 0
    %483 = vmatpush2.bf16.msra.mxu0 0
    %484 = vmatprep.mubr.bf16.mxu0 0
    %485 = vmatmul.mubr.bf16.gmra.mxu0 %v451
    %v486 = vpop.f32.mrf.mxu0
    %v487 = vadd.f32 0.0, %v486
    %v488 = vpop.f32.mrf.mxu0
    %v489 = vpop.f32.mrf.mxu0
    %v490 = vpop.f32.mrf.mxu0
    %491 = vdwg.mxu0
    %v492 = vadd.f32 %v450, %v487
    %v493 = vtanh.pop %v492
    %s494 = scalar_lea.vmem [#allocation14], 16
    %495 = vst [vmem:[%s494] sm:$0xff] %v493
    %s496 = scalar_lea.vmem [#allocation2], 24
    %v497 = vld [vmem:[%s496] sm:$0xff]
    %v498 = vpack.c.bf16 %v493, %v493
    %499 = vmatprep.subr.bf16.mxu0 0
    %500 = vmatpush1.bf16.msra.mxu0 %v350
    %501 = vmatprep.subr.bf16.mxu0 0
    %502 = vmatpush1.bf16.msra.mxu0 %v349
    %503 = vmatprep.subr.bf16.mxu0 0
    %504 = vmatpush1.bf16.msra.mxu0 %v348
    %505 = vmatprep.subr.bf16.mxu0 0
    %506 = vmatpush1.bf16.msra.mxu0 %v347
    %507 = vmatprep.subr.bf16.mxu0 0
    %508 = vmatpush1.bf16.msra.mxu0 %v346
    %509 = vmatprep.subr.bf16.mxu0 0
    %510 = vmatpush1.bf16.msra.mxu0 %v345
    %511 = vmatprep.subr.bf16.mxu0 0
    %512 = vmatpush1.bf16.msra.mxu0 %v344
    %513 = vmatprep.subr.bf16.mxu0 0
    %514 = vmatpush1.bf16.msra.mxu0 %v343
    %515 = vmatprep.subr.bf16.mxu0 0
    %516 = vmatpush2.bf16.msra.mxu0 0
    %517 = vmatprep.subr.bf16.mxu0 0
    %518 = vmatpush2.bf16.msra.mxu0 0
    %519 = vmatprep.subr.bf16.mxu0 0
    %520 = vmatpush2.bf16.msra.mxu0 0
    %521 = vmatprep.subr.bf16.mxu0 0
    %522 = vmatpush2.bf16.msra.mxu0 0
    %523 = vmatprep.subr.bf16.mxu0 0
    %524 = vmatpush2.bf16.msra.mxu0 0
    %525 = vmatprep.subr.bf16.mxu0 0
    %526 = vmatpush2.bf16.msra.mxu0 0
    %527 = vmatprep.subr.bf16.mxu0 0
    %528 = vmatpush2.bf16.msra.mxu0 0
    %529 = vmatprep.subr.bf16.mxu0 0
    %530 = vmatpush2.bf16.msra.mxu0 0
    %531 = vmatprep.mubr.bf16.mxu0 0
    %532 = vmatmul.mubr.bf16.gmra.mxu0 %v498
    %v533 = vpop.f32.mrf.mxu0
    %v534 = vadd.f32 0.0, %v533
    %v535 = vpop.f32.mrf.mxu0
    %v536 = vpop.f32.mrf.mxu0
    %v537 = vpop.f32.mrf.mxu0
    %538 = vdwg.mxu0
    %v539 = vadd.f32 %v497, %v534
    %v540 = vtanh.pop %v539
    %s541 = scalar_lea.vmem [#allocation14], 24
    %542 = vst [vmem:[%s541] sm:$0xff] %v540
    %s543 = scalar_lea.vmem [#allocation2], 32
    %v544 = vld [vmem:[%s543] sm:$0xff]
    %v545 = vpack.c.bf16 %v540, %v540
    %546 = vmatprep.subr.bf16.mxu0 0
    %547 = vmatpush1.bf16.msra.mxu0 %v350
    %548 = vmatprep.subr.bf16.mxu0 0
    %549 = vmatpush1.bf16.msra.mxu0 %v349
    %550 = vmatprep.subr.bf16.mxu0 0
    %551 = vmatpush1.bf16.msra.mxu0 %v348
    %552 = vmatprep.subr.bf16.mxu0 0
    %553 = vmatpush1.bf16.msra.mxu0 %v347
    %554 = vmatprep.subr.bf16.mxu0 0
    %555 = vmatpush1.bf16.msra.mxu0 %v346
    %556 = vmatprep.subr.bf16.mxu0 0
    %557 = vmatpush1.bf16.msra.mxu0 %v345
    %558 = vmatprep.subr.bf16.mxu0 0
    %559 = vmatpush1.bf16.msra.mxu0 %v344
    %560 = vmatprep.subr.bf16.mxu0 0
    %561 = vmatpush1.bf16.msra.mxu0 %v343
    %562 = vmatprep.subr.bf16.mxu0 0
    %563 = vmatpush2.bf16.msra.mxu0 0
    %564 = vmatprep.subr.bf16.mxu0 0
    %565 = vmatpush2.bf16.msra.mxu0 0
    %566 = vmatprep.subr.bf16.mxu0 0
    %567 = vmatpush2.bf16.msra.mxu0 0
    %568 = vmatprep.subr.bf16.mxu0 0
    %569 = vmatpush2.bf16.msra.mxu0 0
    %570 = vmatprep.subr.bf16.mxu0 0
    %571 = vmatpush2.bf16.msra.mxu0 0
    %572 = vmatprep.subr.bf16.mxu0 0
    %573 = vmatpush2.bf16.msra.mxu0 0
    %574 = vmatprep.subr.bf16.mxu0 0
    %575 = vmatpush2.bf16.msra.mxu0 0
    %576 = vmatprep.subr.bf16.mxu0 0
    %577 = vmatpush2.bf16.msra.mxu0 0
    %578 = vmatprep.mubr.bf16.mxu0 0
    %579 = vmatmul.mubr.bf16.gmra.mxu0 %v545
    %v580 = vpop.f32.mrf.mxu0
    %v581 = vadd.f32 0.0, %v580
    %v582 = vpop.f32.mrf.mxu0
    %v583 = vpop.f32.mrf.mxu0
    %v584 = vpop.f32.mrf.mxu0
    %585 = vdwg.mxu0
    %v586 = vadd.f32 %v544, %v581
    %v587 = vtanh.pop %v586
    %s588 = scalar_lea.vmem [#allocation14], 32
    %589 = vst [vmem:[%s588] sm:$0xff] %v587
    %s590 = scalar_lea.vmem [#allocation2], 40
    %v591 = vld [vmem:[%s590] sm:$0xff]
    %v592 = vpack.c.bf16 %v587, %v587
    %593 = vmatprep.subr.bf16.mxu0 0
    %594 = vmatpush1.bf16.msra.mxu0 %v350
    %595 = vmatprep.subr.bf16.mxu0 0
    %596 = vmatpush1.bf16.msra.mxu0 %v349
    %597 = vmatprep.subr.bf16.mxu0 0
    %598 = vmatpush1.bf16.msra.mxu0 %v348
    %599 = vmatprep.subr.bf16.mxu0 0
    %600 = vmatpush1.bf16.msra.mxu0 %v347
    %601 = vmatprep.subr.bf16.mxu0 0
    %602 = vmatpush1.bf16.msra.mxu0 %v346
    %603 = vmatprep.subr.bf16.mxu0 0
    %604 = vmatpush1.bf16.msra.mxu0 %v345
    %605 = vmatprep.subr.bf16.mxu0 0
    %606 = vmatpush1.bf16.msra.mxu0 %v344
    %607 = vmatprep.subr.bf16.mxu0 0
    %608 = vmatpush1.bf16.msra.mxu0 %v343
    %609 = vmatprep.subr.bf16.mxu0 0
    %610 = vmatpush2.bf16.msra.mxu0 0
    %611 = vmatprep.subr.bf16.mxu0 0
    %612 = vmatpush2.bf16.msra.mxu0 0
    %613 = vmatprep.subr.bf16.mxu0 0
    %614 = vmatpush2.bf16.msra.mxu0 0
    %615 = vmatprep.subr.bf16.mxu0 0
    %616 = vmatpush2.bf16.msra.mxu0 0
    %617 = vmatprep.subr.bf16.mxu0 0
    %618 = vmatpush2.bf16.msra.mxu0 0
    %619 = vmatprep.subr.bf16.mxu0 0
    %620 = vmatpush2.bf16.msra.mxu0 0
    %621 = vmatprep.subr.bf16.mxu0 0
    %622 = vmatpush2.bf16.msra.mxu0 0
    %623 = vmatprep.subr.bf16.mxu0 0
    %624 = vmatpush2.bf16.msra.mxu0 0
    %625 = vmatprep.mubr.bf16.mxu0 0
    %626 = vmatmul.mubr.bf16.gmra.mxu0 %v592
    %v627 = vpop.f32.mrf.mxu0
    %v628 = vadd.f32 0.0, %v627
    %v629 = vpop.f32.mrf.mxu0
    %v630 = vpop.f32.mrf.mxu0
    %v631 = vpop.f32.mrf.mxu0
    %632 = vdwg.mxu0
    %v633 = vadd.f32 %v591, %v628
    %v634 = vtanh.pop %v633
    %s635 = scalar_lea.vmem [#allocation14], 40
    %636 = vst [vmem:[%s635] sm:$0xff] %v634
    %s637 = scalar_lea.vmem [#allocation2], 48
    %v638 = vld [vmem:[%s637] sm:$0xff]
    %v639 = vpack.c.bf16 %v634, %v634
    %640 = vmatprep.subr.bf16.mxu0 0
    %641 = vmatpush1.bf16.msra.mxu0 %v350
    %642 = vmatprep.subr.bf16.mxu0 0
    %643 = vmatpush1.bf16.msra.mxu0 %v349
    %644 = vmatprep.subr.bf16.mxu0 0
    %645 = vmatpush1.bf16.msra.mxu0 %v348
    %646 = vmatprep.subr.bf16.mxu0 0
    %647 = vmatpush1.bf16.msra.mxu0 %v347
    %648 = vmatprep.subr.bf16.mxu0 0
    %649 = vmatpush1.bf16.msra.mxu0 %v346
    %650 = vmatprep.subr.bf16.mxu0 0
    %651 = vmatpush1.bf16.msra.mxu0 %v345
    %652 = vmatprep.subr.bf16.mxu0 0
    %653 = vmatpush1.bf16.msra.mxu0 %v344
    %654 = vmatprep.subr.bf16.mxu0 0
    %655 = vmatpush1.bf16.msra.mxu0 %v343
    %656 = vmatprep.subr.bf16.mxu0 0
    %657 = vmatpush2.bf16.msra.mxu0 0
    %658 = vmatprep.subr.bf16.mxu0 0
    %659 = vmatpush2.bf16.msra.mxu0 0
    %660 = vmatprep.subr.bf16.mxu0 0
    %661 = vmatpush2.bf16.msra.mxu0 0
    %662 = vmatprep.subr.bf16.mxu0 0
    %663 = vmatpush2.bf16.msra.mxu0 0
    %664 = vmatprep.subr.bf16.mxu0 0
    %665 = vmatpush2.bf16.msra.mxu0 0
    %666 = vmatprep.subr.bf16.mxu0 0
    %667 = vmatpush2.bf16.msra.mxu0 0
    %668 = vmatprep.subr.bf16.mxu0 0
    %669 = vmatpush2.bf16.msra.mxu0 0
    %670 = vmatprep.subr.bf16.mxu0 0
    %671 = vmatpush2.bf16.msra.mxu0 0
    %672 = vmatprep.mubr.bf16.mxu0 0
    %673 = vmatmul.mubr.bf16.gmra.mxu0 %v639
    %v674 = vpop.f32.mrf.mxu0
    %v675 = vadd.f32 0.0, %v674
    %v676 = vpop.f32.mrf.mxu0
    %v677 = vpop.f32.mrf.mxu0
    %v678 = vpop.f32.mrf.mxu0
    %679 = vdwg.mxu0
    %v680 = vadd.f32 %v638, %v675
    %v681 = vtanh.pop %v680
    %s682 = scalar_lea.vmem [#allocation14], 48
    %683 = vst [vmem:[%s682] sm:$0xff] %v681
    %s684 = scalar_lea.vmem [#allocation2], 56
    %v685 = vld [vmem:[%s684] sm:$0xff]
    %v686 = vpack.c.bf16 %v681, %v681
    %687 = vmatprep.subr.bf16.mxu0 0
    %688 = vmatpush1.bf16.msra.mxu0 %v350
    %689 = vmatprep.subr.bf16.mxu0 0
    %690 = vmatpush1.bf16.msra.mxu0 %v349
    %691 = vmatprep.subr.bf16.mxu0 0
    %692 = vmatpush1.bf16.msra.mxu0 %v348
    %693 = vmatprep.subr.bf16.mxu0 0
    %694 = vmatpush1.bf16.msra.mxu0 %v347
    %695 = vmatprep.subr.bf16.mxu0 0
    %696 = vmatpush1.bf16.msra.mxu0 %v346
    %697 = vmatprep.subr.bf16.mxu0 0
    %698 = vmatpush1.bf16.msra.mxu0 %v345
    %699 = vmatprep.subr.bf16.mxu0 0
    %700 = vmatpush1.bf16.msra.mxu0 %v344
    %701 = vmatprep.subr.bf16.mxu0 0
    %702 = vmatpush1.bf16.msra.mxu0 %v343
    %703 = vmatprep.subr.bf16.mxu0 0
    %704 = vmatpush2.bf16.msra.mxu0 0
    %705 = vmatprep.subr.bf16.mxu0 0
    %706 = vmatpush2.bf16.msra.mxu0 0
    %707 = vmatprep.subr.bf16.mxu0 0
    %708 = vmatpush2.bf16.msra.mxu0 0
    %709 = vmatprep.subr.bf16.mxu0 0
    %710 = vmatpush2.bf16.msra.mxu0 0
    %711 = vmatprep.subr.bf16.mxu0 0
    %712 = vmatpush2.bf16.msra.mxu0 0
    %713 = vmatprep.subr.bf16.mxu0 0
    %714 = vmatpush2.bf16.msra.mxu0 0
    %715 = vmatprep.subr.bf16.mxu0 0
    %716 = vmatpush2.bf16.msra.mxu0 0
    %717 = vmatprep.subr.bf16.mxu0 0
    %718 = vmatpush2.bf16.msra.mxu0 0
    %719 = vmatprep.mubr.bf16.mxu0 0
    %720 = vmatmul.mubr.bf16.gmra.mxu0 %v686
    %v721 = vpop.f32.mrf.mxu0
    %v722 = vadd.f32 0.0, %v721
    %v723 = vpop.f32.mrf.mxu0
    %v724 = vpop.f32.mrf.mxu0
    %v725 = vpop.f32.mrf.mxu0
    %726 = vdwg.mxu0
    %v727 = vadd.f32 %v685, %v722
    %v728 = vtanh.pop %v727
    %s729 = scalar_lea.vmem [#allocation14], 56
    %730 = vst [vmem:[%s729] sm:$0xff] %v728
    %731 = vst [vmem:[#allocation15] sm:$0xff] %v728
    %v732 = vld [vmem:[#allocation9] sm:$0xf]
    %v733 = vld [vmem:[#allocation9 + $0x4] sm:$0xf]
    %v734 = vld [vmem:[#allocation9 + $0x8] sm:$0xf]
    %v735 = vld [vmem:[#allocation9 + $0xc] sm:$0xf]
    %v736 = vld [vmem:[#allocation9 + $0x10] sm:$0xf]
    %v737 = vld [vmem:[#allocation9 + $0x14] sm:$0xf]
    %v738 = vld [vmem:[#allocation9 + $0x18] sm:$0xf]
    %v739 = vld [vmem:[#allocation9 + $0x1c] sm:$0xf]
    %v740 = vld [vmem:[#allocation9 + $0x20] sm:$0xf]
    %v741 = vld [vmem:[#allocation9 + $0x24] sm:$0xf]
    %v742 = vld [vmem:[#allocation9 + $0x28] sm:$0xf]
    %v743 = vld [vmem:[#allocation9 + $0x2c] sm:$0xf]
    %v744 = vld [vmem:[#allocation9 + $0x30] sm:$0xf]
    %v745 = vld [vmem:[#allocation9 + $0x34] sm:$0xf]
    %v746 = vld [vmem:[#allocation9 + $0x38] sm:$0xf]
    %v747 = vld [vmem:[#allocation9 + $0x3c] sm:$0xf]
    %v748 = vld [vmem:[%s7] sm:$0x1]
    %v749 = vld [vmem:[#allocation14] sm:$0xff]
    %v750 = vld [vmem:[#allocation14 + $0x8] sm:$0xff]
    %v751 = vld [vmem:[#allocation14 + $0x10] sm:$0xff]
    %v752 = vld [vmem:[#allocation14 + $0x18] sm:$0xff]
    %v753 = vld [vmem:[#allocation14 + $0x20] sm:$0xff]
    %v754 = vld [vmem:[#allocation14 + $0x28] sm:$0xff]
    %v755 = vld [vmem:[#allocation14 + $0x30] sm:$0xff]
    %v756 = vld [vmem:[#allocation14 + $0x38] sm:$0xff]
    %v757 = vpack.c.bf16 %v750, %v749
    %v758 = vpack.c.bf16 %v752, %v751
    %v759 = vpack.c.bf16 %v754, %v753
    %v760 = vpack.c.bf16 %v756, %v755
    %v762 = vlaneseq
    %v763 = vshrl.u32 %v762, 7
    %v764 = vsub.s32 0, %v763
    %v765 = vrot.slane %v748, %v764
    %v783 = vunpack.c.l.b16 %v732
    %v784 = vunpack.c.l.b16 %v733
    %v785 = vunpack.c.l.b16 %v734
    %v786 = vunpack.c.l.b16 %v735
    %v787 = vunpack.c.l.b16 %v736
    %v788 = vunpack.c.l.b16 %v737
    %v789 = vunpack.c.l.b16 %v738
    %v790 = vunpack.c.l.b16 %v739
    %v791 = vunpack.c.l.b16 %v740
    %v792 = vunpack.c.l.b16 %v741
    %v793 = vunpack.c.l.b16 %v742
    %v794 = vunpack.c.l.b16 %v743
    %v795 = vunpack.c.l.b16 %v744
    %v796 = vunpack.c.l.b16 %v745
    %v797 = vunpack.c.l.b16 %v746
    %v798 = vunpack.c.l.b16 %v747
    %v799 = vpack.c.b16 %v784, %v783
    %v800 = vpack.c.b16 %v786, %v785
    %v801 = vpack.c.b16 %v788, %v787
    %v802 = vpack.c.b16 %v790, %v789
    %v803 = vpack.c.b16 %v792, %v791
    %v804 = vpack.c.b16 %v794, %v793
    %v805 = vpack.c.b16 %v796, %v795
    %v806 = vpack.c.b16 %v798, %v797
    %815 = vmatprep.subr.bf16.mxu0 0
    %816 = vmatpush1.bf16.msra.mxu0 %v806
    %817 = vmatprep.subr.bf16.mxu0 0
    %818 = vmatpush1.bf16.msra.mxu0 %v805
    %819 = vmatprep.subr.bf16.mxu0 0
    %820 = vmatpush1.bf16.msra.mxu0 %v804
    %821 = vmatprep.subr.bf16.mxu0 0
    %822 = vmatpush1.bf16.msra.mxu0 %v803
    %823 = vmatprep.subr.bf16.mxu0 0
    %824 = vmatpush1.bf16.msra.mxu0 %v802
    %825 = vmatprep.subr.bf16.mxu0 0
    %826 = vmatpush1.bf16.msra.mxu0 %v801
    %827 = vmatprep.subr.bf16.mxu0 0
    %828 = vmatpush1.bf16.msra.mxu0 %v800
    %829 = vmatprep.subr.bf16.mxu0 0
    %830 = vmatpush1.bf16.msra.mxu0 %v799
    %831 = vmatprep.subr.bf16.mxu0 0
    %832 = vmatpush2.bf16.msra.mxu0 0
    %833 = vmatprep.subr.bf16.mxu0 0
    %834 = vmatpush2.bf16.msra.mxu0 0
    %835 = vmatprep.subr.bf16.mxu0 0
    %836 = vmatpush2.bf16.msra.mxu0 0
    %837 = vmatprep.subr.bf16.mxu0 0
    %838 = vmatpush2.bf16.msra.mxu0 0
    %839 = vmatprep.subr.bf16.mxu0 0
    %840 = vmatpush2.bf16.msra.mxu0 0
    %841 = vmatprep.subr.bf16.mxu0 0
    %842 = vmatpush2.bf16.msra.mxu0 0
    %843 = vmatprep.subr.bf16.mxu0 0
    %844 = vmatpush2.bf16.msra.mxu0 0
    %845 = vmatprep.subr.bf16.mxu0 0
    %846 = vmatpush2.bf16.msra.mxu0 0
    %847 = vmatprep.mubr.bf16.mxu0 0
    %848 = vmatmul.mubr.bf16.gmra.mxu0 %v757
    %v849 = vpop.f32.mrf.mxu0
    %v850 = vadd.f32 %v765, %v849
    %v851 = vpop.f32.mrf.mxu0
    %v852 = vpop.f32.mrf.mxu0
    %v853 = vadd.f32 %v765, %v852
    %v854 = vpop.f32.mrf.mxu0
    %855 = vmatprep.mubr.bf16.mxu0 0
    %856 = vmatmul.mubr.bf16.gmra.mxu0 %v758
    %v857 = vpop.f32.mrf.mxu0
    %v858 = vadd.f32 %v765, %v857
    %v859 = vpop.f32.mrf.mxu0
    %v860 = vpop.f32.mrf.mxu0
    %v861 = vadd.f32 %v765, %v860
    %v862 = vpop.f32.mrf.mxu0
    %863 = vmatprep.mubr.bf16.mxu0 0
    %864 = vmatmul.mubr.bf16.gmra.mxu0 %v759
    %v865 = vpop.f32.mrf.mxu0
    %v866 = vadd.f32 %v765, %v865
    %v867 = vpop.f32.mrf.mxu0
    %v868 = vpop.f32.mrf.mxu0
    %v869 = vadd.f32 %v765, %v868
    %v870 = vpop.f32.mrf.mxu0
    %871 = vmatprep.mubr.bf16.mxu0 0
    %872 = vmatmul.mubr.bf16.gmra.mxu0 %v760
    %v873 = vpop.f32.mrf.mxu0
    %v874 = vadd.f32 %v765, %v873
    %v875 = vpop.f32.mrf.mxu0
    %v876 = vpop.f32.mrf.mxu0
    %v877 = vadd.f32 %v765, %v876
    %v878 = vpop.f32.mrf.mxu0
    %879 = vdwg.mxu0
    %880 = vst [vmem:[#allocation2] sm:$0xff] %v850
    %881 = vst [vmem:[#allocation2 + $0x8] sm:$0xff] %v853
    %882 = vst [vmem:[#allocation2 + $0x10] sm:$0xff] %v858
    %883 = vst [vmem:[#allocation2 + $0x18] sm:$0xff] %v861
    %884 = vst [vmem:[#allocation2 + $0x20] sm:$0xff] %v866
    %885 = vst [vmem:[#allocation2 + $0x28] sm:$0xff] %v869
    %886 = vst [vmem:[#allocation2 + $0x30] sm:$0xff] %v874
    %887 = vst [vmem:[#allocation2 + $0x38] sm:$0xff] %v877
    %v888 = vld [vmem:[#allocation12] sm:$0xf]
    %v889 = vld [vmem:[#allocation12 + $0x4] sm:$0xf]
    %v890 = vld [vmem:[#allocation12 + $0x8] sm:$0xf]
    %v891 = vld [vmem:[#allocation12 + $0xc] sm:$0xf]
    %v892 = vld [vmem:[#allocation12 + $0x10] sm:$0xf]
    %v893 = vld [vmem:[#allocation12 + $0x14] sm:$0xf]
    %v894 = vld [vmem:[#allocation12 + $0x18] sm:$0xf]
    %v895 = vld [vmem:[#allocation12 + $0x1c] sm:$0xf]
    %v896 = vld [vmem:[#allocation12 + $0x20] sm:$0xf]
    %v897 = vld [vmem:[#allocation12 + $0x24] sm:$0xf]
    %v898 = vld [vmem:[#allocation12 + $0x28] sm:$0xf]
    %v899 = vld [vmem:[#allocation12 + $0x2c] sm:$0xf]
    %v900 = vld [vmem:[#allocation12 + $0x30] sm:$0xf]
    %v901 = vld [vmem:[#allocation12 + $0x34] sm:$0xf]
    %v902 = vld [vmem:[#allocation12 + $0x38] sm:$0xf]
    %v903 = vld [vmem:[#allocation12 + $0x3c] sm:$0xf]
    %s904 = scalar_lea.vmem [#allocation6], 8
    %v905 = vld [vmem:[%s904] sm:$0xff]
    %v906 = vld [vmem:[#allocation2] sm:$0xff]
    %v907 = vpack.c.bf16 %v905, %v905
    %v924 = vunpack.c.l.b16 %v888
    %v925 = vunpack.c.l.b16 %v889
    %v926 = vunpack.c.l.b16 %v890
    %v927 = vunpack.c.l.b16 %v891
    %v928 = vunpack.c.l.b16 %v892
    %v929 = vunpack.c.l.b16 %v893
    %v930 = vunpack.c.l.b16 %v894
    %v931 = vunpack.c.l.b16 %v895
    %v932 = vunpack.c.l.b16 %v896
    %v933 = vunpack.c.l.b16 %v897
    %v934 = vunpack.c.l.b16 %v898
    %v935 = vunpack.c.l.b16 %v899
    %v936 = vunpack.c.l.b16 %v900
    %v937 = vunpack.c.l.b16 %v901
    %v938 = vunpack.c.l.b16 %v902
    %v939 = vunpack.c.l.b16 %v903
    %v940 = vpack.c.b16 %v925, %v924
    %v941 = vpack.c.b16 %v927, %v926
    %v942 = vpack.c.b16 %v929, %v928
    %v943 = vpack.c.b16 %v931, %v930
    %v944 = vpack.c.b16 %v933, %v932
    %v945 = vpack.c.b16 %v935, %v934
    %v946 = vpack.c.b16 %v937, %v936
    %v947 = vpack.c.b16 %v939, %v938
    %956 = vmatprep.subr.bf16.mxu0 0
    %957 = vmatpush1.bf16.msra.mxu0 %v947
    %958 = vmatprep.subr.bf16.mxu0 0
    %959 = vmatpush1.bf16.msra.mxu0 %v946
    %960 = vmatprep.subr.bf16.mxu0 0
    %961 = vmatpush1.bf16.msra.mxu0 %v945
    %962 = vmatprep.subr.bf16.mxu0 0
    %963 = vmatpush1.bf16.msra.mxu0 %v944
    %964 = vmatprep.subr.bf16.mxu0 0
    %965 = vmatpush1.bf16.msra.mxu0 %v943
    %966 = vmatprep.subr.bf16.mxu0 0
    %967 = vmatpush1.bf16.msra.mxu0 %v942
    %968 = vmatprep.subr.bf16.mxu0 0
    %969 = vmatpush1.bf16.msra.mxu0 %v941
    %970 = vmatprep.subr.bf16.mxu0 0
    %971 = vmatpush1.bf16.msra.mxu0 %v940
    %972 = vmatprep.subr.bf16.mxu0 0
    %973 = vmatpush2.bf16.msra.mxu0 0
    %974 = vmatprep.subr.bf16.mxu0 0
    %975 = vmatpush2.bf16.msra.mxu0 0
    %976 = vmatprep.subr.bf16.mxu0 0
    %977 = vmatpush2.bf16.msra.mxu0 0
    %978 = vmatprep.subr.bf16.mxu0 0
    %979 = vmatpush2.bf16.msra.mxu0 0
    %980 = vmatprep.subr.bf16.mxu0 0
    %981 = vmatpush2.bf16.msra.mxu0 0
    %982 = vmatprep.subr.bf16.mxu0 0
    %983 = vmatpush2.bf16.msra.mxu0 0
    %984 = vmatprep.subr.bf16.mxu0 0
    %985 = vmatpush2.bf16.msra.mxu0 0
    %986 = vmatprep.subr.bf16.mxu0 0
    %987 = vmatpush2.bf16.msra.mxu0 0
    %988 = vmatprep.mubr.bf16.mxu0 0
    %989 = vmatmul.mubr.bf16.gmra.mxu0 %v907
    %v990 = vpop.f32.mrf.mxu0
    %v991 = vadd.f32 0.0, %v990
    %v992 = vpop.f32.mrf.mxu0
    %v993 = vpop.f32.mrf.mxu0
    %v994 = vpop.f32.mrf.mxu0
    %995 = vdwg.mxu0
    %v996 = vadd.f32 %v906, %v991
    %v997 = vtanh.pop %v996
    %998 = vst [vmem:[#allocation14] sm:$0xff] %v997
    %v999 = vld [vmem:[%s402] sm:$0xff]
    %v1000 = vpack.c.bf16 %v997, %v997
    %1001 = vmatprep.subr.bf16.mxu0 0
    %1002 = vmatpush1.bf16.msra.mxu0 %v947
    %1003 = vmatprep.subr.bf16.mxu0 0
    %1004 = vmatpush1.bf16.msra.mxu0 %v946
    %1005 = vmatprep.subr.bf16.mxu0 0
    %1006 = vmatpush1.bf16.msra.mxu0 %v945
    %1007 = vmatprep.subr.bf16.mxu0 0
    %1008 = vmatpush1.bf16.msra.mxu0 %v944
    %1009 = vmatprep.subr.bf16.mxu0 0
    %1010 = vmatpush1.bf16.msra.mxu0 %v943
    %1011 = vmatprep.subr.bf16.mxu0 0
    %1012 = vmatpush1.bf16.msra.mxu0 %v942
    %1013 = vmatprep.subr.bf16.mxu0 0
    %1014 = vmatpush1.bf16.msra.mxu0 %v941
    %1015 = vmatprep.subr.bf16.mxu0 0
    %1016 = vmatpush1.bf16.msra.mxu0 %v940
    %1017 = vmatprep.subr.bf16.mxu0 0
    %1018 = vmatpush2.bf16.msra.mxu0 0
    %1019 = vmatprep.subr.bf16.mxu0 0
    %1020 = vmatpush2.bf16.msra.mxu0 0
    %1021 = vmatprep.subr.bf16.mxu0 0
    %1022 = vmatpush2.bf16.msra.mxu0 0
    %1023 = vmatprep.subr.bf16.mxu0 0
    %1024 = vmatpush2.bf16.msra.mxu0 0
    %1025 = vmatprep.subr.bf16.mxu0 0
    %1026 = vmatpush2.bf16.msra.mxu0 0
    %1027 = vmatprep.subr.bf16.mxu0 0
    %1028 = vmatpush2.bf16.msra.mxu0 0
    %1029 = vmatprep.subr.bf16.mxu0 0
    %1030 = vmatpush2.bf16.msra.mxu0 0
    %1031 = vmatprep.subr.bf16.mxu0 0
    %1032 = vmatpush2.bf16.msra.mxu0 0
    %1033 = vmatprep.mubr.bf16.mxu0 0
    %1034 = vmatmul.mubr.bf16.gmra.mxu0 %v1000
    %v1035 = vpop.f32.mrf.mxu0
    %v1036 = vadd.f32 0.0, %v1035
    %v1037 = vpop.f32.mrf.mxu0
    %v1038 = vpop.f32.mrf.mxu0
    %v1039 = vpop.f32.mrf.mxu0
    %1040 = vdwg.mxu0
    %v1041 = vadd.f32 %v999, %v1036
    %v1042 = vtanh.pop %v1041
    %1043 = vst [vmem:[%s447] sm:$0xff] %v1042
    %v1044 = vld [vmem:[%s449] sm:$0xff]
    %v1045 = vpack.c.bf16 %v1042, %v1042
    %1046 = vmatprep.subr.bf16.mxu0 0
    %1047 = vmatpush1.bf16.msra.mxu0 %v947
    %1048 = vmatprep.subr.bf16.mxu0 0
    %1049 = vmatpush1.bf16.msra.mxu0 %v946
    %1050 = vmatprep.subr.bf16.mxu0 0
    %1051 = vmatpush1.bf16.msra.mxu0 %v945
    %1052 = vmatprep.subr.bf16.mxu0 0
    %1053 = vmatpush1.bf16.msra.mxu0 %v944
    %1054 = vmatprep.subr.bf16.mxu0 0
    %1055 = vmatpush1.bf16.msra.mxu0 %v943
    %1056 = vmatprep.subr.bf16.mxu0 0
    %1057 = vmatpush1.bf16.msra.mxu0 %v942
    %1058 = vmatprep.subr.bf16.mxu0 0
    %1059 = vmatpush1.bf16.msra.mxu0 %v941
    %1060 = vmatprep.subr.bf16.mxu0 0
    %1061 = vmatpush1.bf16.msra.mxu0 %v940
    %1062 = vmatprep.subr.bf16.mxu0 0
    %1063 = vmatpush2.bf16.msra.mxu0 0
    %1064 = vmatprep.subr.bf16.mxu0 0
    %1065 = vmatpush2.bf16.msra.mxu0 0
    %1066 = vmatprep.subr.bf16.mxu0 0
    %1067 = vmatpush2.bf16.msra.mxu0 0
    %1068 = vmatprep.subr.bf16.mxu0 0
    %1069 = vmatpush2.bf16.msra.mxu0 0
    %1070 = vmatprep.subr.bf16.mxu0 0
    %1071 = vmatpush2.bf16.msra.mxu0 0
    %1072 = vmatprep.subr.bf16.mxu0 0
    %1073 = vmatpush2.bf16.msra.mxu0 0
    %1074 = vmatprep.subr.bf16.mxu0 0
    %1075 = vmatpush2.bf16.msra.mxu0 0
    %1076 = vmatprep.subr.bf16.mxu0 0
    %1077 = vmatpush2.bf16.msra.mxu0 0
    %1078 = vmatprep.mubr.bf16.mxu0 0
    %1079 = vmatmul.mubr.bf16.gmra.mxu0 %v1045
    %v1080 = vpop.f32.mrf.mxu0
    %v1081 = vadd.f32 0.0, %v1080
    %v1082 = vpop.f32.mrf.mxu0
    %v1083 = vpop.f32.mrf.mxu0
    %v1084 = vpop.f32.mrf.mxu0
    %1085 = vdwg.mxu0
    %v1086 = vadd.f32 %v1044, %v1081
    %v1087 = vtanh.pop %v1086
    %1088 = vst [vmem:[%s494] sm:$0xff] %v1087
    %v1089 = vld [vmem:[%s496] sm:$0xff]
    %v1090 = vpack.c.bf16 %v1087, %v1087
    %1091 = vmatprep.subr.bf16.mxu0 0
    %1092 = vmatpush1.bf16.msra.mxu0 %v947
    %1093 = vmatprep.subr.bf16.mxu0 0
    %1094 = vmatpush1.bf16.msra.mxu0 %v946
    %1095 = vmatprep.subr.bf16.mxu0 0
    %1096 = vmatpush1.bf16.msra.mxu0 %v945
    %1097 = vmatprep.subr.bf16.mxu0 0
    %1098 = vmatpush1.bf16.msra.mxu0 %v944
    %1099 = vmatprep.subr.bf16.mxu0 0
    %1100 = vmatpush1.bf16.msra.mxu0 %v943
    %1101 = vmatprep.subr.bf16.mxu0 0
    %1102 = vmatpush1.bf16.msra.mxu0 %v942
    %1103 = vmatprep.subr.bf16.mxu0 0
    %1104 = vmatpush1.bf16.msra.mxu0 %v941
    %1105 = vmatprep.subr.bf16.mxu0 0
    %1106 = vmatpush1.bf16.msra.mxu0 %v940
    %1107 = vmatprep.subr.bf16.mxu0 0
    %1108 = vmatpush2.bf16.msra.mxu0 0
    %1109 = vmatprep.subr.bf16.mxu0 0
    %1110 = vmatpush2.bf16.msra.mxu0 0
    %1111 = vmatprep.subr.bf16.mxu0 0
    %1112 = vmatpush2.bf16.msra.mxu0 0
    %1113 = vmatprep.subr.bf16.mxu0 0
    %1114 = vmatpush2.bf16.msra.mxu0 0
    %1115 = vmatprep.subr.bf16.mxu0 0
    %1116 = vmatpush2.bf16.msra.mxu0 0
    %1117 = vmatprep.subr.bf16.mxu0 0
    %1118 = vmatpush2.bf16.msra.mxu0 0
    %1119 = vmatprep.subr.bf16.mxu0 0
    %1120 = vmatpush2.bf16.msra.mxu0 0
    %1121 = vmatprep.subr.bf16.mxu0 0
    %1122 = vmatpush2.bf16.msra.mxu0 0
    %1123 = vmatprep.mubr.bf16.mxu0 0
    %1124 = vmatmul.mubr.bf16.gmra.mxu0 %v1090
    %v1125 = vpop.f32.mrf.mxu0
    %v1126 = vadd.f32 0.0, %v1125
    %v1127 = vpop.f32.mrf.mxu0
    %v1128 = vpop.f32.mrf.mxu0
    %v1129 = vpop.f32.mrf.mxu0
    %1130 = vdwg.mxu0
    %v1131 = vadd.f32 %v1089, %v1126
    %v1132 = vtanh.pop %v1131
    %1133 = vst [vmem:[%s541] sm:$0xff] %v1132
    %v1134 = vld [vmem:[%s543] sm:$0xff]
    %v1135 = vpack.c.bf16 %v1132, %v1132
    %1136 = vmatprep.subr.bf16.mxu0 0
    %1137 = vmatpush1.bf16.msra.mxu0 %v947
    %1138 = vmatprep.subr.bf16.mxu0 0
    %1139 = vmatpush1.bf16.msra.mxu0 %v946
    %1140 = vmatprep.subr.bf16.mxu0 0
    %1141 = vmatpush1.bf16.msra.mxu0 %v945
    %1142 = vmatprep.subr.bf16.mxu0 0
    %1143 = vmatpush1.bf16.msra.mxu0 %v944
    %1144 = vmatprep.subr.bf16.mxu0 0
    %1145 = vmatpush1.bf16.msra.mxu0 %v943
    %1146 = vmatprep.subr.bf16.mxu0 0
    %1147 = vmatpush1.bf16.msra.mxu0 %v942
    %1148 = vmatprep.subr.bf16.mxu0 0
    %1149 = vmatpush1.bf16.msra.mxu0 %v941
    %1150 = vmatprep.subr.bf16.mxu0 0
    %1151 = vmatpush1.bf16.msra.mxu0 %v940
    %1152 = vmatprep.subr.bf16.mxu0 0
    %1153 = vmatpush2.bf16.msra.mxu0 0
    %1154 = vmatprep.subr.bf16.mxu0 0
    %1155 = vmatpush2.bf16.msra.mxu0 0
    %1156 = vmatprep.subr.bf16.mxu0 0
    %1157 = vmatpush2.bf16.msra.mxu0 0
    %1158 = vmatprep.subr.bf16.mxu0 0
    %1159 = vmatpush2.bf16.msra.mxu0 0
    %1160 = vmatprep.subr.bf16.mxu0 0
    %1161 = vmatpush2.bf16.msra.mxu0 0
    %1162 = vmatprep.subr.bf16.mxu0 0
    %1163 = vmatpush2.bf16.msra.mxu0 0
    %1164 = vmatprep.subr.bf16.mxu0 0
    %1165 = vmatpush2.bf16.msra.mxu0 0
    %1166 = vmatprep.subr.bf16.mxu0 0
    %1167 = vmatpush2.bf16.msra.mxu0 0
    %1168 = vmatprep.mubr.bf16.mxu0 0
    %1169 = vmatmul.mubr.bf16.gmra.mxu0 %v1135
    %v1170 = vpop.f32.mrf.mxu0
    %v1171 = vadd.f32 0.0, %v1170
    %v1172 = vpop.f32.mrf.mxu0
    %v1173 = vpop.f32.mrf.mxu0
    %v1174 = vpop.f32.mrf.mxu0
    %1175 = vdwg.mxu0
    %v1176 = vadd.f32 %v1134, %v1171
    %v1177 = vtanh.pop %v1176
    %1178 = vst [vmem:[%s588] sm:$0xff] %v1177
    %v1179 = vld [vmem:[%s590] sm:$0xff]
    %v1180 = vpack.c.bf16 %v1177, %v1177
    %1181 = vmatprep.subr.bf16.mxu0 0
    %1182 = vmatpush1.bf16.msra.mxu0 %v947
    %1183 = vmatprep.subr.bf16.mxu0 0
    %1184 = vmatpush1.bf16.msra.mxu0 %v946
    %1185 = vmatprep.subr.bf16.mxu0 0
    %1186 = vmatpush1.bf16.msra.mxu0 %v945
    %1187 = vmatprep.subr.bf16.mxu0 0
    %1188 = vmatpush1.bf16.msra.mxu0 %v944
    %1189 = vmatprep.subr.bf16.mxu0 0
    %1190 = vmatpush1.bf16.msra.mxu0 %v943
    %1191 = vmatprep.subr.bf16.mxu0 0
    %1192 = vmatpush1.bf16.msra.mxu0 %v942
    %1193 = vmatprep.subr.bf16.mxu0 0
    %1194 = vmatpush1.bf16.msra.mxu0 %v941
    %1195 = vmatprep.subr.bf16.mxu0 0
    %1196 = vmatpush1.bf16.msra.mxu0 %v940
    %1197 = vmatprep.subr.bf16.mxu0 0
    %1198 = vmatpush2.bf16.msra.mxu0 0
    %1199 = vmatprep.subr.bf16.mxu0 0
    %1200 = vmatpush2.bf16.msra.mxu0 0
    %1201 = vmatprep.subr.bf16.mxu0 0
    %1202 = vmatpush2.bf16.msra.mxu0 0
    %1203 = vmatprep.subr.bf16.mxu0 0
    %1204 = vmatpush2.bf16.msra.mxu0 0
    %1205 = vmatprep.subr.bf16.mxu0 0
    %1206 = vmatpush2.bf16.msra.mxu0 0
    %1207 = vmatprep.subr.bf16.mxu0 0
    %1208 = vmatpush2.bf16.msra.mxu0 0
    %1209 = vmatprep.subr.bf16.mxu0 0
    %1210 = vmatpush2.bf16.msra.mxu0 0
    %1211 = vmatprep.subr.bf16.mxu0 0
    %1212 = vmatpush2.bf16.msra.mxu0 0
    %1213 = vmatprep.mubr.bf16.mxu0 0
    %1214 = vmatmul.mubr.bf16.gmra.mxu0 %v1180
    %v1215 = vpop.f32.mrf.mxu0
    %v1216 = vadd.f32 0.0, %v1215
    %v1217 = vpop.f32.mrf.mxu0
    %v1218 = vpop.f32.mrf.mxu0
    %v1219 = vpop.f32.mrf.mxu0
    %1220 = vdwg.mxu0
    %v1221 = vadd.f32 %v1179, %v1216
    %v1222 = vtanh.pop %v1221
    %1223 = vst [vmem:[%s635] sm:$0xff] %v1222
    %v1224 = vld [vmem:[%s637] sm:$0xff]
    %v1225 = vpack.c.bf16 %v1222, %v1222
    %1226 = vmatprep.subr.bf16.mxu0 0
    %1227 = vmatpush1.bf16.msra.mxu0 %v947
    %1228 = vmatprep.subr.bf16.mxu0 0
    %1229 = vmatpush1.bf16.msra.mxu0 %v946
    %1230 = vmatprep.subr.bf16.mxu0 0
    %1231 = vmatpush1.bf16.msra.mxu0 %v945
    %1232 = vmatprep.subr.bf16.mxu0 0
    %1233 = vmatpush1.bf16.msra.mxu0 %v944
    %1234 = vmatprep.subr.bf16.mxu0 0
    %1235 = vmatpush1.bf16.msra.mxu0 %v943
    %1236 = vmatprep.subr.bf16.mxu0 0
    %1237 = vmatpush1.bf16.msra.mxu0 %v942
    %1238 = vmatprep.subr.bf16.mxu0 0
    %1239 = vmatpush1.bf16.msra.mxu0 %v941
    %1240 = vmatprep.subr.bf16.mxu0 0
    %1241 = vmatpush1.bf16.msra.mxu0 %v940
    %1242 = vmatprep.subr.bf16.mxu0 0
    %1243 = vmatpush2.bf16.msra.mxu0 0
    %1244 = vmatprep.subr.bf16.mxu0 0
    %1245 = vmatpush2.bf16.msra.mxu0 0
    %1246 = vmatprep.subr.bf16.mxu0 0
    %1247 = vmatpush2.bf16.msra.mxu0 0
    %1248 = vmatprep.subr.bf16.mxu0 0
    %1249 = vmatpush2.bf16.msra.mxu0 0
    %1250 = vmatprep.subr.bf16.mxu0 0
    %1251 = vmatpush2.bf16.msra.mxu0 0
    %1252 = vmatprep.subr.bf16.mxu0 0
    %1253 = vmatpush2.bf16.msra.mxu0 0
    %1254 = vmatprep.subr.bf16.mxu0 0
    %1255 = vmatpush2.bf16.msra.mxu0 0
    %1256 = vmatprep.subr.bf16.mxu0 0
    %1257 = vmatpush2.bf16.msra.mxu0 0
    %1258 = vmatprep.mubr.bf16.mxu0 0
    %1259 = vmatmul.mubr.bf16.gmra.mxu0 %v1225
    %v1260 = vpop.f32.mrf.mxu0
    %v1261 = vadd.f32 0.0, %v1260
    %v1262 = vpop.f32.mrf.mxu0
    %v1263 = vpop.f32.mrf.mxu0
    %v1264 = vpop.f32.mrf.mxu0
    %1265 = vdwg.mxu0
    %v1266 = vadd.f32 %v1224, %v1261
    %v1267 = vtanh.pop %v1266
    %1268 = vst [vmem:[%s682] sm:$0xff] %v1267
    %v1269 = vld [vmem:[%s684] sm:$0xff]
    %v1270 = vpack.c.bf16 %v1267, %v1267
    %1271 = vmatprep.subr.bf16.mxu0 0
    %1272 = vmatpush1.bf16.msra.mxu0 %v947
    %1273 = vmatprep.subr.bf16.mxu0 0
    %1274 = vmatpush1.bf16.msra.mxu0 %v946
    %1275 = vmatprep.subr.bf16.mxu0 0
    %1276 = vmatpush1.bf16.msra.mxu0 %v945
    %1277 = vmatprep.subr.bf16.mxu0 0
    %1278 = vmatpush1.bf16.msra.mxu0 %v944
    %1279 = vmatprep.subr.bf16.mxu0 0
    %1280 = vmatpush1.bf16.msra.mxu0 %v943
    %1281 = vmatprep.subr.bf16.mxu0 0
    %1282 = vmatpush1.bf16.msra.mxu0 %v942
    %1283 = vmatprep.subr.bf16.mxu0 0
    %1284 = vmatpush1.bf16.msra.mxu0 %v941
    %1285 = vmatprep.subr.bf16.mxu0 0
    %1286 = vmatpush1.bf16.msra.mxu0 %v940
    %1287 = vmatprep.subr.bf16.mxu0 0
    %1288 = vmatpush2.bf16.msra.mxu0 0
    %1289 = vmatprep.subr.bf16.mxu0 0
    %1290 = vmatpush2.bf16.msra.mxu0 0
    %1291 = vmatprep.subr.bf16.mxu0 0
    %1292 = vmatpush2.bf16.msra.mxu0 0
    %1293 = vmatprep.subr.bf16.mxu0 0
    %1294 = vmatpush2.bf16.msra.mxu0 0
    %1295 = vmatprep.subr.bf16.mxu0 0
    %1296 = vmatpush2.bf16.msra.mxu0 0
    %1297 = vmatprep.subr.bf16.mxu0 0
    %1298 = vmatpush2.bf16.msra.mxu0 0
    %1299 = vmatprep.subr.bf16.mxu0 0
    %1300 = vmatpush2.bf16.msra.mxu0 0
    %1301 = vmatprep.subr.bf16.mxu0 0
    %1302 = vmatpush2.bf16.msra.mxu0 0
    %1303 = vmatprep.mubr.bf16.mxu0 0
    %1304 = vmatmul.mubr.bf16.gmra.mxu0 %v1270
    %v1305 = vpop.f32.mrf.mxu0
    %v1306 = vadd.f32 0.0, %v1305
    %v1307 = vpop.f32.mrf.mxu0
    %v1308 = vpop.f32.mrf.mxu0
    %v1309 = vpop.f32.mrf.mxu0
    %1310 = vdwg.mxu0
    %v1311 = vadd.f32 %v1269, %v1306
    %v1312 = vtanh.pop %v1311
    %1313 = vst [vmem:[%s729] sm:$0xff] %v1312
    %s1314 = scalar_lea.vmem [#allocation15], 8
    %1315 = vst [vmem:[%s1314] sm:$0xff] %v1312
    // Predicated region
    $region58: #{tpu_custom_call.1} parent=1 // pred_check
      _
    $region59: #{tpu_custom_call.1} parent=1 // pred_check_branch
      %1317 = sbr.rel (0) target = $region61
    $region60: #{tpu_custom_call.1} parent=1 // pred_region
      %s1319 = ssub.s32 1024, 1024
      %1320 = vsyncadd [#allocation5], %s1319
      %s1321 = sshll.u32 [#allocation14], 4
      %s1322 = int_to_ptr.vmem [resolvable:$true] %s1321
      %1327 = dma.vmem_to_hbm [thread:$0]  %s1322, 1024, %s8, [#allocation5], 128, 128, 8
    $region61: #{tpu_custom_call.1} parent=1 // pred_fallthru
      _
    // Predicated region
    $region62: #{tpu_custom_call.1} parent=1 // pred_check
      _
    $region63: #{tpu_custom_call.1} parent=1 // pred_check_branch
      %1329 = sbr.rel (0) target = $region65
    $region64: #{tpu_custom_call.1} parent=1 // pred_region
      %s1331 = ssub.s32 256, 256
      %1332 = vsyncadd [#allocation16], %s1331
      %s1333 = sshll.u32 [#allocation15], 4
      %s1334 = int_to_ptr.vmem [resolvable:$true] %s1333
      %1339 = dma.vmem_to_hbm [thread:$0]  %s1334, 256, %s9, [#allocation16], 128, 128, 8
    $region65: #{tpu_custom_call.1} parent=1 // pred_fallthru
      _
    // Predicated region
    $region66: #{tpu_custom_call.1} parent=1 // pred_check
      _
    $region67: #{tpu_custom_call.1} parent=1 // pred_check_branch
      %1341 = sbr.rel (0) target = $region69
    $region68: #{tpu_custom_call.1} parent=1 // pred_region
      %1342 = dma.done [#allocation5], 1024
    $region69: #{tpu_custom_call.1} parent=1 // pred_fallthru
      _
    // Predicated region
    $region70: #{tpu_custom_call.1} parent=1 // pred_check
      _
    $region71: #{tpu_custom_call.1} parent=1 // pred_check_branch
      %1344 = sbr.rel (0) target = $region73
    $region72: #{tpu_custom_call.1} parent=1 // pred_region
      %1345 = dma.done [#allocation16], 256
    $region73: #{tpu_custom_call.1} parent=1 // pred_fallthru
      _
    %1346 = vsyncpa [#allocation4], 1
    %1347 = vsyncpa [#allocation7], 1
    %1348 = vsyncpa [#allocation10], 1
    %1349 = vsyncpa [#allocation13], 1
    %1350 = vsyncpa [#allocation5], 1
    %1351 = vsyncpa [#allocation16], 1

// kernel: tpu_custom_call.1
$region0: #{tpu_custom_call.1}
  #allocation0 [shape = 'u32[]', space=smem, size = 0x4, offset = 0x4, fixed_abs, tag = 'smem constant byte address 0x4 - core index']
  #allocation1 [shape = 'u32[144,128]{1,0:T(1,128)}', space=vmem, size = 0x12000, scoped, tag = 'internal scratch']
  #allocation2 [shape = 'f32[8,8,128]{2,1,0:T(8,128)}', space=vmem, size = 0x8000, scoped, tag = 'scratch operand']
  %s0 = inlined_call_operand.hbm [shape: bf16[8,8,128], index: 0, kind: input, shape index: {}]
  %s1 = inlined_call_operand.hbm [shape: f32[2,8,128], index: 1, kind: input, shape index: {}]
  %s2 = inlined_call_operand.hbm [shape: bf16[128,128], index: 2, kind: input, shape index: {}]
  %s3 = inlined_call_operand.hbm [shape: bf16[128,128], index: 3, kind: input, shape index: {}]
  %s4 = inlined_call_operand.hbm [shape: bf16[128,128], index: 4, kind: input, shape index: {}]
  %s5 = inlined_call_operand.hbm [shape: bf16[128,128], index: 5, kind: input, shape index: {}]
  %s6 = inlined_call_operand.vmem [shape: f32[1,128], index: 6, kind: input, shape index: {}]
  %s7 = inlined_call_operand.vmem [shape: f32[1,128], index: 7, kind: input, shape index: {}]
  %s8 = inlined_call_operand.hbm [shape: f32[8,8,128], index: 8, kind: output, shape index: {0}]
  %s9 = inlined_call_operand.hbm [shape: f32[2,8,128], index: 9, kind: output, shape index: {1}]
  %10 = xla_tuple %s8, %s9
  %s11 = sld [smem:[#allocation0]]
  $region74: #{tpu_custom_call.1} parent=0
    _
  %s13 = ssub.s32 1, %s11
  %s14 = scalar_select 0, %s13, %s11
  $region1: #{tpu_custom_call.1} parent=0
    #allocation3 [shape = 'u8[16384]{0}', space=vmem, size = 0x4000, scoped, tag = 'input window, operand 0, single buffered']
    #allocation4 [shape = 's32[1]{0}', space=sflag, size = 0x4, scoped, tag = 'scoped memory for tpu_custom_call.1']
    #allocation5 [shape = 's32[1]{0}', space=sflag, size = 0x4, scoped, tag = 'scoped memory for tpu_custom_call.1']
    #allocation6 [shape = 'u8[8192]{0}', space=vmem, size = 0x2000, scoped, tag = 'input window, operand 1, single buffered']
    #allocation7 [shape = 's32[1]{0}', space=sflag, size = 0x4, scoped, tag = 'scoped memory for tpu_custom_call.1']
    #allocation8 [shape = 'u8[32768]{0}', space=vmem, size = 0x8000, scoped, tag = 'input window, operand 2, single buffered']
    #allocation9 [shape = 'u8[32768]{0}', space=vmem, size = 0x8000, scoped, tag = 'input window, operand 3, single buffered']
    #allocation10 [shape = 's32[1]{0}', space=sflag, size = 0x4, scoped, tag = 'scoped memory for tpu_custom_call.1']
    #allocation11 [shape = 'u8[32768]{0}', space=vmem, size = 0x8000, scoped, tag = 'input window, operand 4, single buffered']
    #allocation12 [shape = 'u8[32768]{0}', space=vmem, size = 0x8000, scoped, tag = 'input window, operand 5, single buffered']
    #allocation13 [shape = 's32[1]{0}', space=sflag, size = 0x4, scoped, tag = 'scoped memory for tpu_custom_call.1']
    #allocation14 [shape = 'u8[32768]{0}', space=vmem, size = 0x8000, scoped, tag = 'output window, operand 0, single buffered']
    #allocation15 [shape = 'u8[8192]{0}', space=vmem, size = 0x2000, scoped, tag = 'output window, operand 1, single buffered']
    #allocation16 [shape = 's32[1]{0}', space=sflag, size = 0x4, scoped, tag = 'scoped memory for tpu_custom_call.1']
    %15 = vsyncpa [#allocation4], 0
    %16 = vsyncpa [#allocation7], 0
    %17 = vsyncpa [#allocation10], 0
    %18 = vsyncpa [#allocation13], 0
    %19 = vsyncpa [#allocation5], 0
    %20 = vsyncpa [#allocation16], 0
    // Predicated region
    $region2: #{tpu_custom_call.1} parent=1 // pred_check
      _
    $region3: #{tpu_custom_call.1} parent=1 // pred_check_branch
      %22 = sbr.rel (0) target = $region5
    $region4: #{tpu_custom_call.1} parent=1 // pred_region
      %s24 = ssub.s32 512, 512
      %25 = vsyncadd [#allocation4], %s24
      %s26 = sshll.u32 [#allocation3], 4
      %s27 = int_to_ptr.vmem [resolvable:$true] %s26
      %32 = dma.hbm_to_vmem [thread:$0]  %s0, 512, %s27, [#allocation4], 64, 64, 4
    $region5: #{tpu_custom_call.1} parent=1 // pred_fallthru
      _
    // Predicated region
    $region6: #{tpu_custom_call.1} parent=1 // pred_check
      _
    $region7: #{tpu_custom_call.1} parent=1 // pred_check_branch
      %34 = sbr.rel (0) target = $region9
    $region8: #{tpu_custom_call.1} parent=1 // pred_region
      %s36 = ssub.s32 256, 256
      %37 = vsyncadd [#allocation7], %s36
      %s38 = sshll.u32 [#allocation6], 4
      %s39 = int_to_ptr.vmem [resolvable:$true] %s38
      %44 = dma.hbm_to_vmem [thread:$0]  %s1, 256, %s39, [#allocation7], 128, 128, 8
    $region9: #{tpu_custom_call.1} parent=1 // pred_fallthru
      _
    // Predicated region
    $region10: #{tpu_custom_call.1} parent=1 // pred_check
      _
    $region11: #{tpu_custom_call.1} parent=1 // pred_check_branch
      %46 = sbr.rel (0) target = $region13
    $region12: #{tpu_custom_call.1} parent=1 // pred_region
      %s48 = ssub.s32 1024, 1024
      %49 = vsyncadd [#allocation7], %s48
      %s50 = sshll.u32 [#allocation8], 4
      %s51 = int_to_ptr.vmem [resolvable:$true] %s50
      %56 = dma.hbm_to_vmem [thread:$0]  %s2, 1024, %s51, [#allocation7], 64, 64, 4
    $region13: #{tpu_custom_call.1} parent=1 // pred_fallthru
      _
    // Predicated region
    $region14: #{tpu_custom_call.1} parent=1 // pred_check
      _
    $region15: #{tpu_custom_call.1} parent=1 // pred_check_branch
      %58 = sbr.rel (0) target = $region17
    $region16: #{tpu_custom_call.1} parent=1 // pred_region
      %s60 = ssub.s32 1024, 1024
      %61 = vsyncadd [#allocation10], %s60
      %s62 = sshll.u32 [#allocation9], 4
      %s63 = int_to_ptr.vmem [resolvable:$true] %s62
      %68 = dma.hbm_to_vmem [thread:$0]  %s3, 1024, %s63, [#allocation10], 64, 64, 4
    $region17: #{tpu_custom_call.1} parent=1 // pred_fallthru
      _
    // Predicated region
    $region18: #{tpu_custom_call.1} parent=1 // pred_check
      _
    $region19: #{tpu_custom_call.1} parent=1 // pred_check_branch
      %70 = sbr.rel (0) target = $region21
    $region20: #{tpu_custom_call.1} parent=1 // pred_region
      %s72 = ssub.s32 1024, 1024
      %73 = vsyncadd [#allocation10], %s72
      %s74 = sshll.u32 [#allocation11], 4
      %s75 = int_to_ptr.vmem [resolvable:$true] %s74
      %80 = dma.hbm_to_vmem [thread:$0]  %s4, 1024, %s75, [#allocation10], 64, 64, 4
    $region21: #{tpu_custom_call.1} parent=1 // pred_fallthru
      _
    // Predicated region
    $region22: #{tpu_custom_call.1} parent=1 // pred_check
      _
    $region23: #{tpu_custom_call.1} parent=1 // pred_check_branch
      %82 = sbr.rel (0) target = $region25
    $region24: #{tpu_custom_call.1} parent=1 // pred_region
      %s84 = ssub.s32 1024, 1024
      %85 = vsyncadd [#allocation13], %s84
      %s86 = sshll.u32 [#allocation12], 4
      %s87 = int_to_ptr.vmem [resolvable:$true] %s86
      %92 = dma.hbm_to_vmem [thread:$0]  %s5, 1024, %s87, [#allocation13], 64, 64, 4
    $region25: #{tpu_custom_call.1} parent=1 // pred_fallthru
      _
    // Predicated region
    $region26: #{tpu_custom_call.1} parent=1 // pred_check
      _
    $region27: #{tpu_custom_call.1} parent=1 // pred_check_branch
      %94 = sbr.rel (0) target = $region29
    $region28: #{tpu_custom_call.1} parent=1 // pred_region
      _
    $region29: #{tpu_custom_call.1} parent=1 // pred_fallthru
      _
    // Predicated region
    $region30: #{tpu_custom_call.1} parent=1 // pred_check
      _
    $region31: #{tpu_custom_call.1} parent=1 // pred_check_branch
      %96 = sbr.rel (0) target = $region33
    $region32: #{tpu_custom_call.1} parent=1 // pred_region
      _
    $region33: #{tpu_custom_call.1} parent=1 // pred_fallthru
      _
    // Predicated region
    $region34: #{tpu_custom_call.1} parent=1 // pred_check
      _
    $region35: #{tpu_custom_call.1} parent=1 // pred_check_branch
      %98 = sbr.rel (0) target = $region37
    $region36: #{tpu_custom_call.1} parent=1 // pred_region
      %99 = dma.done [#allocation4], 512
    $region37: #{tpu_custom_call.1} parent=1 // pred_fallthru
      _
    // Predicated region
    $region38: #{tpu_custom_call.1} parent=1 // pred_check
      _
    $region39: #{tpu_custom_call.1} parent=1 // pred_check_branch
      %101 = sbr.rel (0) target = $region41
    $region40: #{tpu_custom_call.1} parent=1 // pred_region
      %102 = dma.done [#allocation7], 256
    $region41: #{tpu_custom_call.1} parent=1 // pred_fallthru
      _
    // Predicated region
    $region42: #{tpu_custom_call.1} parent=1 // pred_check
      _
    $region43: #{tpu_custom_call.1} parent=1 // pred_check_branch
      %104 = sbr.rel (0) target = $region45
    $region44: #{tpu_custom_call.1} parent=1 // pred_region
      %105 = dma.done [#allocation7], 1024
    $region45: #{tpu_custom_call.1} parent=1 // pred_fallthru
      _
    // Predicated region
    $region46: #{tpu_custom_call.1} parent=1 // pred_check
      _
    $region47: #{tpu_custom_call.1} parent=1 // pred_check_branch
      %107 = sbr.rel (0) target = $region49
    $region48: #{tpu_custom_call.1} parent=1 // pred_region
      %108 = dma.done [#allocation10], 1024
    $region49: #{tpu_custom_call.1} parent=1 // pred_fallthru
      _
    // Predicated region
    $region50: #{tpu_custom_call.1} parent=1 // pred_check
      _
    $region51: #{tpu_custom_call.1} parent=1 // pred_check_branch
      %110 = sbr.rel (0) target = $region53
    $region52: #{tpu_custom_call.1} parent=1 // pred_region
      %111 = dma.done [#allocation10], 1024
    $region53: #{tpu_custom_call.1} parent=1 // pred_fallthru
      _
    // Predicated region
    $region54: #{tpu_custom_call.1} parent=1 // pred_check
      _
    $region55: #{tpu_custom_call.1} parent=1 // pred_check_branch
      %113 = sbr.rel (0) target = $region57
    $region56: #{tpu_custom_call.1} parent=1 // pred_region
      %114 = dma.done [#allocation13], 1024
    $region57: #{tpu_custom_call.1} parent=1 // pred_fallthru
      _
    %v116 = vld [vmem:[#allocation8] sm:$0xf]
    %v117 = vld [vmem:[#allocation8 + $0x4] sm:$0xf]
    %v118 = vld [vmem:[#allocation8 + $0x8] sm:$0xf]
    %v119 = vld [vmem:[#allocation8 + $0xc] sm:$0xf]
    %v120 = vld [vmem:[#allocation8 + $0x10] sm:$0xf]
    %v121 = vld [vmem:[#allocation8 + $0x14] sm:$0xf]
    %v122 = vld [vmem:[#allocation8 + $0x18] sm:$0xf]
    %v123 = vld [vmem:[#allocation8 + $0x1c] sm:$0xf]
    %v124 = vld [vmem:[#allocation8 + $0x20] sm:$0xf]
    %v125 = vld [vmem:[#allocation8 + $0x24] sm:$0xf]
    %v126 = vld [vmem:[#allocation8 + $0x28] sm:$0xf]
    %v127 = vld [vmem:[#allocation8 + $0x2c] sm:$0xf]
    %v128 = vld [vmem:[#allocation8 + $0x30] sm:$0xf]
    %v129 = vld [vmem:[#allocation8 + $0x34] sm:$0xf]
    %v130 = vld [vmem:[#allocation8 + $0x38] sm:$0xf]
    %v131 = vld [vmem:[#allocation8 + $0x3c] sm:$0xf]
    %v132 = vld [vmem:[%s6] sm:$0x1]
    %v133 = vld [vmem:[#allocation3] sm:$0xf]
    %v134 = vld [vmem:[#allocation3 + $0x4] sm:$0xf]
    %v135 = vld [vmem:[#allocation3 + $0x8] sm:$0xf]
    %v136 = vld [vmem:[#allocation3 + $0xc] sm:$0xf]
    %v137 = vld [vmem:[#allocation3 + $0x10] sm:$0xf]
    %v138 = vld [vmem:[#allocation3 + $0x14] sm:$0xf]
    %v139 = vld [vmem:[#allocation3 + $0x18] sm:$0xf]
    %v140 = vld [vmem:[#allocation3 + $0x1c] sm:$0xf]
    %v142 = vlaneseq
    %v143 = vshrl.u32 %v142, 7
    %v144 = vsub.s32 0, %v143
    %v145 = vrot.slane %v132, %v144
    %v155 = vunpack.c.l.b16 %v133
    %v156 = vunpack.c.l.b16 %v134
    %v157 = vunpack.c.l.b16 %v135
    %v158 = vunpack.c.l.b16 %v136
    %v159 = vunpack.c.l.b16 %v137
    %v160 = vunpack.c.l.b16 %v138
    %v161 = vunpack.c.l.b16 %v139
    %v162 = vunpack.c.l.b16 %v140
    %v163 = vpack.c.b16 %v156, %v155
    %v164 = vpack.c.b16 %v158, %v157
    %v165 = vpack.c.b16 %v160, %v159
    %v166 = vpack.c.b16 %v162, %v161
    %v187 = vunpack.c.l.b16 %v116
    %v188 = vunpack.c.l.b16 %v117
    %v189 = vunpack.c.l.b16 %v118
    %v190 = vunpack.c.l.b16 %v119
    %v191 = vunpack.c.l.b16 %v120
    %v192 = vunpack.c.l.b16 %v121
    %v193 = vunpack.c.l.b16 %v122
    %v194 = vunpack.c.l.b16 %v123
    %v195 = vunpack.c.l.b16 %v124
    %v196 = vunpack.c.l.b16 %v125
    %v197 = vunpack.c.l.b16 %v126
    %v198 = vunpack.c.l.b16 %v127
    %v199 = vunpack.c.l.b16 %v128
    %v200 = vunpack.c.l.b16 %v129
    %v201 = vunpack.c.l.b16 %v130
    %v202 = vunpack.c.l.b16 %v131
    %v203 = vpack.c.b16 %v188, %v187
    %v204 = vpack.c.b16 %v190, %v189
    %v205 = vpack.c.b16 %v192, %v191
    %v206 = vpack.c.b16 %v194, %v193
    %v207 = vpack.c.b16 %v196, %v195
    %v208 = vpack.c.b16 %v198, %v197
    %v209 = vpack.c.b16 %v200, %v199
    %v210 = vpack.c.b16 %v202, %v201
    %219 = vmatprep.subr.bf16.mxu0 0
    %220 = vmatpush1.bf16.msra.mxu0 %v210
    %221 = vmatprep.subr.bf16.mxu0 0
    %222 = vmatpush1.bf16.msra.mxu0 %v209
    %223 = vmatprep.subr.bf16.mxu0 0
    %224 = vmatpush1.bf16.msra.mxu0 %v208
    %225 = vmatprep.subr.bf16.mxu0 0
    %226 = vmatpush1.bf16.msra.mxu0 %v207
    %227 = vmatprep.subr.bf16.mxu0 0
    %228 = vmatpush1.bf16.msra.mxu0 %v206
    %229 = vmatprep.subr.bf16.mxu0 0
    %230 = vmatpush1.bf16.msra.mxu0 %v205
    %231 = vmatprep.subr.bf16.mxu0 0
    %232 = vmatpush1.bf16.msra.mxu0 %v204
    %233 = vmatprep.subr.bf16.mxu0 0
    %234 = vmatpush1.bf16.msra.mxu0 %v203
    %235 = vmatprep.subr.bf16.mxu0 0
    %236 = vmatpush2.bf16.msra.mxu0 0
    %237 = vmatprep.subr.bf16.mxu0 0
    %238 = vmatpush2.bf16.msra.mxu0 0
    %239 = vmatprep.subr.bf16.mxu0 0
    %240 = vmatpush2.bf16.msra.mxu0 0
    %241 = vmatprep.subr.bf16.mxu0 0
    %242 = vmatpush2.bf16.msra.mxu0 0
    %243 = vmatprep.subr.bf16.mxu0 0
    %244 = vmatpush2.bf16.msra.mxu0 0
    %245 = vmatprep.subr.bf16.mxu0 0
    %246 = vmatpush2.bf16.msra.mxu0 0
    %247 = vmatprep.subr.bf16.mxu0 0
    %248 = vmatpush2.bf16.msra.mxu0 0
    %249 = vmatprep.subr.bf16.mxu0 0
    %250 = vmatpush2.bf16.msra.mxu0 0
    %251 = vmatprep.mubr.bf16.mxu0 0
    %252 = vmatmul.mubr.bf16.gmra.mxu0 %v163
    %v253 = vpop.f32.mrf.mxu0
    %v254 = vadd.f32 %v145, %v253
    %v255 = vpop.f32.mrf.mxu0
    %v256 = vpop.f32.mrf.mxu0
    %v257 = vadd.f32 %v145, %v256
    %v258 = vpop.f32.mrf.mxu0
    %259 = vmatprep.mubr.bf16.mxu0 0
    %260 = vmatmul.mubr.bf16.gmra.mxu0 %v164
    %v261 = vpop.f32.mrf.mxu0
    %v262 = vadd.f32 %v145, %v261
    %v263 = vpop.f32.mrf.mxu0
    %v264 = vpop.f32.mrf.mxu0
    %v265 = vadd.f32 %v145, %v264
    %v266 = vpop.f32.mrf.mxu0
    %267 = vmatprep.mubr.bf16.mxu0 0
    %268 = vmatmul.mubr.bf16.gmra.mxu0 %v165
    %v269 = vpop.f32.mrf.mxu0
    %v270 = vadd.f32 %v145, %v269
    %v271 = vpop.f32.mrf.mxu0
    %v272 = vpop.f32.mrf.mxu0
    %v273 = vadd.f32 %v145, %v272
    %v274 = vpop.f32.mrf.mxu0
    %275 = vmatprep.mubr.bf16.mxu0 0
    %276 = vmatmul.mubr.bf16.gmra.mxu0 %v166
    %v277 = vpop.f32.mrf.mxu0
    %v278 = vadd.f32 %v145, %v277
    %v279 = vpop.f32.mrf.mxu0
    %v280 = vpop.f32.mrf.mxu0
    %v281 = vadd.f32 %v145, %v280
    %v282 = vpop.f32.mrf.mxu0
    %283 = vdwg.mxu0
    %284 = vst [vmem:[#allocation2] sm:$0xff] %v254
    %285 = vst [vmem:[#allocation2 + $0x8] sm:$0xff] %v257
    %286 = vst [vmem:[#allocation2 + $0x10] sm:$0xff] %v262
    %287 = vst [vmem:[#allocation2 + $0x18] sm:$0xff] %v265
    %288 = vst [vmem:[#allocation2 + $0x20] sm:$0xff] %v270
    %289 = vst [vmem:[#allocation2 + $0x28] sm:$0xff] %v273
    %290 = vst [vmem:[#allocation2 + $0x30] sm:$0xff] %v278
    %291 = vst [vmem:[#allocation2 + $0x38] sm:$0xff] %v281
    %v292 = vld [vmem:[#allocation11] sm:$0xf]
    %v293 = vld [vmem:[#allocation11 + $0x4] sm:$0xf]
    %v294 = vld [vmem:[#allocation11 + $0x8] sm:$0xf]
    %v295 = vld [vmem:[#allocation11 + $0xc] sm:$0xf]
    %v296 = vld [vmem:[#allocation11 + $0x10] sm:$0xf]
    %v297 = vld [vmem:[#allocation11 + $0x14] sm:$0xf]
    %v298 = vld [vmem:[#allocation11 + $0x18] sm:$0xf]
    %v299 = vld [vmem:[#allocation11 + $0x1c] sm:$0xf]
    %v300 = vld [vmem:[#allocation11 + $0x20] sm:$0xf]
    %v301 = vld [vmem:[#allocation11 + $0x24] sm:$0xf]
    %v302 = vld [vmem:[#allocation11 + $0x28] sm:$0xf]
    %v303 = vld [vmem:[#allocation11 + $0x2c] sm:$0xf]
    %v304 = vld [vmem:[#allocation11 + $0x30] sm:$0xf]
    %v305 = vld [vmem:[#allocation11 + $0x34] sm:$0xf]
    %v306 = vld [vmem:[#allocation11 + $0x38] sm:$0xf]
    %v307 = vld [vmem:[#allocation11 + $0x3c] sm:$0xf]
    %v308 = vld [vmem:[#allocation6] sm:$0xff]
    %v309 = vld [vmem:[#allocation2] sm:$0xff]
    %v310 = vpack.c.bf16 %v308, %v308
    %v327 = vunpack.c.l.b16 %v292
    %v328 = vunpack.c.l.b16 %v293
    %v329 = vunpack.c.l.b16 %v294
    %v330 = vunpack.c.l.b16 %v295
    %v331 = vunpack.c.l.b16 %v296
    %v332 = vunpack.c.l.b16 %v297
    %v333 = vunpack.c.l.b16 %v298
    %v334 = vunpack.c.l.b16 %v299
    %v335 = vunpack.c.l.b16 %v300
    %v336 = vunpack.c.l.b16 %v301
    %v337 = vunpack.c.l.b16 %v302
    %v338 = vunpack.c.l.b16 %v303
    %v339 = vunpack.c.l.b16 %v304
    %v340 = vunpack.c.l.b16 %v305
    %v341 = vunpack.c.l.b16 %v306
    %v342 = vunpack.c.l.b16 %v307
    %v343 = vpack.c.b16 %v328, %v327
    %v344 = vpack.c.b16 %v330, %v329
    %v345 = vpack.c.b16 %v332, %v331
    %v346 = vpack.c.b16 %v334, %v333
    %v347 = vpack.c.b16 %v336, %v335
    %v348 = vpack.c.b16 %v338, %v337
    %v349 = vpack.c.b16 %v340, %v339
    %v350 = vpack.c.b16 %v342, %v341
    %359 = vmatprep.subr.bf16.mxu0 0
    %360 = vmatpush1.bf16.msra.mxu0 %v350
    %361 = vmatprep.subr.bf16.mxu0 0
    %362 = vmatpush1.bf16.msra.mxu0 %v349
    %363 = vmatprep.subr.bf16.mxu0 0
    %364 = vmatpush1.bf16.msra.mxu0 %v348
    %365 = vmatprep.subr.bf16.mxu0 0
    %366 = vmatpush1.bf16.msra.mxu0 %v347
    %367 = vmatprep.subr.bf16.mxu0 0
    %368 = vmatpush1.bf16.msra.mxu0 %v346
    %369 = vmatprep.subr.bf16.mxu0 0
    %370 = vmatpush1.bf16.msra.mxu0 %v345
    %371 = vmatprep.subr.bf16.mxu0 0
    %372 = vmatpush1.bf16.msra.mxu0 %v344
    %373 = vmatprep.subr.bf16.mxu0 0
    %374 = vmatpush1.bf16.msra.mxu0 %v343
    %375 = vmatprep.subr.bf16.mxu0 0
    %376 = vmatpush2.bf16.msra.mxu0 0
    %377 = vmatprep.subr.bf16.mxu0 0
    %378 = vmatpush2.bf16.msra.mxu0 0
    %379 = vmatprep.subr.bf16.mxu0 0
    %380 = vmatpush2.bf16.msra.mxu0 0
    %381 = vmatprep.subr.bf16.mxu0 0
    %382 = vmatpush2.bf16.msra.mxu0 0
    %383 = vmatprep.subr.bf16.mxu0 0
    %384 = vmatpush2.bf16.msra.mxu0 0
    %385 = vmatprep.subr.bf16.mxu0 0
    %386 = vmatpush2.bf16.msra.mxu0 0
    %387 = vmatprep.subr.bf16.mxu0 0
    %388 = vmatpush2.bf16.msra.mxu0 0
    %389 = vmatprep.subr.bf16.mxu0 0
    %390 = vmatpush2.bf16.msra.mxu0 0
    %391 = vmatprep.mubr.bf16.mxu0 0
    %392 = vmatmul.mubr.bf16.gmra.mxu0 %v310
    %v393 = vpop.f32.mrf.mxu0
    %v394 = vadd.f32 0.0, %v393
    %v395 = vpop.f32.mrf.mxu0
    %v396 = vpop.f32.mrf.mxu0
    %v397 = vpop.f32.mrf.mxu0
    %398 = vdwg.mxu0
    %v399 = vadd.f32 %v309, %v394
    %v400 = vtanh.pop %v399
    %401 = vst [vmem:[#allocation14] sm:$0xff] %v400
    %s402 = scalar_lea.vmem [#allocation2], 8
    %v403 = vld [vmem:[%s402] sm:$0xff]
    %v404 = vpack.c.bf16 %v400, %v400
    %405 = vmatprep.subr.bf16.mxu0 0
    %406 = vmatpush1.bf16.msra.mxu0 %v350
    %407 = vmatprep.subr.bf16.mxu0 0
    %408 = vmatpush1.bf16.msra.mxu0 %v349
    %409 = vmatprep.subr.bf16.mxu0 0
    %410 = vmatpush1.bf16.msra.mxu0 %v348
    %411 = vmatprep.subr.bf16.mxu0 0
    %412 = vmatpush1.bf16.msra.mxu0 %v347
    %413 = vmatprep.subr.bf16.mxu0 0
    %414 = vmatpush1.bf16.msra.mxu0 %v346
    %415 = vmatprep.subr.bf16.mxu0 0
    %416 = vmatpush1.bf16.msra.mxu0 %v345
    %417 = vmatprep.subr.bf16.mxu0 0
    %418 = vmatpush1.bf16.msra.mxu0 %v344
    %419 = vmatprep.subr.bf16.mxu0 0
    %420 = vmatpush1.bf16.msra.mxu0 %v343
    %421 = vmatprep.subr.bf16.mxu0 0
    %422 = vmatpush2.bf16.msra.mxu0 0
    %423 = vmatprep.subr.bf16.mxu0 0
    %424 = vmatpush2.bf16.msra.mxu0 0
    %425 = vmatprep.subr.bf16.mxu0 0
    %426 = vmatpush2.bf16.msra.mxu0 0
    %427 = vmatprep.subr.bf16.mxu0 0
    %428 = vmatpush2.bf16.msra.mxu0 0
    %429 = vmatprep.subr.bf16.mxu0 0
    %430 = vmatpush2.bf16.msra.mxu0 0
    %431 = vmatprep.subr.bf16.mxu0 0
    %432 = vmatpush2.bf16.msra.mxu0 0
    %433 = vmatprep.subr.bf16.mxu0 0
    %434 = vmatpush2.bf16.msra.mxu0 0
    %435 = vmatprep.subr.bf16.mxu0 0
    %436 = vmatpush2.bf16.msra.mxu0 0
    %437 = vmatprep.mubr.bf16.mxu0 0
    %438 = vmatmul.mubr.bf16.gmra.mxu0 %v404
    %v439 = vpop.f32.mrf.mxu0
    %v440 = vadd.f32 0.0, %v439
    %v441 = vpop.f32.mrf.mxu0
    %v442 = vpop.f32.mrf.mxu0
    %v443 = vpop.f32.mrf.mxu0
    %444 = vdwg.mxu0
    %v445 = vadd.f32 %v403, %v440
    %v446 = vtanh.pop %v445
    %s447 = scalar_lea.vmem [#allocation14], 8
    %448 = vst [vmem:[%s447] sm:$0xff] %v446
    %s449 = scalar_lea.vmem [#allocation2], 16
    %v450 = vld [vmem:[%s449] sm:$0xff]
    %v451 = vpack.c.bf16 %v446, %v446
    %452 = vmatprep.subr.bf16.mxu0 0
    %453 = vmatpush1.bf16.msra.mxu0 %v350
    %454 = vmatprep.subr.bf16.mxu0 0
    %455 = vmatpush1.bf16.msra.mxu0 %v349
    %456 = vmatprep.subr.bf16.mxu0 0
    %457 = vmatpush1.bf16.msra.mxu0 %v348
    %458 = vmatprep.subr.bf16.mxu0 0
    %459 = vmatpush1.bf16.msra.mxu0 %v347
    %460 = vmatprep.subr.bf16.mxu0 0
    %461 = vmatpush1.bf16.msra.mxu0 %v346
    %462 = vmatprep.subr.bf16.mxu0 0
    %463 = vmatpush1.bf16.msra.mxu0 %v345
    %464 = vmatprep.subr.bf16.mxu0 0
    %465 = vmatpush1.bf16.msra.mxu0 %v344
    %466 = vmatprep.subr.bf16.mxu0 0
    %467 = vmatpush1.bf16.msra.mxu0 %v343
    %468 = vmatprep.subr.bf16.mxu0 0
    %469 = vmatpush2.bf16.msra.mxu0 0
    %470 = vmatprep.subr.bf16.mxu0 0
    %471 = vmatpush2.bf16.msra.mxu0 0
    %472 = vmatprep.subr.bf16.mxu0 0
    %473 = vmatpush2.bf16.msra.mxu0 0
    %474 = vmatprep.subr.bf16.mxu0 0
    %475 = vmatpush2.bf16.msra.mxu0 0
    %476 = vmatprep.subr.bf16.mxu0 0
    %477 = vmatpush2.bf16.msra.mxu0 0
    %478 = vmatprep.subr.bf16.mxu0 0
    %479 = vmatpush2.bf16.msra.mxu0 0
    %480 = vmatprep.subr.bf16.mxu0 0
    %481 = vmatpush2.bf16.msra.mxu0 0
    %482 = vmatprep.subr.bf16.mxu0 0
    %483 = vmatpush2.bf16.msra.mxu0 0
    %484 = vmatprep.mubr.bf16.mxu0 0
    %485 = vmatmul.mubr.bf16.gmra.mxu0 %v451
    %v486 = vpop.f32.mrf.mxu0
    %v487 = vadd.f32 0.0, %v486
    %v488 = vpop.f32.mrf.mxu0
    %v489 = vpop.f32.mrf.mxu0
    %v490 = vpop.f32.mrf.mxu0
    %491 = vdwg.mxu0
    %v492 = vadd.f32 %v450, %v487
    %v493 = vtanh.pop %v492
    %s494 = scalar_lea.vmem [#allocation14], 16
    %495 = vst [vmem:[%s494] sm:$0xff] %v493
    %s496 = scalar_lea.vmem [#allocation2], 24
    %v497 = vld [vmem:[%s496] sm:$0xff]
    %v498 = vpack.c.bf16 %v493, %v493
    %499 = vmatprep.subr.bf16.mxu0 0
    %500 = vmatpush1.bf16.msra.mxu0 %v350
    %501 = vmatprep.subr.bf16.mxu0 0
    %502 = vmatpush1.bf16.msra.mxu0 %v349
    %503 = vmatprep.subr.bf16.mxu0 0
    %504 = vmatpush1.bf16.msra.mxu0 %v348
    %505 = vmatprep.subr.bf16.mxu0 0
    %506 = vmatpush1.bf16.msra.mxu0 %v347
    %507 = vmatprep.subr.bf16.mxu0 0
    %508 = vmatpush1.bf16.msra.mxu0 %v346
    %509 = vmatprep.subr.bf16.mxu0 0
    %510 = vmatpush1.bf16.msra.mxu0 %v345
    %511 = vmatprep.subr.bf16.mxu0 0
    %512 = vmatpush1.bf16.msra.mxu0 %v344
    %513 = vmatprep.subr.bf16.mxu0 0
    %514 = vmatpush1.bf16.msra.mxu0 %v343
    %515 = vmatprep.subr.bf16.mxu0 0
    %516 = vmatpush2.bf16.msra.mxu0 0
    %517 = vmatprep.subr.bf16.mxu0 0
    %518 = vmatpush2.bf16.msra.mxu0 0
    %519 = vmatprep.subr.bf16.mxu0 0
    %520 = vmatpush2.bf16.msra.mxu0 0
    %521 = vmatprep.subr.bf16.mxu0 0
    %522 = vmatpush2.bf16.msra.mxu0 0
    %523 = vmatprep.subr.bf16.mxu0 0
    %524 = vmatpush2.bf16.msra.mxu0 0
    %525 = vmatprep.subr.bf16.mxu0 0
    %526 = vmatpush2.bf16.msra.mxu0 0
    %527 = vmatprep.subr.bf16.mxu0 0
    %528 = vmatpush2.bf16.msra.mxu0 0
    %529 = vmatprep.subr.bf16.mxu0 0
    %530 = vmatpush2.bf16.msra.mxu0 0
    %531 = vmatprep.mubr.bf16.mxu0 0
    %532 = vmatmul.mubr.bf16.gmra.mxu0 %v498
    %v533 = vpop.f32.mrf.mxu0
    %v534 = vadd.f32 0.0, %v533
    %v535 = vpop.f32.mrf.mxu0
    %v536 = vpop.f32.mrf.mxu0
    %v537 = vpop.f32.mrf.mxu0
    %538 = vdwg.mxu0
    %v539 = vadd.f32 %v497, %v534
    %v540 = vtanh.pop %v539
    %s541 = scalar_lea.vmem [#allocation14], 24
    %542 = vst [vmem:[%s541] sm:$0xff] %v540
    %s543 = scalar_lea.vmem [#allocation2], 32
    %v544 = vld [vmem:[%s543] sm:$0xff]
    %v545 = vpack.c.bf16 %v540, %v540
    %546 = vmatprep.subr.bf16.mxu0 0
    %547 = vmatpush1.bf16.msra.mxu0 %v350
    %548 = vmatprep.subr.bf16.mxu0 0
    %549 = vmatpush1.bf16.msra.mxu0 %v349
    %550 = vmatprep.subr.bf16.mxu0 0
    %551 = vmatpush1.bf16.msra.mxu0 %v348
    %552 = vmatprep.subr.bf16.mxu0 0
    %553 = vmatpush1.bf16.msra.mxu0 %v347
    %554 = vmatprep.subr.bf16.mxu0 0
    %555 = vmatpush1.bf16.msra.mxu0 %v346
    %556 = vmatprep.subr.bf16.mxu0 0
    %557 = vmatpush1.bf16.msra.mxu0 %v345
    %558 = vmatprep.subr.bf16.mxu0 0
    %559 = vmatpush1.bf16.msra.mxu0 %v344
    %560 = vmatprep.subr.bf16.mxu0 0
    %561 = vmatpush1.bf16.msra.mxu0 %v343
    %562 = vmatprep.subr.bf16.mxu0 0
    %563 = vmatpush2.bf16.msra.mxu0 0
    %564 = vmatprep.subr.bf16.mxu0 0
    %565 = vmatpush2.bf16.msra.mxu0 0
    %566 = vmatprep.subr.bf16.mxu0 0
    %567 = vmatpush2.bf16.msra.mxu0 0
    %568 = vmatprep.subr.bf16.mxu0 0
    %569 = vmatpush2.bf16.msra.mxu0 0
    %570 = vmatprep.subr.bf16.mxu0 0
    %571 = vmatpush2.bf16.msra.mxu0 0
    %572 = vmatprep.subr.bf16.mxu0 0
    %573 = vmatpush2.bf16.msra.mxu0 0
    %574 = vmatprep.subr.bf16.mxu0 0
    %575 = vmatpush2.bf16.msra.mxu0 0
    %576 = vmatprep.subr.bf16.mxu0 0
    %577 = vmatpush2.bf16.msra.mxu0 0
    %578 = vmatprep.mubr.bf16.mxu0 0
    %579 = vmatmul.mubr.bf16.gmra.mxu0 %v545
    %v580 = vpop.f32.mrf.mxu0
    %v581 = vadd.f32 0.0, %v580
    %v582 = vpop.f32.mrf.mxu0
    %v583 = vpop.f32.mrf.mxu0
    %v584 = vpop.f32.mrf.mxu0
    %585 = vdwg.mxu0
    %v586 = vadd.f32 %v544, %v581
    %v587 = vtanh.pop %v586
    %s588 = scalar_lea.vmem [#allocation14], 32
    %589 = vst [vmem:[%s588] sm:$0xff] %v587
    %s590 = scalar_lea.vmem [#allocation2], 40
    %v591 = vld [vmem:[%s590] sm:$0xff]
    %v592 = vpack.c.bf16 %v587, %v587
    %593 = vmatprep.subr.bf16.mxu0 0
    %594 = vmatpush1.bf16.msra.mxu0 %v350
    %595 = vmatprep.subr.bf16.mxu0 0
    %596 = vmatpush1.bf16.msra.mxu0 %v349
    %597 = vmatprep.subr.bf16.mxu0 0
    %598 = vmatpush1.bf16.msra.mxu0 %v348
    %599 = vmatprep.subr.bf16.mxu0 0
    %600 = vmatpush1.bf16.msra.mxu0 %v347
    %601 = vmatprep.subr.bf16.mxu0 0
    %602 = vmatpush1.bf16.msra.mxu0 %v346
    %603 = vmatprep.subr.bf16.mxu0 0
    %604 = vmatpush1.bf16.msra.mxu0 %v345
    %605 = vmatprep.subr.bf16.mxu0 0
    %606 = vmatpush1.bf16.msra.mxu0 %v344
    %607 = vmatprep.subr.bf16.mxu0 0
    %608 = vmatpush1.bf16.msra.mxu0 %v343
    %609 = vmatprep.subr.bf16.mxu0 0
    %610 = vmatpush2.bf16.msra.mxu0 0
    %611 = vmatprep.subr.bf16.mxu0 0
    %612 = vmatpush2.bf16.msra.mxu0 0
    %613 = vmatprep.subr.bf16.mxu0 0
    %614 = vmatpush2.bf16.msra.mxu0 0
    %615 = vmatprep.subr.bf16.mxu0 0
    %616 = vmatpush2.bf16.msra.mxu0 0
    %617 = vmatprep.subr.bf16.mxu0 0
    %618 = vmatpush2.bf16.msra.mxu0 0
    %619 = vmatprep.subr.bf16.mxu0 0
    %620 = vmatpush2.bf16.msra.mxu0 0
    %621 = vmatprep.subr.bf16.mxu0 0
    %622 = vmatpush2.bf16.msra.mxu0 0
    %623 = vmatprep.subr.bf16.mxu0 0
    %624 = vmatpush2.bf16.msra.mxu0 0
    %625 = vmatprep.mubr.bf16.mxu0 0
    %626 = vmatmul.mubr.bf16.gmra.mxu0 %v592
    %v627 = vpop.f32.mrf.mxu0
    %v628 = vadd.f32 0.0, %v627
    %v629 = vpop.f32.mrf.mxu0
    %v630 = vpop.f32.mrf.mxu0
    %v631 = vpop.f32.mrf.mxu0
    %632 = vdwg.mxu0
    %v633 = vadd.f32 %v591, %v628
    %v634 = vtanh.pop %v633
    %s635 = scalar_lea.vmem [#allocation14], 40
    %636 = vst [vmem:[%s635] sm:$0xff] %v634
    %s637 = scalar_lea.vmem [#allocation2], 48
    %v638 = vld [vmem:[%s637] sm:$0xff]
    %v639 = vpack.c.bf16 %v634, %v634
    %640 = vmatprep.subr.bf16.mxu0 0
    %641 = vmatpush1.bf16.msra.mxu0 %v350
    %642 = vmatprep.subr.bf16.mxu0 0
    %643 = vmatpush1.bf16.msra.mxu0 %v349
    %644 = vmatprep.subr.bf16.mxu0 0
    %645 = vmatpush1.bf16.msra.mxu0 %v348
    %646 = vmatprep.subr.bf16.mxu0 0
    %647 = vmatpush1.bf16.msra.mxu0 %v347
    %648 = vmatprep.subr.bf16.mxu0 0
    %649 = vmatpush1.bf16.msra.mxu0 %v346
    %650 = vmatprep.subr.bf16.mxu0 0
    %651 = vmatpush1.bf16.msra.mxu0 %v345
    %652 = vmatprep.subr.bf16.mxu0 0
    %653 = vmatpush1.bf16.msra.mxu0 %v344
    %654 = vmatprep.subr.bf16.mxu0 0
    %655 = vmatpush1.bf16.msra.mxu0 %v343
    %656 = vmatprep.subr.bf16.mxu0 0
    %657 = vmatpush2.bf16.msra.mxu0 0
    %658 = vmatprep.subr.bf16.mxu0 0
    %659 = vmatpush2.bf16.msra.mxu0 0
    %660 = vmatprep.subr.bf16.mxu0 0
    %661 = vmatpush2.bf16.msra.mxu0 0
    %662 = vmatprep.subr.bf16.mxu0 0
    %663 = vmatpush2.bf16.msra.mxu0 0
    %664 = vmatprep.subr.bf16.mxu0 0
    %665 = vmatpush2.bf16.msra.mxu0 0
    %666 = vmatprep.subr.bf16.mxu0 0
    %667 = vmatpush2.bf16.msra.mxu0 0
    %668 = vmatprep.subr.bf16.mxu0 0
    %669 = vmatpush2.bf16.msra.mxu0 0
    %670 = vmatprep.subr.bf16.mxu0 0
    %671 = vmatpush2.bf16.msra.mxu0 0
    %672 = vmatprep.mubr.bf16.mxu0 0
    %673 = vmatmul.mubr.bf16.gmra.mxu0 %v639
    %v674 = vpop.f32.mrf.mxu0
    %v675 = vadd.f32 0.0, %v674
    %v676 = vpop.f32.mrf.mxu0
    %v677 = vpop.f32.mrf.mxu0
    %v678 = vpop.f32.mrf.mxu0
    %679 = vdwg.mxu0
    %v680 = vadd.f32 %v638, %v675
    %v681 = vtanh.pop %v680
    %s682 = scalar_lea.vmem [#allocation14], 48
    %683 = vst [vmem:[%s682] sm:$0xff] %v681
    %s684 = scalar_lea.vmem [#allocation2], 56
    %v685 = vld [vmem:[%s684] sm:$0xff]
    %v686 = vpack.c.bf16 %v681, %v681
    %687 = vmatprep.subr.bf16.mxu0 0
    %688 = vmatpush1.bf16.msra.mxu0 %v350
    %689 = vmatprep.subr.bf16.mxu0 0
    %690 = vmatpush1.bf16.msra.mxu0 %v349
    %691 = vmatprep.subr.bf16.mxu0 0
    %692 = vmatpush1.bf16.msra.mxu0 %v348
    %693 = vmatprep.subr.bf16.mxu0 0
    %694 = vmatpush1.bf16.msra.mxu0 %v347
    %695 = vmatprep.subr.bf16.mxu0 0
    %696 = vmatpush1.bf16.msra.mxu0 %v346
    %697 = vmatprep.subr.bf16.mxu0 0
    %698 = vmatpush1.bf16.msra.mxu0 %v345
    %699 = vmatprep.subr.bf16.mxu0 0
    %700 = vmatpush1.bf16.msra.mxu0 %v344
    %701 = vmatprep.subr.bf16.mxu0 0
    %702 = vmatpush1.bf16.msra.mxu0 %v343
    %703 = vmatprep.subr.bf16.mxu0 0
    %704 = vmatpush2.bf16.msra.mxu0 0
    %705 = vmatprep.subr.bf16.mxu0 0
    %706 = vmatpush2.bf16.msra.mxu0 0
    %707 = vmatprep.subr.bf16.mxu0 0
    %708 = vmatpush2.bf16.msra.mxu0 0
    %709 = vmatprep.subr.bf16.mxu0 0
    %710 = vmatpush2.bf16.msra.mxu0 0
    %711 = vmatprep.subr.bf16.mxu0 0
    %712 = vmatpush2.bf16.msra.mxu0 0
    %713 = vmatprep.subr.bf16.mxu0 0
    %714 = vmatpush2.bf16.msra.mxu0 0
    %715 = vmatprep.subr.bf16.mxu0 0
    %716 = vmatpush2.bf16.msra.mxu0 0
    %717 = vmatprep.subr.bf16.mxu0 0
    %718 = vmatpush2.bf16.msra.mxu0 0
    %719 = vmatprep.mubr.bf16.mxu0 0
    %720 = vmatmul.mubr.bf16.gmra.mxu0 %v686
    %v721 = vpop.f32.mrf.mxu0
    %v722 = vadd.f32 0.0, %v721
    %v723 = vpop.f32.mrf.mxu0
    %v724 = vpop.f32.mrf.mxu0
    %v725 = vpop.f32.mrf.mxu0
    %726 = vdwg.mxu0
    %v727 = vadd.f32 %v685, %v722
    %v728 = vtanh.pop %v727
    %s729 = scalar_lea.vmem [#allocation14], 56
    %730 = vst [vmem:[%s729] sm:$0xff] %v728
    %731 = vst [vmem:[#allocation15] sm:$0xff] %v728
    %v732 = vld [vmem:[#allocation9] sm:$0xf]
    %v733 = vld [vmem:[#allocation9 + $0x4] sm:$0xf]
    %v734 = vld [vmem:[#allocation9 + $0x8] sm:$0xf]
    %v735 = vld [vmem:[#allocation9 + $0xc] sm:$0xf]
    %v736 = vld [vmem:[#allocation9 + $0x10] sm:$0xf]
    %v737 = vld [vmem:[#allocation9 + $0x14] sm:$0xf]
    %v738 = vld [vmem:[#allocation9 + $0x18] sm:$0xf]
    %v739 = vld [vmem:[#allocation9 + $0x1c] sm:$0xf]
    %v740 = vld [vmem:[#allocation9 + $0x20] sm:$0xf]
    %v741 = vld [vmem:[#allocation9 + $0x24] sm:$0xf]
    %v742 = vld [vmem:[#allocation9 + $0x28] sm:$0xf]
    %v743 = vld [vmem:[#allocation9 + $0x2c] sm:$0xf]
    %v744 = vld [vmem:[#allocation9 + $0x30] sm:$0xf]
    %v745 = vld [vmem:[#allocation9 + $0x34] sm:$0xf]
    %v746 = vld [vmem:[#allocation9 + $0x38] sm:$0xf]
    %v747 = vld [vmem:[#allocation9 + $0x3c] sm:$0xf]
    %v748 = vld [vmem:[%s7] sm:$0x1]
    %v749 = vld [vmem:[#allocation14] sm:$0xff]
    %v750 = vld [vmem:[#allocation14 + $0x8] sm:$0xff]
    %v751 = vld [vmem:[#allocation14 + $0x10] sm:$0xff]
    %v752 = vld [vmem:[#allocation14 + $0x18] sm:$0xff]
    %v753 = vld [vmem:[#allocation14 + $0x20] sm:$0xff]
    %v754 = vld [vmem:[#allocation14 + $0x28] sm:$0xff]
    %v755 = vld [vmem:[#allocation14 + $0x30] sm:$0xff]
    %v756 = vld [vmem:[#allocation14 + $0x38] sm:$0xff]
    %v757 = vpack.c.bf16 %v750, %v749
    %v758 = vpack.c.bf16 %v752, %v751
    %v759 = vpack.c.bf16 %v754, %v753
    %v760 = vpack.c.bf16 %v756, %v755
    %v762 = vlaneseq
    %v763 = vshrl.u32 %v762, 7
    %v764 = vsub.s32 0, %v763
    %v765 = vrot.slane %v748, %v764
    %v783 = vunpack.c.l.b16 %v732
    %v784 = vunpack.c.l.b16 %v733
    %v785 = vunpack.c.l.b16 %v734
    %v786 = vunpack.c.l.b16 %v735
    %v787 = vunpack.c.l.b16 %v736
    %v788 = vunpack.c.l.b16 %v737
    %v789 = vunpack.c.l.b16 %v738
    %v790 = vunpack.c.l.b16 %v739
    %v791 = vunpack.c.l.b16 %v740
    %v792 = vunpack.c.l.b16 %v741
    %v793 = vunpack.c.l.b16 %v742
    %v794 = vunpack.c.l.b16 %v743
    %v795 = vunpack.c.l.b16 %v744
    %v796 = vunpack.c.l.b16 %v745
    %v797 = vunpack.c.l.b16 %v746
    %v798 = vunpack.c.l.b16 %v747
    %v799 = vpack.c.b16 %v784, %v783
    %v800 = vpack.c.b16 %v786, %v785
    %v801 = vpack.c.b16 %v788, %v787
    %v802 = vpack.c.b16 %v790, %v789
    %v803 = vpack.c.b16 %v792, %v791
    %v804 = vpack.c.b16 %v794, %v793
    %v805 = vpack.c.b16 %v796, %v795
    %v806 = vpack.c.b16 %v798, %v797
    %815 = vmatprep.subr.bf16.mxu0 0
    %816 = vmatpush1.bf16.msra.mxu0 %v806
    %817 = vmatprep.subr.bf16.mxu0 0
    %818 = vmatpush1.bf16.msra.mxu0 %v805
    %819 = vmatprep.subr.bf16.mxu0 0
    %820 = vmatpush1.bf16.msra.mxu0 %v804
    %821 = vmatprep.subr.bf16.mxu0 0
    %822 = vmatpush1.bf16.msra.mxu0 %v803
    %823 = vmatprep.subr.bf16.mxu0 0
    %824 = vmatpush1.bf16.msra.mxu0 %v802
    %825 = vmatprep.subr.bf16.mxu0 0
    %826 = vmatpush1.bf16.msra.mxu0 %v801
    %827 = vmatprep.subr.bf16.mxu0 0
    %828 = vmatpush1.bf16.msra.mxu0 %v800
    %829 = vmatprep.subr.bf16.mxu0 0
    %830 = vmatpush1.bf16.msra.mxu0 %v799
    %831 = vmatprep.subr.bf16.mxu0 0
    %832 = vmatpush2.bf16.msra.mxu0 0
    %833 = vmatprep.subr.bf16.mxu0 0
    %834 = vmatpush2.bf16.msra.mxu0 0
    %835 = vmatprep.subr.bf16.mxu0 0
    %836 = vmatpush2.bf16.msra.mxu0 0
    %837 = vmatprep.subr.bf16.mxu0 0
    %838 = vmatpush2.bf16.msra.mxu0 0
    %839 = vmatprep.subr.bf16.mxu0 0
    %840 = vmatpush2.bf16.msra.mxu0 0
    %841 = vmatprep.subr.bf16.mxu0 0
    %842 = vmatpush2.bf16.msra.mxu0 0
    %843 = vmatprep.subr.bf16.mxu0 0
    %844 = vmatpush2.bf16.msra.mxu0 0
    %845 = vmatprep.subr.bf16.mxu0 0
    %846 = vmatpush2.bf16.msra.mxu0 0
    %847 = vmatprep.mubr.bf16.mxu0 0
    %848 = vmatmul.mubr.bf16.gmra.mxu0 %v757
    %v849 = vpop.f32.mrf.mxu0
    %v850 = vadd.f32 %v765, %v849
    %v851 = vpop.f32.mrf.mxu0
    %v852 = vpop.f32.mrf.mxu0
    %v853 = vadd.f32 %v765, %v852
    %v854 = vpop.f32.mrf.mxu0
    %855 = vmatprep.mubr.bf16.mxu0 0
    %856 = vmatmul.mubr.bf16.gmra.mxu0 %v758
    %v857 = vpop.f32.mrf.mxu0
    %v858 = vadd.f32 %v765, %v857
    %v859 = vpop.f32.mrf.mxu0
    %v860 = vpop.f32.mrf.mxu0
    %v861 = vadd.f32 %v765, %v860
    %v862 = vpop.f32.mrf.mxu0
    %863 = vmatprep.mubr.bf16.mxu0 0
    %864 = vmatmul.mubr.bf16.gmra.mxu0 %v759
    %v865 = vpop.f32.mrf.mxu0
    %v866 = vadd.f32 %v765, %v865
    %v867 = vpop.f32.mrf.mxu0
    %v868 = vpop.f32.mrf.mxu0
    %v869 = vadd.f32 %v765, %v868
    %v870 = vpop.f32.mrf.mxu0
    %871 = vmatprep.mubr.bf16.mxu0 0
    %872 = vmatmul.mubr.bf16.gmra.mxu0 %v760
    %v873 = vpop.f32.mrf.mxu0
    %v874 = vadd.f32 %v765, %v873
    %v875 = vpop.f32.mrf.mxu0
    %v876 = vpop.f32.mrf.mxu0
    %v877 = vadd.f32 %v765, %v876
    %v878 = vpop.f32.mrf.mxu0
    %879 = vdwg.mxu0
    %880 = vst [vmem:[#allocation2] sm:$0xff] %v850
    %881 = vst [vmem:[#allocation2 + $0x8] sm:$0xff] %v853
    %882 = vst [vmem:[#allocation2 + $0x10] sm:$0xff] %v858
    %883 = vst [vmem:[#allocation2 + $0x18] sm:$0xff] %v861
    %884 = vst [vmem:[#allocation2 + $0x20] sm:$0xff] %v866
    %885 = vst [vmem:[#allocation2 + $0x28] sm:$0xff] %v869
    %886 = vst [vmem:[#allocation2 + $0x30] sm:$0xff] %v874
    %887 = vst [vmem:[#allocation2 + $0x38] sm:$0xff] %v877
    %v888 = vld [vmem:[#allocation12] sm:$0xf]
    %v889 = vld [vmem:[#allocation12 + $0x4] sm:$0xf]
    %v890 = vld [vmem:[#allocation12 + $0x8] sm:$0xf]
    %v891 = vld [vmem:[#allocation12 + $0xc] sm:$0xf]
    %v892 = vld [vmem:[#allocation12 + $0x10] sm:$0xf]
    %v893 = vld [vmem:[#allocation12 + $0x14] sm:$0xf]
    %v894 = vld [vmem:[#allocation12 + $0x18] sm:$0xf]
    %v895 = vld [vmem:[#allocation12 + $0x1c] sm:$0xf]
    %v896 = vld [vmem:[#allocation12 + $0x20] sm:$0xf]
    %v897 = vld [vmem:[#allocation12 + $0x24] sm:$0xf]
    %v898 = vld [vmem:[#allocation12 + $0x28] sm:$0xf]
    %v899 = vld [vmem:[#allocation12 + $0x2c] sm:$0xf]
    %v900 = vld [vmem:[#allocation12 + $0x30] sm:$0xf]
    %v901 = vld [vmem:[#allocation12 + $0x34] sm:$0xf]
    %v902 = vld [vmem:[#allocation12 + $0x38] sm:$0xf]
    %v903 = vld [vmem:[#allocation12 + $0x3c] sm:$0xf]
    %s904 = scalar_lea.vmem [#allocation6], 8
    %v905 = vld [vmem:[%s904] sm:$0xff]
    %v906 = vld [vmem:[#allocation2] sm:$0xff]
    %v907 = vpack.c.bf16 %v905, %v905
    %v924 = vunpack.c.l.b16 %v888
    %v925 = vunpack.c.l.b16 %v889
    %v926 = vunpack.c.l.b16 %v890
    %v927 = vunpack.c.l.b16 %v891
    %v928 = vunpack.c.l.b16 %v892
    %v929 = vunpack.c.l.b16 %v893
    %v930 = vunpack.c.l.b16 %v894
    %v931 = vunpack.c.l.b16 %v895
    %v932 = vunpack.c.l.b16 %v896
    %v933 = vunpack.c.l.b16 %v897
    %v934 = vunpack.c.l.b16 %v898
    %v935 = vunpack.c.l.b16 %v899
    %v936 = vunpack.c.l.b16 %v900
    %v937 = vunpack.c.l.b16 %v901
    %v938 = vunpack.c.l.b16 %v902
    %v939 = vunpack.c.l.b16 %v903
    %v940 = vpack.c.b16 %v925, %v924
    %v941 = vpack.c.b16 %v927, %v926
    %v942 = vpack.c.b16 %v929, %v928
    %v943 = vpack.c.b16 %v931, %v930
    %v944 = vpack.c.b16 %v933, %v932
    %v945 = vpack.c.b16 %v935, %v934
    %v946 = vpack.c.b16 %v937, %v936
    %v947 = vpack.c.b16 %v939, %v938
    %956 = vmatprep.subr.bf16.mxu0 0
    %957 = vmatpush1.bf16.msra.mxu0 %v947
    %958 = vmatprep.subr.bf16.mxu0 0
    %959 = vmatpush1.bf16.msra.mxu0 %v946
    %960 = vmatprep.subr.bf16.mxu0 0
    %961 = vmatpush1.bf16.msra.mxu0 %v945
    %962 = vmatprep.subr.bf16.mxu0 0
    %963 = vmatpush1.bf16.msra.mxu0 %v944
    %964 = vmatprep.subr.bf16.mxu0 0
    %965 = vmatpush1.bf16.msra.mxu0 %v943
    %966 = vmatprep.subr.bf16.mxu0 0
    %967 = vmatpush1.bf16.msra.mxu0 %v942
    %968 = vmatprep.subr.bf16.mxu0 0
    %969 = vmatpush1.bf16.msra.mxu0 %v941
    %970 = vmatprep.subr.bf16.mxu0 0
    %971 = vmatpush1.bf16.msra.mxu0 %v940
    %972 = vmatprep.subr.bf16.mxu0 0
    %973 = vmatpush2.bf16.msra.mxu0 0
    %974 = vmatprep.subr.bf16.mxu0 0
    %975 = vmatpush2.bf16.msra.mxu0 0
    %976 = vmatprep.subr.bf16.mxu0 0
    %977 = vmatpush2.bf16.msra.mxu0 0
    %978 = vmatprep.subr.bf16.mxu0 0
    %979 = vmatpush2.bf16.msra.mxu0 0
    %980 = vmatprep.subr.bf16.mxu0 0
    %981 = vmatpush2.bf16.msra.mxu0 0
    %982 = vmatprep.subr.bf16.mxu0 0
    %983 = vmatpush2.bf16.msra.mxu0 0
    %984 = vmatprep.subr.bf16.mxu0 0
    %985 = vmatpush2.bf16.msra.mxu0 0
    %986 = vmatprep.subr.bf16.mxu0 0
    %987 = vmatpush2.bf16.msra.mxu0 0
    %988 = vmatprep.mubr.bf16.mxu0 0
    %989 = vmatmul.mubr.bf16.gmra.mxu0 %v907
    %v990 = vpop.f32.mrf.mxu0
    %v991 = vadd.f32 0.0, %v990
    %v992 = vpop.f32.mrf.mxu0
    %v993 = vpop.f32.mrf.mxu0
    %v994 = vpop.f32.mrf.mxu0
    %995 = vdwg.mxu0
    %v996 = vadd.f32 %v906, %v991
    %v997 = vtanh.pop %v996
    %998 = vst [vmem:[#allocation14] sm:$0xff] %v997
    %v999 = vld [vmem:[%s402] sm:$0xff]
    %v1000 = vpack.c.bf16 %v997, %v997
    %1001 = vmatprep.subr.bf16.mxu0 0
    %1002 = vmatpush1.bf16.msra.mxu0 %v947
    %1003 = vmatprep.subr.bf16.mxu0 0
    %1004 = vmatpush1.bf16.msra.mxu0 %v946
    %1005 = vmatprep.subr.bf16.mxu0 0
    %1006 = vmatpush1.bf16.msra.mxu0 %v945
    %1007 = vmatprep.subr.bf16.mxu0 0
    %1008 = vmatpush1.bf16.msra.mxu0 %v944
    %1009 = vmatprep.subr.bf16.mxu0 0
    %1010 = vmatpush1.bf16.msra.mxu0 %v943
    %1011 = vmatprep.subr.bf16.mxu0 0
    %1012 = vmatpush1.bf16.msra.mxu0 %v942
    %1013 = vmatprep.subr.bf16.mxu0 0
    %1014 = vmatpush1.bf16.msra.mxu0 %v941
    %1015 = vmatprep.subr.bf16.mxu0 0
    %1016 = vmatpush1.bf16.msra.mxu0 %v940
    %1017 = vmatprep.subr.bf16.mxu0 0
    %1018 = vmatpush2.bf16.msra.mxu0 0
    %1019 = vmatprep.subr.bf16.mxu0 0
    %1020 = vmatpush2.bf16.msra.mxu0 0
    %1021 = vmatprep.subr.bf16.mxu0 0
    %1022 = vmatpush2.bf16.msra.mxu0 0
    %1023 = vmatprep.subr.bf16.mxu0 0
    %1024 = vmatpush2.bf16.msra.mxu0 0
    %1025 = vmatprep.subr.bf16.mxu0 0
    %1026 = vmatpush2.bf16.msra.mxu0 0
    %1027 = vmatprep.subr.bf16.mxu0 0
    %1028 = vmatpush2.bf16.msra.mxu0 0
    %1029 = vmatprep.subr.bf16.mxu0 0
    %1030 = vmatpush2.bf16.msra.mxu0 0
    %1031 = vmatprep.subr.bf16.mxu0 0
    %1032 = vmatpush2.bf16.msra.mxu0 0
    %1033 = vmatprep.mubr.bf16.mxu0 0
    %1034 = vmatmul.mubr.bf16.gmra.mxu0 %v1000
    %v1035 = vpop.f32.mrf.mxu0
    %v1036 = vadd.f32 0.0, %v1035
    %v1037 = vpop.f32.mrf.mxu0
    %v1038 = vpop.f32.mrf.mxu0
    %v1039 = vpop.f32.mrf.mxu0
    %1040 = vdwg.mxu0
    %v1041 = vadd.f32 %v999, %v1036
    %v1042 = vtanh.pop %v1041
    %1043 = vst [vmem:[%s447] sm:$0xff] %v1042
    %v1044 = vld [vmem:[%s449] sm:$0xff]
    %v1045 = vpack.c.bf16 %v1042, %v1042
    %1046 = vmatprep.subr.bf16.mxu0 0
    %1047 = vmatpush1.bf16.msra.mxu0 %v947
    %1048 = vmatprep.subr.bf16.mxu0 0
    %1049 = vmatpush1.bf16.msra.mxu0 %v946
    %1050 = vmatprep.subr.bf16.mxu0 0
    %1051 = vmatpush1.bf16.msra.mxu0 %v945
    %1052 = vmatprep.subr.bf16.mxu0 0
    %1053 = vmatpush1.bf16.msra.mxu0 %v944
    %1054 = vmatprep.subr.bf16.mxu0 0
    %1055 = vmatpush1.bf16.msra.mxu0 %v943
    %1056 = vmatprep.subr.bf16.mxu0 0
    %1057 = vmatpush1.bf16.msra.mxu0 %v942
    %1058 = vmatprep.subr.bf16.mxu0 0
    %1059 = vmatpush1.bf16.msra.mxu0 %v941
    %1060 = vmatprep.subr.bf16.mxu0 0
    %1061 = vmatpush1.bf16.msra.mxu0 %v940
    %1062 = vmatprep.subr.bf16.mxu0 0
    %1063 = vmatpush2.bf16.msra.mxu0 0
    %1064 = vmatprep.subr.bf16.mxu0 0
    %1065 = vmatpush2.bf16.msra.mxu0 0
    %1066 = vmatprep.subr.bf16.mxu0 0
    %1067 = vmatpush2.bf16.msra.mxu0 0
    %1068 = vmatprep.subr.bf16.mxu0 0
    %1069 = vmatpush2.bf16.msra.mxu0 0
    %1070 = vmatprep.subr.bf16.mxu0 0
    %1071 = vmatpush2.bf16.msra.mxu0 0
    %1072 = vmatprep.subr.bf16.mxu0 0
    %1073 = vmatpush2.bf16.msra.mxu0 0
    %1074 = vmatprep.subr.bf16.mxu0 0
    %1075 = vmatpush2.bf16.msra.mxu0 0
    %1076 = vmatprep.subr.bf16.mxu0 0
    %1077 = vmatpush2.bf16.msra.mxu0 0
    %1078 = vmatprep.mubr.bf16.mxu0 0
    %1079 = vmatmul.mubr.bf16.gmra.mxu0 %v1045
    %v1080 = vpop.f32.mrf.mxu0
    %v1081 = vadd.f32 0.0, %v1080
    %v1082 = vpop.f32.mrf.mxu0
    %v1083 = vpop.f32.mrf.mxu0
    %v1084 = vpop.f32.mrf.mxu0
    %1085 = vdwg.mxu0
    %v1086 = vadd.f32 %v1044, %v1081
    %v1087 = vtanh.pop %v1086
    %1088 = vst [vmem:[%s494] sm:$0xff] %v1087
    %v1089 = vld [vmem:[%s496] sm:$0xff]
    %v1090 = vpack.c.bf16 %v1087, %v1087
    %1091 = vmatprep.subr.bf16.mxu0 0
    %1092 = vmatpush1.bf16.msra.mxu0 %v947
    %1093 = vmatprep.subr.bf16.mxu0 0
    %1094 = vmatpush1.bf16.msra.mxu0 %v946
    %1095 = vmatprep.subr.bf16.mxu0 0
    %1096 = vmatpush1.bf16.msra.mxu0 %v945
    %1097 = vmatprep.subr.bf16.mxu0 0
    %1098 = vmatpush1.bf16.msra.mxu0 %v944
    %1099 = vmatprep.subr.bf16.mxu0 0
    %1100 = vmatpush1.bf16.msra.mxu0 %v943
    %1101 = vmatprep.subr.bf16.mxu0 0
    %1102 = vmatpush1.bf16.msra.mxu0 %v942
    %1103 = vmatprep.subr.bf16.mxu0 0
    %1104 = vmatpush1.bf16.msra.mxu0 %v941
    %1105 = vmatprep.subr.bf16.mxu0 0
    %1106 = vmatpush1.bf16.msra.mxu0 %v940
    %1107 = vmatprep.subr.bf16.mxu0 0
    %1108 = vmatpush2.bf16.msra.mxu0 0
    %1109 = vmatprep.subr.bf16.mxu0 0
    %1110 = vmatpush2.bf16.msra.mxu0 0
    %1111 = vmatprep.subr.bf16.mxu0 0
    %1112 = vmatpush2.bf16.msra.mxu0 0
    %1113 = vmatprep.subr.bf16.mxu0 0
    %1114 = vmatpush2.bf16.msra.mxu0 0
    %1115 = vmatprep.subr.bf16.mxu0 0
    %1116 = vmatpush2.bf16.msra.mxu0 0
    %1117 = vmatprep.subr.bf16.mxu0 0
    %1118 = vmatpush2.bf16.msra.mxu0 0
    %1119 = vmatprep.subr.bf16.mxu0 0
    %1120 = vmatpush2.bf16.msra.mxu0 0
    %1121 = vmatprep.subr.bf16.mxu0 0
    %1122 = vmatpush2.bf16.msra.mxu0 0
    %1123 = vmatprep.mubr.bf16.mxu0 0
    %1124 = vmatmul.mubr.bf16.gmra.mxu0 %v1090
    %v1125 = vpop.f32.mrf.mxu0
    %v1126 = vadd.f32 0.0, %v1125
    %v1127 = vpop.f32.mrf.mxu0
    %v1128 = vpop.f32.mrf.mxu0
    %v1129 = vpop.f32.mrf.mxu0
    %1130 = vdwg.mxu0
    %v1131 = vadd.f32 %v1089, %v1126
    %v1132 = vtanh.pop %v1131
    %1133 = vst [vmem:[%s541] sm:$0xff] %v1132
    %v1134 = vld [vmem:[%s543] sm:$0xff]
    %v1135 = vpack.c.bf16 %v1132, %v1132
    %1136 = vmatprep.subr.bf16.mxu0 0
    %1137 = vmatpush1.bf16.msra.mxu0 %v947
    %1138 = vmatprep.subr.bf16.mxu0 0
    %1139 = vmatpush1.bf16.msra.mxu0 %v946
    %1140 = vmatprep.subr.bf16.mxu0 0
    %1141 = vmatpush1.bf16.msra.mxu0 %v945
    %1142 = vmatprep.subr.bf16.mxu0 0
    %1143 = vmatpush1.bf16.msra.mxu0 %v944
    %1144 = vmatprep.subr.bf16.mxu0 0
    %1145 = vmatpush1.bf16.msra.mxu0 %v943
    %1146 = vmatprep.subr.bf16.mxu0 0
    %1147 = vmatpush1.bf16.msra.mxu0 %v942
    %1148 = vmatprep.subr.bf16.mxu0 0
    %1149 = vmatpush1.bf16.msra.mxu0 %v941
    %1150 = vmatprep.subr.bf16.mxu0 0
    %1151 = vmatpush1.bf16.msra.mxu0 %v940
    %1152 = vmatprep.subr.bf16.mxu0 0
    %1153 = vmatpush2.bf16.msra.mxu0 0
    %1154 = vmatprep.subr.bf16.mxu0 0
    %1155 = vmatpush2.bf16.msra.mxu0 0
    %1156 = vmatprep.subr.bf16.mxu0 0
    %1157 = vmatpush2.bf16.msra.mxu0 0
    %1158 = vmatprep.subr.bf16.mxu0 0
    %1159 = vmatpush2.bf16.msra.mxu0 0
    %1160 = vmatprep.subr.bf16.mxu0 0
    %1161 = vmatpush2.bf16.msra.mxu0 0
    %1162 = vmatprep.subr.bf16.mxu0 0
    %1163 = vmatpush2.bf16.msra.mxu0 0
    %1164 = vmatprep.subr.bf16.mxu0 0
    %1165 = vmatpush2.bf16.msra.mxu0 0
    %1166 = vmatprep.subr.bf16.mxu0 0
    %1167 = vmatpush2.bf16.msra.mxu0 0
    %1168 = vmatprep.mubr.bf16.mxu0 0
    %1169 = vmatmul.mubr.bf16.gmra.mxu0 %v1135
    %v1170 = vpop.f32.mrf.mxu0
    %v1171 = vadd.f32 0.0, %v1170
    %v1172 = vpop.f32.mrf.mxu0
    %v1173 = vpop.f32.mrf.mxu0
    %v1174 = vpop.f32.mrf.mxu0
    %1175 = vdwg.mxu0
    %v1176 = vadd.f32 %v1134, %v1171
    %v1177 = vtanh.pop %v1176
    %1178 = vst [vmem:[%s588] sm:$0xff] %v1177
    %v1179 = vld [vmem:[%s590] sm:$0xff]
    %v1180 = vpack.c.bf16 %v1177, %v1177
    %1181 = vmatprep.subr.bf16.mxu0 0
    %1182 = vmatpush1.bf16.msra.mxu0 %v947
    %1183 = vmatprep.subr.bf16.mxu0 0
    %1184 = vmatpush1.bf16.msra.mxu0 %v946
    %1185 = vmatprep.subr.bf16.mxu0 0
    %1186 = vmatpush1.bf16.msra.mxu0 %v945
    %1187 = vmatprep.subr.bf16.mxu0 0
    %1188 = vmatpush1.bf16.msra.mxu0 %v944
    %1189 = vmatprep.subr.bf16.mxu0 0
    %1190 = vmatpush1.bf16.msra.mxu0 %v943
    %1191 = vmatprep.subr.bf16.mxu0 0
    %1192 = vmatpush1.bf16.msra.mxu0 %v942
    %1193 = vmatprep.subr.bf16.mxu0 0
    %1194 = vmatpush1.bf16.msra.mxu0 %v941
    %1195 = vmatprep.subr.bf16.mxu0 0
    %1196 = vmatpush1.bf16.msra.mxu0 %v940
    %1197 = vmatprep.subr.bf16.mxu0 0
    %1198 = vmatpush2.bf16.msra.mxu0 0
    %1199 = vmatprep.subr.bf16.mxu0 0
    %1200 = vmatpush2.bf16.msra.mxu0 0
    %1201 = vmatprep.subr.bf16.mxu0 0
    %1202 = vmatpush2.bf16.msra.mxu0 0
    %1203 = vmatprep.subr.bf16.mxu0 0
    %1204 = vmatpush2.bf16.msra.mxu0 0
    %1205 = vmatprep.subr.bf16.mxu0 0
    %1206 = vmatpush2.bf16.msra.mxu0 0
    %1207 = vmatprep.subr.bf16.mxu0 0
    %1208 = vmatpush2.bf16.msra.mxu0 0
    %1209 = vmatprep.subr.bf16.mxu0 0
    %1210 = vmatpush2.bf16.msra.mxu0 0
    %1211 = vmatprep.subr.bf16.mxu0 0
    %1212 = vmatpush2.bf16.msra.mxu0 0
    %1213 = vmatprep.mubr.bf16.mxu0 0
    %1214 = vmatmul.mubr.bf16.gmra.mxu0 %v1180
    %v1215 = vpop.f32.mrf.mxu0
    %v1216 = vadd.f32 0.0, %v1215
    %v1217 = vpop.f32.mrf.mxu0
    %v1218 = vpop.f32.mrf.mxu0
    %v1219 = vpop.f32.mrf.mxu0
    %1220 = vdwg.mxu0
    %v1221 = vadd.f32 %v1179, %v1216
    %v1222 = vtanh.pop %v1221
    %1223 = vst [vmem:[%s635] sm:$0xff] %v1222
    %v1224 = vld [vmem:[%s637] sm:$0xff]
    %v1225 = vpack.c.bf16 %v1222, %v1222
    %1226 = vmatprep.subr.bf16.mxu0 0
    %1227 = vmatpush1.bf16.msra.mxu0 %v947
    %1228 = vmatprep.subr.bf16.mxu0 0
    %1229 = vmatpush1.bf16.msra.mxu0 %v946
    %1230 = vmatprep.subr.bf16.mxu0 0
    %1231 = vmatpush1.bf16.msra.mxu0 %v945
    %1232 = vmatprep.subr.bf16.mxu0 0
    %1233 = vmatpush1.bf16.msra.mxu0 %v944
    %1234 = vmatprep.subr.bf16.mxu0 0
    %1235 = vmatpush1.bf16.msra.mxu0 %v943
    %1236 = vmatprep.subr.bf16.mxu0 0
    %1237 = vmatpush1.bf16.msra.mxu0 %v942
    %1238 = vmatprep.subr.bf16.mxu0 0
    %1239 = vmatpush1.bf16.msra.mxu0 %v941
    %1240 = vmatprep.subr.bf16.mxu0 0
    %1241 = vmatpush1.bf16.msra.mxu0 %v940
    %1242 = vmatprep.subr.bf16.mxu0 0
    %1243 = vmatpush2.bf16.msra.mxu0 0
    %1244 = vmatprep.subr.bf16.mxu0 0
    %1245 = vmatpush2.bf16.msra.mxu0 0
    %1246 = vmatprep.subr.bf16.mxu0 0
    %1247 = vmatpush2.bf16.msra.mxu0 0
    %1248 = vmatprep.subr.bf16.mxu0 0
    %1249 = vmatpush2.bf16.msra.mxu0 0
    %1250 = vmatprep.subr.bf16.mxu0 0
    %1251 = vmatpush2.bf16.msra.mxu0 0
    %1252 = vmatprep.subr.bf16.mxu0 0
    %1253 = vmatpush2.bf16.msra.mxu0 0
    %1254 = vmatprep.subr.bf16.mxu0 0
    %1255 = vmatpush2.bf16.msra.mxu0 0
    %1256 = vmatprep.subr.bf16.mxu0 0
    %1257 = vmatpush2.bf16.msra.mxu0 0
    %1258 = vmatprep.mubr.bf16.mxu0 0
    %1259 = vmatmul.mubr.bf16.gmra.mxu0 %v1225
    %v1260 = vpop.f32.mrf.mxu0
    %v1261 = vadd.f32 0.0, %v1260
    %v1262 = vpop.f32.mrf.mxu0
    %v1263 = vpop.f32.mrf.mxu0
    %v1264 = vpop.f32.mrf.mxu0
    %1265 = vdwg.mxu0
    %v1266 = vadd.f32 %v1224, %v1261
    %v1267 = vtanh.pop %v1266
    %1268 = vst [vmem:[%s682] sm:$0xff] %v1267
    %v1269 = vld [vmem:[%s684] sm:$0xff]
    %v1270 = vpack.c.bf16 %v1267, %v1267
    %1271 = vmatprep.subr.bf16.mxu0 0
    %1272 = vmatpush1.bf16.msra.mxu0 %v947
    %1273 = vmatprep.subr.bf16.mxu0 0
    %1274 = vmatpush1.bf16.msra.mxu0 %v946
    %1275 = vmatprep.subr.bf16.mxu0 0
    %1276 = vmatpush1.bf16.msra.mxu0 %v945
    %1277 = vmatprep.subr.bf16.mxu0 0
    %1278 = vmatpush1.bf16.msra.mxu0 %v944
    %1279 = vmatprep.subr.bf16.mxu0 0
    %1280 = vmatpush1.bf16.msra.mxu0 %v943
    %1281 = vmatprep.subr.bf16.mxu0 0
    %1282 = vmatpush1.bf16.msra.mxu0 %v942
    %1283 = vmatprep.subr.bf16.mxu0 0
    %1284 = vmatpush1.bf16.msra.mxu0 %v941
    %1285 = vmatprep.subr.bf16.mxu0 0
    %1286 = vmatpush1.bf16.msra.mxu0 %v940
    %1287 = vmatprep.subr.bf16.mxu0 0
    %1288 = vmatpush2.bf16.msra.mxu0 0
    %1289 = vmatprep.subr.bf16.mxu0 0
    %1290 = vmatpush2.bf16.msra.mxu0 0
    %1291 = vmatprep.subr.bf16.mxu0 0
    %1292 = vmatpush2.bf16.msra.mxu0 0
    %1293 = vmatprep.subr.bf16.mxu0 0
    %1294 = vmatpush2.bf16.msra.mxu0 0
    %1295 = vmatprep.subr.bf16.mxu0 0
    %1296 = vmatpush2.bf16.msra.mxu0 0
    %1297 = vmatprep.subr.bf16.mxu0 0
    %1298 = vmatpush2.bf16.msra.mxu0 0
    %1299 = vmatprep.subr.bf16.mxu0 0
    %1300 = vmatpush2.bf16.msra.mxu0 0
    %1301 = vmatprep.subr.bf16.mxu0 0
    %1302 = vmatpush2.bf16.msra.mxu0 0
    %1303 = vmatprep.mubr.bf16.mxu0 0
    %1304 = vmatmul.mubr.bf16.gmra.mxu0 %v1270
    %v1305 = vpop.f32.mrf.mxu0
    %v1306 = vadd.f32 0.0, %v1305
    %v1307 = vpop.f32.mrf.mxu0
    %v1308 = vpop.f32.mrf.mxu0
    %v1309 = vpop.f32.mrf.mxu0
    %1310 = vdwg.mxu0
    %v1311 = vadd.f32 %v1269, %v1306
    %v1312 = vtanh.pop %v1311
    %1313 = vst [vmem:[%s729] sm:$0xff] %v1312
    %s1314 = scalar_lea.vmem [#allocation15], 8
    %1315 = vst [vmem:[%s1314] sm:$0xff] %v1312
    // Predicated region
    $region58: #{tpu_custom_call.1} parent=1 // pred_check
      _
    $region59: #{tpu_custom_call.1} parent=1 // pred_check_branch
      %1317 = sbr.rel (0) target = $region61
    $region60: #{tpu_custom_call.1} parent=1 // pred_region
      %s1319 = ssub.s32 1024, 1024
      %1320 = vsyncadd [#allocation5], %s1319
      %s1321 = sshll.u32 [#allocation14], 4
      %s1322 = int_to_ptr.vmem [resolvable:$true] %s1321
      %1327 = dma.vmem_to_hbm [thread:$0]  %s1322, 1024, %s8, [#allocation5], 128, 128, 8
    $region61: #{tpu_custom_call.1} parent=1 // pred_fallthru
      _
    // Predicated region
    $region62: #{tpu_custom_call.1} parent=1 // pred_check
      _
    $region63: #{tpu_custom_call.1} parent=1 // pred_check_branch
      %1329 = sbr.rel (0) target = $region65
    $region64: #{tpu_custom_call.1} parent=1 // pred_region
      %s1331 = ssub.s32 256, 256
      %1332 = vsyncadd [#allocation16], %s1331
      %s1333 = sshll.u32 [#allocation15], 4
      %s1334 = int_to_ptr.vmem [resolvable:$true] %s1333
      %1339 = dma.vmem_to_hbm [thread:$0]  %s1334, 256, %s9, [#allocation16], 128, 128, 8
    $region65: #{tpu_custom_call.1} parent=1 // pred_fallthru
      _
    // Predicated region
    $region66: #{tpu_custom_call.1} parent=1 // pred_check
      _
    $region67: #{tpu_custom_call.1} parent=1 // pred_check_branch
      %1341 = sbr.rel (0) target = $region69
    $region68: #{tpu_custom_call.1} parent=1 // pred_region
      %1342 = dma.done [#allocation5], 1024
    $region69: #{tpu_custom_call.1} parent=1 // pred_fallthru
      _
    // Predicated region
    $region70: #{tpu_custom_call.1} parent=1 // pred_check
      _
    $region71: #{tpu_custom_call.1} parent=1 // pred_check_branch
      %1344 = sbr.rel (0) target = $region73
    $region72: #{tpu_custom_call.1} parent=1 // pred_region
      %1345 = dma.done [#allocation16], 256
    $region73: #{tpu_custom_call.1} parent=1 // pred_fallthru
      _
    %1346 = vsyncpa [#allocation4], 1
    %1347 = vsyncpa [#allocation7], 1
    %1348 = vsyncpa [#allocation10], 1
    %1349 = vsyncpa [#allocation13], 1
    %1350 = vsyncpa [#allocation5], 1
    %1351 = vsyncpa [#allocation16], 1

</llo_original>
